<compile_context>
chip_gen: v7x
topology: tpu7x:2x2x1
jax: 0.10.0
libtpu: 0.0.40
codegen_flags: <defaults>
</compile_context>

<pallas_src>
import functools
import math

import jax
import jax.numpy as jnp
from jax import lax
from jax.experimental import pallas as pl
from jax.experimental.pallas import tpu as pltpu

_LN_EPS = 1e-5        # PyTorch nn.LayerNorm default
_NEG_BIG = -1e30      # additive mask value (underflows to 0 after exp)


# ----------------------------- in-kernel helpers -----------------------------

def _layernorm_rows(x, g, b, eps=_LN_EPS):
    # LayerNorm over the last axis (biased variance), row-wise.
    mu = jnp.mean(x, axis=-1, keepdims=True)
    var = jnp.mean((x - mu) ** 2, axis=-1, keepdims=True)
    return (x - mu) * lax.rsqrt(var + eps) * g + b


def _erf(x):
    # Abramowitz & Stegun 7.1.26 rational approximation (max abs err ~1.5e-7),
    # reproducing exact (erf-based) nn.GELU() semantics with VPU/EUP ops.
    a1, a2, a3, a4, a5 = 0.254829592, -0.284496736, 1.421413741, -1.453152027, 1.061405429
    p = 0.3275911
    ax = jnp.abs(x)
    t = 1.0 / (1.0 + p * ax)
    poly = ((((a5 * t + a4) * t + a3) * t + a2) * t + a1) * t
    y = 1.0 - poly * jnp.exp(-ax * ax)
    return jnp.where(x >= 0, y, -y)


def _gelu_exact(x):
    return 0.5 * x * (1.0 + _erf(x * (1.0 / math.sqrt(2.0))))


# --------------------------------- kernel ------------------------------------

def mha_layer_kernel(x_ref,
                     wqkv_ref, bqkv_ref,
                     g0_ref, b0_ref, wm_ref, bm_ref,
                     g1_ref, b1_ref,
                     w1_ref, c1_ref, w2_ref, c2_ref,
                     g2_ref, b2_ref,
                     o_ref, *, n_heads, head_dim, causal_mask, mxu_dtype,
                     approx_recip):
    f32 = jnp.float32
    Bb, S, D = x_ref.shape
    H, hd = n_heads, head_dim
    A = H * hd
    R = Bb * S

    x = x_ref[...].astype(f32).reshape(R, D)              # (R, D) flat rows

    # ---- fused Q|K|V projection: one (R, D) @ (D, 3A) MXU op (384 lanes) ----
    qkv = jnp.dot(x.astype(mxu_dtype), wqkv_ref[...],
                  preferred_element_type=f32) + bqkv_ref[...]
    q = qkv[:, 0 * A:1 * A]       # 1/sqrt(hd) already folded into Wq / bq
    k = qkv[:, 1 * A:2 * A]
    v = qkv[:, 2 * A:3 * A]

    # Causal bias built once as a single (S, S) tensor, shared by all (b, h).
    # (PyTorch order is mask-then-scale; with -inf-like bias the softmax result
    # is identical to bias-after-scale, so the Q-folded scale is exact here.)
    if causal_mask:
        row = lax.broadcasted_iota(jnp.int32, (S, S), 0)
        col = lax.broadcasted_iota(jnp.int32, (S, S), 1)
        bias = jnp.where(col <= row, 0.0, _NEG_BIG).astype(f32)

    # ---- per-(batch, head) attention: small 2-D dots, statically unrolled ----
    ctx_rows = []
    for b in range(Bb):
        rows = slice(b * S, (b + 1) * S)
        parts = []
        for h in range(H):
            cols = slice(h * hd, (h + 1) * hd)
            qh = q[rows, cols]
            kh = k[rows, cols]
            vh = v[rows, cols]
            s_h = jnp.einsum('sk,tk->st', qh.astype(mxu_dtype),
                             kh.astype(mxu_dtype),
                             preferred_element_type=f32)          # (S, S)
            if causal_mask:
                s_h = s_h + bias
            s_h = s_h - jnp.max(s_h, axis=-1, keepdims=True)
            p_h = jnp.exp(s_h)
            p_h = p_h * pl.reciprocal(jnp.sum(p_h, axis=-1, keepdims=True),
                                      approx=approx_recip)
            parts.append(jnp.dot(p_h.astype(mxu_dtype), vh.astype(mxu_dtype),
                                 preferred_element_type=f32))     # (S, hd)
        ctx_rows.append(jnp.concatenate(parts, axis=-1))          # (S, A)
    ctx = jnp.concatenate(ctx_rows, axis=0) if Bb > 1 else ctx_rows[0]  # (R, A)

    # ---- ln0 as plain row LayerNorm + full-width (R,A)@(A,D) mha_mlp ----
    ctx_n = _layernorm_rows(ctx, g0_ref[...], b0_ref[...])
    mha = jnp.dot(ctx_n.astype(mxu_dtype), wm_ref[...],
                  preferred_element_type=f32) + bm_ref[...]       # (R, D)

    # dropout(p=0) == identity
    x1 = _layernorm_rows(mha + x, g1_ref[...], b1_ref[...])

    # ---- MLP: Linear(D, 4D) -> GELU(exact) -> Linear(4D, D) ----
    h1 = jnp.dot(x1.astype(mxu_dtype), w1_ref[...],
                 preferred_element_type=f32) + c1_ref[...]
    h1 = _gelu_exact(h1)
    mlp = jnp.dot(h1.astype(mxu_dtype), w2_ref[...],
                  preferred_element_type=f32) + c2_ref[...]

    out = _layernorm_rows(mlp + x1, g2_ref[...], b2_ref[...])
    o_ref[...] = out.reshape(Bb, S, D).astype(o_ref.dtype)


# ------------------------------ pallas wrapper --------------------------------

def multihead_attention_layer(x, params, *, n_heads, causal_mask=False,
                              batch_block=1, use_bf16_matmul=False,
                              approx_softmax_recip=False):
    B, S, D = x.shape
    attn_dim = params['wq'].shape[1]
    hd = attn_dim // n_heads
    hidden = params['w1'].shape[1]
    assert B % batch_block == 0, (B, batch_block)
    grid_b = B // batch_block

    f32 = jnp.float32
    mxu_dtype = jnp.bfloat16 if use_bf16_matmul else f32
    w_dt = mxu_dtype   # big matmul weights only; biases / LN params stay f32

    # --- wrapper-side packing: fuse Wq|Wk|Wv and fold 1/sqrt(hd) into Q ---
    scale = 1.0 / math.sqrt(hd)
    wqkv = jnp.concatenate([params['wq'] * scale, params['wk'], params['wv']],
                           axis=1)                              # (D, 3*attn_dim)
    bqkv = jnp.concatenate([params['bq'] * scale, params['bk'], params['bv']]
                           ).reshape(1, 3 * attn_dim)

    weights = [
        wqkv.astype(w_dt), bqkv.astype(f32),
        params['ln0g'].reshape(1, attn_dim).astype(f32),
        params['ln0b'].reshape(1, attn_dim).astype(f32),
        params['wm'].astype(w_dt), params['bm'].reshape(1, D).astype(f32),
        params['ln1g'].reshape(1, D).astype(f32),
        params['ln1b'].reshape(1, D).astype(f32),
        params['w1'].astype(w_dt), params['b1'].reshape(1, hidden).astype(f32),
        params['w2'].astype(w_dt), params['b2'].reshape(1, D).astype(f32),
        params['ln2g'].reshape(1, D).astype(f32),
        params['ln2b'].reshape(1, D).astype(f32),
    ]

    # Advisory cost estimate for the XLA scheduler.
    flops_per_b = (2 * S * D * 3 * attn_dim          # fused QKV projection
                   + 2 * 2 * S * S * attn_dim        # scores + p @ v
                   + 2 * S * attn_dim * D            # mha_mlp
                   + 2 * 2 * S * D * hidden)         # MLP
    transc_per_b = n_heads * S * S + 2 * S * hidden + 6 * S
    bytes_accessed = (4 * 2 * B * S * D
                      + sum(int(w.size) * int(w.dtype.itemsize) for w in weights))

    kernel = functools.partial(mha_layer_kernel, n_heads=n_heads, head_dim=hd,
                               causal_mask=causal_mask, mxu_dtype=mxu_dtype,
                               approx_recip=approx_softmax_recip)

    def _const_spec(shape):
        return pl.BlockSpec(shape, lambda b: (0,) * len(shape))

    return pl.pallas_call(
        kernel,
        out_shape=jax.ShapeDtypeStruct((B, S, D), x.dtype),
        grid=(grid_b,),
        in_specs=[pl.BlockSpec((batch_block, S, D), lambda b: (b, 0, 0))]
                 + [_const_spec(tuple(w.shape)) for w in weights],
        out_specs=pl.BlockSpec((batch_block, S, D), lambda b: (b, 0, 0)),
        compiler_params=pltpu.CompilerParams(
            dimension_semantics=("parallel",),       # v7x: 2 TCs split the batch
            vmem_limit_bytes=32 * 1024 * 1024),
        cost_estimate=pl.CostEstimate(flops=int(B * flops_per_b),
                                      transcendentals=int(B * transc_per_b),
                                      bytes_accessed=int(bytes_accessed)),
    )(x, *weights)


# --------------------------- pure-JAX reference --------------------------------

def reference_forward(x, params, *, n_heads, causal_mask=False):
    B, S, D = x.shape
    attn_dim = params['wq'].shape[1]
    hd = attn_dim // n_heads

    def ln(z, g, b):
        mu = jnp.mean(z, axis=-1, keepdims=True)
        var = jnp.mean((z - mu) ** 2, axis=-1, keepdims=True)
        return (z - mu) * lax.rsqrt(var + _LN_EPS) * g + b

    def heads(z):   # (B,S,attn) -> (B,H,S,hd)
        return z.reshape(B, S, n_heads, hd).transpose(0, 2, 1, 3)

    q = heads(x @ params['wq'] + params['bq'])
    k = heads(x @ params['wk'] + params['bk'])
    v = heads(x @ params['wv'] + params['bv'])
    scores = jnp.einsum('bhsk,bhtk->bhst', q, k)
    if causal_mask:
        idx = jnp.arange(S)
        allowed = idx[None, :] <= idx[:, None]           # [query, key]
        scores = jnp.where(allowed[None, None], scores, _NEG_BIG)
    scores = scores / math.sqrt(hd)
    a = jax.nn.softmax(scores, axis=-1)
    ctx = jnp.einsum('bhst,bhtk->bhsk', a, v)
    concat = ctx.transpose(0, 2, 1, 3).reshape(B, S, attn_dim)

    mha = ln(concat, params['ln0g'], params['ln0b']) @ params['wm'] + params['bm']
    x1 = ln(mha + x, params['ln1g'], params['ln1b'])
    h1 = jax.nn.gelu(x1 @ params['w1'] + params['b1'], approximate=False)
    mlp = h1 @ params['w2'] + params['b2']
    return ln(mlp + x1, params['ln2g'], params['ln2b'])


# ----------------------------- parameter set-up --------------------------------

def init_params(key, input_dim, attn_dim, hidden):
    ks = jax.random.split(key, 16)

    def w(k, shape):
        return jax.random.normal(k, shape, jnp.float32) / math.sqrt(shape[0])

    def b(k, n):
        return jax.random.uniform(k, (n,), jnp.float32, -0.1, 0.1)

    def g(k, n):
        return 1.0 + 0.1 * jax.random.normal(k, (n,), jnp.float32)

    return dict(
        wq=w(ks[0], (input_dim, attn_dim)), bq=b(ks[1], attn_dim),
        wk=w(ks[2], (input_dim, attn_dim)), bk=b(ks[3], attn_dim),
        wv=w(ks[4], (input_dim, attn_dim)), bv=b(ks[5], attn_dim),
        ln0g=g(ks[6], attn_dim),
        ln0b=0.1 * jax.random.normal(ks[7], (attn_dim,), jnp.float32),
        wm=w(ks[8], (attn_dim, input_dim)), bm=b(ks[9], input_dim),
        ln1g=g(ks[10], input_dim), ln1b=jnp.zeros((input_dim,), jnp.float32),
        w1=w(ks[11], (input_dim, hidden)), b1=b(ks[12], hidden),
        w2=w(ks[13], (hidden, input_dim)), b2=b(ks[14], input_dim),
        ln2g=g(ks[15], input_dim), ln2b=jnp.zeros((input_dim,), jnp.float32),
    )


# ----------------------------------- main ---------------------------------------

if __name__ == "__main__":
    # Small lane-dense shapes consistent with the module:
    # n_heads=4, input_dim=attn_dim=128 (head_dim=32), MLP hidden=512, B=2, S=8.
    B, S = 2, 8
    input_dim, attn_dim, n_heads = 128, 128, 4
    hidden = 4 * input_dim

    key = jax.random.PRNGKey(0)
    kp, kx = jax.random.split(key)
    params = init_params(kp, input_dim, attn_dim, hidden)
    x = jax.random.normal(kx, (B, S, input_dim), jnp.float32)

    ref = reference_forward(x, params, n_heads=n_heads)
    ref_m = reference_forward(x, params, n_heads=n_heads, causal_mask=True)

    # 1) f32, mask=False, one fat step (grid=(1,)) — best on single-TC v5e/v6e.
    fwd_fat = jax.jit(functools.partial(multihead_attention_layer,
                                        n_heads=n_heads, batch_block=B))
    out = jax.block_until_ready(fwd_fat(x, params))
    assert out.shape == (B, S, input_dim), out.shape
    err = float(jnp.max(jnp.abs(out - ref)))
    assert jnp.allclose(out, ref, rtol=1e-4, atol=1e-4), err

    # 2) f32, causal mask, grid=(B,) "parallel" — v7x: the two TCs split B.
    fwd_m = jax.jit(functools.partial(multihead_attention_layer, n_heads=n_heads,
                                      causal_mask=True, batch_block=1))
    out_m = jax.block_until_ready(fwd_m(x, params))
    err_m = float(jnp.max(jnp.abs(out_m - ref_m)))
    assert jnp.allclose(out_m, ref_m, rtol=1e-4, atol=1e-4), err_m

    # 3) bf16 MXU operands + approx softmax reciprocal (v6e/v7x throughput path).
    #    Loose tolerance on purpose: bf16 operand rounding; exactness is
    #    established by the f32 paths above.
    fwd_bf16 = jax.jit(functools.partial(multihead_attention_layer,
                                         n_heads=n_heads, batch_block=B,
                                         use_bf16_matmul=True,
                                         approx_softmax_recip=True))
    out_b = jax.block_until_ready(fwd_bf16(x, params))
    assert bool(jnp.all(jnp.isfinite(out_b)))
    err_b = float(jnp.max(jnp.abs(out_b - ref)))
    assert jnp.allclose(out_b, ref, rtol=1e-1, atol=1e-1), err_b

    print("KERNEL_OK")
</pallas_src>

<mosaic_0001>
module attributes {stable_mosaic.version = 11 : i64} {
  func.func @mha_layer_kernel(%arg0: i32, %arg1: memref<2x8x128xf32, #tpu.memory_space<vmem>>, %arg2: memref<128x384xf32, #tpu.memory_space<vmem>>, %arg3: memref<1x384xf32, #tpu.memory_space<vmem>>, %arg4: memref<1x128xf32, #tpu.memory_space<vmem>>, %arg5: memref<1x128xf32, #tpu.memory_space<vmem>>, %arg6: memref<128x128xf32, #tpu.memory_space<vmem>>, %arg7: memref<1x128xf32, #tpu.memory_space<vmem>>, %arg8: memref<1x128xf32, #tpu.memory_space<vmem>>, %arg9: memref<1x128xf32, #tpu.memory_space<vmem>>, %arg10: memref<128x512xf32, #tpu.memory_space<vmem>>, %arg11: memref<1x512xf32, #tpu.memory_space<vmem>>, %arg12: memref<512x128xf32, #tpu.memory_space<vmem>>, %arg13: memref<1x128xf32, #tpu.memory_space<vmem>>, %arg14: memref<1x128xf32, #tpu.memory_space<vmem>>, %arg15: memref<1x128xf32, #tpu.memory_space<vmem>>, %arg16: memref<2x8x128xf32, #tpu.memory_space<vmem>>) attributes {dimension_semantics = [#tpu.dimension_semantics<parallel>], iteration_bounds = array<i64: 1>, scalar_prefetch = 0 : i64, scratch_operands = 0 : i64, tpu.core_type = #tpu.core_type<tc>, window_params = [{transform_indices = @transform_0, window_bounds = array<i64: 2, 8, 128>}, {pipeline_mode = #tpu.pipeline_mode<synchronous>, transform_indices = @transform_1, window_bounds = array<i64: 128, 384>}, {pipeline_mode = #tpu.pipeline_mode<synchronous>, transform_indices = @transform_2, window_bounds = array<i64: 1, 384>}, {pipeline_mode = #tpu.pipeline_mode<synchronous>, transform_indices = @transform_3, window_bounds = array<i64: 1, 128>}, {pipeline_mode = #tpu.pipeline_mode<synchronous>, transform_indices = @transform_4, window_bounds = array<i64: 1, 128>}, {pipeline_mode = #tpu.pipeline_mode<synchronous>, transform_indices = @transform_5, window_bounds = array<i64: 128, 128>}, {pipeline_mode = #tpu.pipeline_mode<synchronous>, transform_indices = @transform_6, window_bounds = array<i64: 1, 128>}, {pipeline_mode = #tpu.pipeline_mode<synchronous>, transform_indices = @transform_7, window_bounds = array<i64: 1, 128>}, {pipeline_mode = #tpu.pipeline_mode<synchronous>, transform_indices = @transform_8, window_bounds = array<i64: 1, 128>}, {pipeline_mode = #tpu.pipeline_mode<synchronous>, transform_indices = @transform_9, window_bounds = array<i64: 128, 512>}, {pipeline_mode = #tpu.pipeline_mode<synchronous>, transform_indices = @transform_10, window_bounds = array<i64: 1, 512>}, {pipeline_mode = #tpu.pipeline_mode<synchronous>, transform_indices = @transform_11, window_bounds = array<i64: 512, 128>}, {pipeline_mode = #tpu.pipeline_mode<synchronous>, transform_indices = @transform_12, window_bounds = array<i64: 1, 128>}, {pipeline_mode = #tpu.pipeline_mode<synchronous>, transform_indices = @transform_13, window_bounds = array<i64: 1, 128>}, {pipeline_mode = #tpu.pipeline_mode<synchronous>, transform_indices = @transform_14, window_bounds = array<i64: 1, 128>}, {transform_indices = @transform_15, window_bounds = array<i64: 2, 8, 128>}]} {
    %c0 = arith.constant 0 : index
    %c0_0 = arith.constant 0 : index
    %c0_1 = arith.constant 0 : index
    %0 = vector.load %arg1[%c0, %c0_0, %c0_1] : memref<2x8x128xf32, #tpu.memory_space<vmem>>, vector<2x8x128xf32>
    %1 = vector.shape_cast %0 : vector<2x8x128xf32> to vector<16x128xf32>
    %c0_2 = arith.constant 0 : index
    %c0_3 = arith.constant 0 : index
    %2 = vector.load %arg2[%c0_2, %c0_3] : memref<128x384xf32, #tpu.memory_space<vmem>>, vector<128x384xf32>
    %cst = arith.constant dense<0.000000e+00> : vector<16x384xf32>
    %3 = tpu.matmul %1, %2, %cst {dimension_numbers = #tpu.dot_dimension_numbers<[1], [0], [0], [1], [0, 0, 1, 1], [], []>} : vector<16x128xf32>, vector<128x384xf32>, vector<16x384xf32> -> vector<16x384xf32>
    %c0_4 = arith.constant 0 : index
    %c0_5 = arith.constant 0 : index
    %4 = vector.load %arg3[%c0_4, %c0_5] : memref<1x384xf32, #tpu.memory_space<vmem>>, vector<1x384xf32>
    %5 = vector.broadcast %4 : vector<1x384xf32> to vector<16x384xf32>
    %6 = arith.addf %3, %5 : vector<16x384xf32>
    %7 = vector.extract_strided_slice %6 {offsets = [0, 0], sizes = [16, 128], strides = [1, 1]} : vector<16x384xf32> to vector<16x128xf32>
    %8 = vector.extract_strided_slice %6 {offsets = [0, 128], sizes = [16, 128], strides = [1, 1]} : vector<16x384xf32> to vector<16x128xf32>
    %9 = vector.extract_strided_slice %6 {offsets = [0, 256], sizes = [16, 128], strides = [1, 1]} : vector<16x384xf32> to vector<16x128xf32>
    %10 = vector.extract_strided_slice %7 {offsets = [0, 0], sizes = [8, 32], strides = [1, 1]} : vector<16x128xf32> to vector<8x32xf32>
    %11 = vector.extract_strided_slice %8 {offsets = [0, 0], sizes = [8, 32], strides = [1, 1]} : vector<16x128xf32> to vector<8x32xf32>
    %12 = vector.extract_strided_slice %9 {offsets = [0, 0], sizes = [8, 32], strides = [1, 1]} : vector<16x128xf32> to vector<8x32xf32>
    "tpu.trace_start"() <{level = 10 : i32, message = "sk,tk->st"}> : () -> ()
    %cst_6 = arith.constant dense<0.000000e+00> : vector<8x8xf32>
    %13 = tpu.matmul %10, %11, %cst_6 {dimension_numbers = #tpu.dot_dimension_numbers<[1], [1], [0], [0], [0, 0, 1, 0], [], []>} : vector<8x32xf32>, vector<8x32xf32>, vector<8x8xf32> -> vector<8x8xf32>
    "tpu.trace_stop"() : () -> ()
    %cst_7 = arith.constant dense<0xFF800000> : vector<8xf32>
    %14 = vector.multi_reduction <maximumf>, %13, %cst_7 [1] : vector<8x8xf32> to vector<8xf32>
    %15 = vector.shape_cast %14 : vector<8xf32> to vector<8x1xf32>
    %16 = vector.broadcast %15 : vector<8x1xf32> to vector<8x8xf32>
    %17 = arith.subf %13, %16 : vector<8x8xf32>
    %18 = math.exp %17 : vector<8x8xf32>
    %cst_8 = arith.constant dense<0.000000e+00> : vector<8xf32>
    %19 = vector.multi_reduction <add>, %18, %cst_8 [1] : vector<8x8xf32> to vector<8xf32>
    %20 = vector.shape_cast %19 : vector<8xf32> to vector<8x1xf32>
    %21 = tpu.reciprocal %20 : vector<8x1xf32> -> vector<8x1xf32>
    %22 = vector.broadcast %21 : vector<8x1xf32> to vector<8x8xf32>
    %23 = arith.mulf %18, %22 : vector<8x8xf32>
    %cst_9 = arith.constant dense<0.000000e+00> : vector<8x32xf32>
    %24 = tpu.matmul %23, %12, %cst_9 {dimension_numbers = #tpu.dot_dimension_numbers<[1], [0], [0], [1], [0, 0, 1, 1], [], []>} : vector<8x8xf32>, vector<8x32xf32>, vector<8x32xf32> -> vector<8x32xf32>
    %25 = vector.extract_strided_slice %7 {offsets = [0, 32], sizes = [8, 32], strides = [1, 1]} : vector<16x128xf32> to vector<8x32xf32>
    %26 = vector.extract_strided_slice %8 {offsets = [0, 32], sizes = [8, 32], strides = [1, 1]} : vector<16x128xf32> to vector<8x32xf32>
    %27 = vector.extract_strided_slice %9 {offsets = [0, 32], sizes = [8, 32], strides = [1, 1]} : vector<16x128xf32> to vector<8x32xf32>
    "tpu.trace_start"() <{level = 10 : i32, message = "sk,tk->st"}> : () -> ()
    %cst_10 = arith.constant dense<0.000000e+00> : vector<8x8xf32>
    %28 = tpu.matmul %25, %26, %cst_10 {dimension_numbers = #tpu.dot_dimension_numbers<[1], [1], [0], [0], [0, 0, 1, 0], [], []>} : vector<8x32xf32>, vector<8x32xf32>, vector<8x8xf32> -> vector<8x8xf32>
    "tpu.trace_stop"() : () -> ()
    %cst_11 = arith.constant dense<0xFF800000> : vector<8xf32>
    %29 = vector.multi_reduction <maximumf>, %28, %cst_11 [1] : vector<8x8xf32> to vector<8xf32>
    %30 = vector.shape_cast %29 : vector<8xf32> to vector<8x1xf32>
    %31 = vector.broadcast %30 : vector<8x1xf32> to vector<8x8xf32>
    %32 = arith.subf %28, %31 : vector<8x8xf32>
    %33 = math.exp %32 : vector<8x8xf32>
    %cst_12 = arith.constant dense<0.000000e+00> : vector<8xf32>
    %34 = vector.multi_reduction <add>, %33, %cst_12 [1] : vector<8x8xf32> to vector<8xf32>
    %35 = vector.shape_cast %34 : vector<8xf32> to vector<8x1xf32>
    %36 = tpu.reciprocal %35 : vector<8x1xf32> -> vector<8x1xf32>
    %37 = vector.broadcast %36 : vector<8x1xf32> to vector<8x8xf32>
    %38 = arith.mulf %33, %37 : vector<8x8xf32>
    %cst_13 = arith.constant dense<0.000000e+00> : vector<8x32xf32>
    %39 = tpu.matmul %38, %27, %cst_13 {dimension_numbers = #tpu.dot_dimension_numbers<[1], [0], [0], [1], [0, 0, 1, 1], [], []>} : vector<8x8xf32>, vector<8x32xf32>, vector<8x32xf32> -> vector<8x32xf32>
    %40 = vector.extract_strided_slice %7 {offsets = [0, 64], sizes = [8, 32], strides = [1, 1]} : vector<16x128xf32> to vector<8x32xf32>
    %41 = vector.extract_strided_slice %8 {offsets = [0, 64], sizes = [8, 32], strides = [1, 1]} : vector<16x128xf32> to vector<8x32xf32>
    %42 = vector.extract_strided_slice %9 {offsets = [0, 64], sizes = [8, 32], strides = [1, 1]} : vector<16x128xf32> to vector<8x32xf32>
    "tpu.trace_start"() <{level = 10 : i32, message = "sk,tk->st"}> : () -> ()
    %cst_14 = arith.constant dense<0.000000e+00> : vector<8x8xf32>
    %43 = tpu.matmul %40, %41, %cst_14 {dimension_numbers = #tpu.dot_dimension_numbers<[1], [1], [0], [0], [0, 0, 1, 0], [], []>} : vector<8x32xf32>, vector<8x32xf32>, vector<8x8xf32> -> vector<8x8xf32>
    "tpu.trace_stop"() : () -> ()
    %cst_15 = arith.constant dense<0xFF800000> : vector<8xf32>
    %44 = vector.multi_reduction <maximumf>, %43, %cst_15 [1] : vector<8x8xf32> to vector<8xf32>
    %45 = vector.shape_cast %44 : vector<8xf32> to vector<8x1xf32>
    %46 = vector.broadcast %45 : vector<8x1xf32> to vector<8x8xf32>
    %47 = arith.subf %43, %46 : vector<8x8xf32>
    %48 = math.exp %47 : vector<8x8xf32>
    %cst_16 = arith.constant dense<0.000000e+00> : vector<8xf32>
    %49 = vector.multi_reduction <add>, %48, %cst_16 [1] : vector<8x8xf32> to vector<8xf32>
    %50 = vector.shape_cast %49 : vector<8xf32> to vector<8x1xf32>
    %51 = tpu.reciprocal %50 : vector<8x1xf32> -> vector<8x1xf32>
    %52 = vector.broadcast %51 : vector<8x1xf32> to vector<8x8xf32>
    %53 = arith.mulf %48, %52 : vector<8x8xf32>
    %cst_17 = arith.constant dense<0.000000e+00> : vector<8x32xf32>
    %54 = tpu.matmul %53, %42, %cst_17 {dimension_numbers = #tpu.dot_dimension_numbers<[1], [0], [0], [1], [0, 0, 1, 1], [], []>} : vector<8x8xf32>, vector<8x32xf32>, vector<8x32xf32> -> vector<8x32xf32>
    %55 = vector.extract_strided_slice %7 {offsets = [0, 96], sizes = [8, 32], strides = [1, 1]} : vector<16x128xf32> to vector<8x32xf32>
    %56 = vector.extract_strided_slice %8 {offsets = [0, 96], sizes = [8, 32], strides = [1, 1]} : vector<16x128xf32> to vector<8x32xf32>
    %57 = vector.extract_strided_slice %9 {offsets = [0, 96], sizes = [8, 32], strides = [1, 1]} : vector<16x128xf32> to vector<8x32xf32>
    "tpu.trace_start"() <{level = 10 : i32, message = "sk,tk->st"}> : () -> ()
    %cst_18 = arith.constant dense<0.000000e+00> : vector<8x8xf32>
    %58 = tpu.matmul %55, %56, %cst_18 {dimension_numbers = #tpu.dot_dimension_numbers<[1], [1], [0], [0], [0, 0, 1, 0], [], []>} : vector<8x32xf32>, vector<8x32xf32>, vector<8x8xf32> -> vector<8x8xf32>
    "tpu.trace_stop"() : () -> ()
    %cst_19 = arith.constant dense<0xFF800000> : vector<8xf32>
    %59 = vector.multi_reduction <maximumf>, %58, %cst_19 [1] : vector<8x8xf32> to vector<8xf32>
    %60 = vector.shape_cast %59 : vector<8xf32> to vector<8x1xf32>
    %61 = vector.broadcast %60 : vector<8x1xf32> to vector<8x8xf32>
    %62 = arith.subf %58, %61 : vector<8x8xf32>
    %63 = math.exp %62 : vector<8x8xf32>
    %cst_20 = arith.constant dense<0.000000e+00> : vector<8xf32>
    %64 = vector.multi_reduction <add>, %63, %cst_20 [1] : vector<8x8xf32> to vector<8xf32>
    %65 = vector.shape_cast %64 : vector<8xf32> to vector<8x1xf32>
    %66 = tpu.reciprocal %65 : vector<8x1xf32> -> vector<8x1xf32>
    %67 = vector.broadcast %66 : vector<8x1xf32> to vector<8x8xf32>
    %68 = arith.mulf %63, %67 : vector<8x8xf32>
    %cst_21 = arith.constant dense<0.000000e+00> : vector<8x32xf32>
    %69 = tpu.matmul %68, %57, %cst_21 {dimension_numbers = #tpu.dot_dimension_numbers<[1], [0], [0], [1], [0, 0, 1, 1], [], []>} : vector<8x8xf32>, vector<8x32xf32>, vector<8x32xf32> -> vector<8x32xf32>
    %70 = tpu.concatenate %24, %39, %54, %69 in 1 : vector<8x32xf32>, vector<8x32xf32>, vector<8x32xf32>, vector<8x32xf32> -> vector<8x128xf32>
    %71 = vector.extract_strided_slice %7 {offsets = [8, 0], sizes = [8, 32], strides = [1, 1]} : vector<16x128xf32> to vector<8x32xf32>
    %72 = vector.extract_strided_slice %8 {offsets = [8, 0], sizes = [8, 32], strides = [1, 1]} : vector<16x128xf32> to vector<8x32xf32>
    %73 = vector.extract_strided_slice %9 {offsets = [8, 0], sizes = [8, 32], strides = [1, 1]} : vector<16x128xf32> to vector<8x32xf32>
    "tpu.trace_start"() <{level = 10 : i32, message = "sk,tk->st"}> : () -> ()
    %cst_22 = arith.constant dense<0.000000e+00> : vector<8x8xf32>
    %74 = tpu.matmul %71, %72, %cst_22 {dimension_numbers = #tpu.dot_dimension_numbers<[1], [1], [0], [0], [0, 0, 1, 0], [], []>} : vector<8x32xf32>, vector<8x32xf32>, vector<8x8xf32> -> vector<8x8xf32>
    "tpu.trace_stop"() : () -> ()
    %cst_23 = arith.constant dense<0xFF800000> : vector<8xf32>
    %75 = vector.multi_reduction <maximumf>, %74, %cst_23 [1] : vector<8x8xf32> to vector<8xf32>
    %76 = vector.shape_cast %75 : vector<8xf32> to vector<8x1xf32>
    %77 = vector.broadcast %76 : vector<8x1xf32> to vector<8x8xf32>
    %78 = arith.subf %74, %77 : vector<8x8xf32>
    %79 = math.exp %78 : vector<8x8xf32>
    %cst_24 = arith.constant dense<0.000000e+00> : vector<8xf32>
    %80 = vector.multi_reduction <add>, %79, %cst_24 [1] : vector<8x8xf32> to vector<8xf32>
    %81 = vector.shape_cast %80 : vector<8xf32> to vector<8x1xf32>
    %82 = tpu.reciprocal %81 : vector<8x1xf32> -> vector<8x1xf32>
    %83 = vector.broadcast %82 : vector<8x1xf32> to vector<8x8xf32>
    %84 = arith.mulf %79, %83 : vector<8x8xf32>
    %cst_25 = arith.constant dense<0.000000e+00> : vector<8x32xf32>
    %85 = tpu.matmul %84, %73, %cst_25 {dimension_numbers = #tpu.dot_dimension_numbers<[1], [0], [0], [1], [0, 0, 1, 1], [], []>} : vector<8x8xf32>, vector<8x32xf32>, vector<8x32xf32> -> vector<8x32xf32>
    %86 = vector.extract_strided_slice %7 {offsets = [8, 32], sizes = [8, 32], strides = [1, 1]} : vector<16x128xf32> to vector<8x32xf32>
    %87 = vector.extract_strided_slice %8 {offsets = [8, 32], sizes = [8, 32], strides = [1, 1]} : vector<16x128xf32> to vector<8x32xf32>
    %88 = vector.extract_strided_slice %9 {offsets = [8, 32], sizes = [8, 32], strides = [1, 1]} : vector<16x128xf32> to vector<8x32xf32>
    "tpu.trace_start"() <{level = 10 : i32, message = "sk,tk->st"}> : () -> ()
    %cst_26 = arith.constant dense<0.000000e+00> : vector<8x8xf32>
    %89 = tpu.matmul %86, %87, %cst_26 {dimension_numbers = #tpu.dot_dimension_numbers<[1], [1], [0], [0], [0, 0, 1, 0], [], []>} : vector<8x32xf32>, vector<8x32xf32>, vector<8x8xf32> -> vector<8x8xf32>
    "tpu.trace_stop"() : () -> ()
    %cst_27 = arith.constant dense<0xFF800000> : vector<8xf32>
    %90 = vector.multi_reduction <maximumf>, %89, %cst_27 [1] : vector<8x8xf32> to vector<8xf32>
    %91 = vector.shape_cast %90 : vector<8xf32> to vector<8x1xf32>
    %92 = vector.broadcast %91 : vector<8x1xf32> to vector<8x8xf32>
    %93 = arith.subf %89, %92 : vector<8x8xf32>
    %94 = math.exp %93 : vector<8x8xf32>
    %cst_28 = arith.constant dense<0.000000e+00> : vector<8xf32>
    %95 = vector.multi_reduction <add>, %94, %cst_28 [1] : vector<8x8xf32> to vector<8xf32>
    %96 = vector.shape_cast %95 : vector<8xf32> to vector<8x1xf32>
    %97 = tpu.reciprocal %96 : vector<8x1xf32> -> vector<8x1xf32>
    %98 = vector.broadcast %97 : vector<8x1xf32> to vector<8x8xf32>
    %99 = arith.mulf %94, %98 : vector<8x8xf32>
    %cst_29 = arith.constant dense<0.000000e+00> : vector<8x32xf32>
    %100 = tpu.matmul %99, %88, %cst_29 {dimension_numbers = #tpu.dot_dimension_numbers<[1], [0], [0], [1], [0, 0, 1, 1], [], []>} : vector<8x8xf32>, vector<8x32xf32>, vector<8x32xf32> -> vector<8x32xf32>
    %101 = vector.extract_strided_slice %7 {offsets = [8, 64], sizes = [8, 32], strides = [1, 1]} : vector<16x128xf32> to vector<8x32xf32>
    %102 = vector.extract_strided_slice %8 {offsets = [8, 64], sizes = [8, 32], strides = [1, 1]} : vector<16x128xf32> to vector<8x32xf32>
    %103 = vector.extract_strided_slice %9 {offsets = [8, 64], sizes = [8, 32], strides = [1, 1]} : vector<16x128xf32> to vector<8x32xf32>
    "tpu.trace_start"() <{level = 10 : i32, message = "sk,tk->st"}> : () -> ()
    %cst_30 = arith.constant dense<0.000000e+00> : vector<8x8xf32>
    %104 = tpu.matmul %101, %102, %cst_30 {dimension_numbers = #tpu.dot_dimension_numbers<[1], [1], [0], [0], [0, 0, 1, 0], [], []>} : vector<8x32xf32>, vector<8x32xf32>, vector<8x8xf32> -> vector<8x8xf32>
    "tpu.trace_stop"() : () -> ()
    %cst_31 = arith.constant dense<0xFF800000> : vector<8xf32>
    %105 = vector.multi_reduction <maximumf>, %104, %cst_31 [1] : vector<8x8xf32> to vector<8xf32>
    %106 = vector.shape_cast %105 : vector<8xf32> to vector<8x1xf32>
    %107 = vector.broadcast %106 : vector<8x1xf32> to vector<8x8xf32>
    %108 = arith.subf %104, %107 : vector<8x8xf32>
    %109 = math.exp %108 : vector<8x8xf32>
    %cst_32 = arith.constant dense<0.000000e+00> : vector<8xf32>
    %110 = vector.multi_reduction <add>, %109, %cst_32 [1] : vector<8x8xf32> to vector<8xf32>
    %111 = vector.shape_cast %110 : vector<8xf32> to vector<8x1xf32>
    %112 = tpu.reciprocal %111 : vector<8x1xf32> -> vector<8x1xf32>
    %113 = vector.broadcast %112 : vector<8x1xf32> to vector<8x8xf32>
    %114 = arith.mulf %109, %113 : vector<8x8xf32>
    %cst_33 = arith.constant dense<0.000000e+00> : vector<8x32xf32>
    %115 = tpu.matmul %114, %103, %cst_33 {dimension_numbers = #tpu.dot_dimension_numbers<[1], [0], [0], [1], [0, 0, 1, 1], [], []>} : vector<8x8xf32>, vector<8x32xf32>, vector<8x32xf32> -> vector<8x32xf32>
    %116 = vector.extract_strided_slice %7 {offsets = [8, 96], sizes = [8, 32], strides = [1, 1]} : vector<16x128xf32> to vector<8x32xf32>
    %117 = vector.extract_strided_slice %8 {offsets = [8, 96], sizes = [8, 32], strides = [1, 1]} : vector<16x128xf32> to vector<8x32xf32>
    %118 = vector.extract_strided_slice %9 {offsets = [8, 96], sizes = [8, 32], strides = [1, 1]} : vector<16x128xf32> to vector<8x32xf32>
    "tpu.trace_start"() <{level = 10 : i32, message = "sk,tk->st"}> : () -> ()
    %cst_34 = arith.constant dense<0.000000e+00> : vector<8x8xf32>
    %119 = tpu.matmul %116, %117, %cst_34 {dimension_numbers = #tpu.dot_dimension_numbers<[1], [1], [0], [0], [0, 0, 1, 0], [], []>} : vector<8x32xf32>, vector<8x32xf32>, vector<8x8xf32> -> vector<8x8xf32>
    "tpu.trace_stop"() : () -> ()
    %cst_35 = arith.constant dense<0xFF800000> : vector<8xf32>
    %120 = vector.multi_reduction <maximumf>, %119, %cst_35 [1] : vector<8x8xf32> to vector<8xf32>
    %121 = vector.shape_cast %120 : vector<8xf32> to vector<8x1xf32>
    %122 = vector.broadcast %121 : vector<8x1xf32> to vector<8x8xf32>
    %123 = arith.subf %119, %122 : vector<8x8xf32>
    %124 = math.exp %123 : vector<8x8xf32>
    %cst_36 = arith.constant dense<0.000000e+00> : vector<8xf32>
    %125 = vector.multi_reduction <add>, %124, %cst_36 [1] : vector<8x8xf32> to vector<8xf32>
    %126 = vector.shape_cast %125 : vector<8xf32> to vector<8x1xf32>
    %127 = tpu.reciprocal %126 : vector<8x1xf32> -> vector<8x1xf32>
    %128 = vector.broadcast %127 : vector<8x1xf32> to vector<8x8xf32>
    %129 = arith.mulf %124, %128 : vector<8x8xf32>
    %cst_37 = arith.constant dense<0.000000e+00> : vector<8x32xf32>
    %130 = tpu.matmul %129, %118, %cst_37 {dimension_numbers = #tpu.dot_dimension_numbers<[1], [0], [0], [1], [0, 0, 1, 1], [], []>} : vector<8x8xf32>, vector<8x32xf32>, vector<8x32xf32> -> vector<8x32xf32>
    %131 = tpu.concatenate %85, %100, %115, %130 in 1 : vector<8x32xf32>, vector<8x32xf32>, vector<8x32xf32>, vector<8x32xf32> -> vector<8x128xf32>
    %132 = tpu.concatenate %70, %131 in 0 : vector<8x128xf32>, vector<8x128xf32> -> vector<16x128xf32>
    %c0_38 = arith.constant 0 : index
    %c0_39 = arith.constant 0 : index
    %133 = vector.load %arg4[%c0_38, %c0_39] : memref<1x128xf32, #tpu.memory_space<vmem>>, vector<1x128xf32>
    %c0_40 = arith.constant 0 : index
    %c0_41 = arith.constant 0 : index
    %134 = vector.load %arg5[%c0_40, %c0_41] : memref<1x128xf32, #tpu.memory_space<vmem>>, vector<1x128xf32>
    %cst_42 = arith.constant dense<0.000000e+00> : vector<16xf32>
    %135 = vector.multi_reduction <add>, %132, %cst_42 [1] : vector<16x128xf32> to vector<16xf32>
    %136 = vector.shape_cast %135 : vector<16xf32> to vector<16x1xf32>
    %cst_43 = arith.constant 1.280000e+02 : f32
    %137 = vector.broadcast %cst_43 : f32 to vector<16x1xf32>
    %138 = arith.divf %136, %137 : vector<16x1xf32>
    %139 = vector.broadcast %138 : vector<16x1xf32> to vector<16x128xf32>
    %140 = arith.subf %132, %139 : vector<16x128xf32>
    %141 = arith.mulf %140, %140 : vector<16x128xf32>
    %cst_44 = arith.constant dense<0.000000e+00> : vector<16xf32>
    %142 = vector.multi_reduction <add>, %141, %cst_44 [1] : vector<16x128xf32> to vector<16xf32>
    %143 = vector.shape_cast %142 : vector<16xf32> to vector<16x1xf32>
    %cst_45 = arith.constant 1.280000e+02 : f32
    %144 = vector.broadcast %cst_45 : f32 to vector<16x1xf32>
    %145 = arith.divf %143, %144 : vector<16x1xf32>
    %146 = vector.broadcast %138 : vector<16x1xf32> to vector<16x128xf32>
    %147 = arith.subf %132, %146 : vector<16x128xf32>
    %cst_46 = arith.constant 9.99999974E-6 : f32
    %148 = vector.broadcast %cst_46 : f32 to vector<16x1xf32>
    %149 = arith.addf %145, %148 : vector<16x1xf32>
    %150 = math.rsqrt %149 : vector<16x1xf32>
    %151 = vector.broadcast %150 : vector<16x1xf32> to vector<16x128xf32>
    %152 = arith.mulf %147, %151 : vector<16x128xf32>
    %153 = vector.broadcast %133 : vector<1x128xf32> to vector<16x128xf32>
    %154 = arith.mulf %152, %153 : vector<16x128xf32>
    %155 = vector.broadcast %134 : vector<1x128xf32> to vector<16x128xf32>
    %156 = arith.addf %154, %155 : vector<16x128xf32>
    %c0_47 = arith.constant 0 : index
    %c0_48 = arith.constant 0 : index
    %157 = vector.load %arg6[%c0_47, %c0_48] : memref<128x128xf32, #tpu.memory_space<vmem>>, vector<128x128xf32>
    %cst_49 = arith.constant dense<0.000000e+00> : vector<16x128xf32>
    %158 = tpu.matmul %156, %157, %cst_49 {dimension_numbers = #tpu.dot_dimension_numbers<[1], [0], [0], [1], [0, 0, 1, 1], [], []>} : vector<16x128xf32>, vector<128x128xf32>, vector<16x128xf32> -> vector<16x128xf32>
    %c0_50 = arith.constant 0 : index
    %c0_51 = arith.constant 0 : index
    %159 = vector.load %arg7[%c0_50, %c0_51] : memref<1x128xf32, #tpu.memory_space<vmem>>, vector<1x128xf32>
    %160 = vector.broadcast %159 : vector<1x128xf32> to vector<16x128xf32>
    %161 = arith.addf %158, %160 : vector<16x128xf32>
    %162 = arith.addf %161, %1 : vector<16x128xf32>
    %c0_52 = arith.constant 0 : index
    %c0_53 = arith.constant 0 : index
    %163 = vector.load %arg8[%c0_52, %c0_53] : memref<1x128xf32, #tpu.memory_space<vmem>>, vector<1x128xf32>
    %c0_54 = arith.constant 0 : index
    %c0_55 = arith.constant 0 : index
    %164 = vector.load %arg9[%c0_54, %c0_55] : memref<1x128xf32, #tpu.memory_space<vmem>>, vector<1x128xf32>
    %cst_56 = arith.constant dense<0.000000e+00> : vector<16xf32>
    %165 = vector.multi_reduction <add>, %162, %cst_56 [1] : vector<16x128xf32> to vector<16xf32>
    %166 = vector.shape_cast %165 : vector<16xf32> to vector<16x1xf32>
    %cst_57 = arith.constant 1.280000e+02 : f32
    %167 = vector.broadcast %cst_57 : f32 to vector<16x1xf32>
    %168 = arith.divf %166, %167 : vector<16x1xf32>
    %169 = vector.broadcast %168 : vector<16x1xf32> to vector<16x128xf32>
    %170 = arith.subf %162, %169 : vector<16x128xf32>
    %171 = arith.mulf %170, %170 : vector<16x128xf32>
    %cst_58 = arith.constant dense<0.000000e+00> : vector<16xf32>
    %172 = vector.multi_reduction <add>, %171, %cst_58 [1] : vector<16x128xf32> to vector<16xf32>
    %173 = vector.shape_cast %172 : vector<16xf32> to vector<16x1xf32>
    %cst_59 = arith.constant 1.280000e+02 : f32
    %174 = vector.broadcast %cst_59 : f32 to vector<16x1xf32>
    %175 = arith.divf %173, %174 : vector<16x1xf32>
    %176 = vector.broadcast %168 : vector<16x1xf32> to vector<16x128xf32>
    %177 = arith.subf %162, %176 : vector<16x128xf32>
    %cst_60 = arith.constant 9.99999974E-6 : f32
    %178 = vector.broadcast %cst_60 : f32 to vector<16x1xf32>
    %179 = arith.addf %175, %178 : vector<16x1xf32>
    %180 = math.rsqrt %179 : vector<16x1xf32>
    %181 = vector.broadcast %180 : vector<16x1xf32> to vector<16x128xf32>
    %182 = arith.mulf %177, %181 : vector<16x128xf32>
    %183 = vector.broadcast %163 : vector<1x128xf32> to vector<16x128xf32>
    %184 = arith.mulf %182, %183 : vector<16x128xf32>
    %185 = vector.broadcast %164 : vector<1x128xf32> to vector<16x128xf32>
    %186 = arith.addf %184, %185 : vector<16x128xf32>
    %c0_61 = arith.constant 0 : index
    %c0_62 = arith.constant 0 : index
    %187 = vector.load %arg10[%c0_61, %c0_62] : memref<128x512xf32, #tpu.memory_space<vmem>>, vector<128x512xf32>
    %cst_63 = arith.constant dense<0.000000e+00> : vector<16x512xf32>
    %188 = tpu.matmul %186, %187, %cst_63 {dimension_numbers = #tpu.dot_dimension_numbers<[1], [0], [0], [1], [0, 0, 1, 1], [], []>} : vector<16x128xf32>, vector<128x512xf32>, vector<16x512xf32> -> vector<16x512xf32>
    %c0_64 = arith.constant 0 : index
    %c0_65 = arith.constant 0 : index
    %189 = vector.load %arg11[%c0_64, %c0_65] : memref<1x512xf32, #tpu.memory_space<vmem>>, vector<1x512xf32>
    %190 = vector.broadcast %189 : vector<1x512xf32> to vector<16x512xf32>
    %191 = arith.addf %188, %190 : vector<16x512xf32>
    %cst_66 = arith.constant 5.000000e-01 : f32
    %192 = vector.broadcast %cst_66 : f32 to vector<16x512xf32>
    %193 = arith.mulf %192, %191 : vector<16x512xf32>
    %cst_67 = arith.constant 0.707106769 : f32
    %194 = vector.broadcast %cst_67 : f32 to vector<16x512xf32>
    %195 = arith.mulf %191, %194 : vector<16x512xf32>
    %196 = math.absf %195 : vector<16x512xf32>
    %cst_68 = arith.constant 0.327591091 : f32
    %197 = vector.broadcast %cst_68 : f32 to vector<16x512xf32>
    %198 = arith.mulf %197, %196 : vector<16x512xf32>
    %cst_69 = arith.constant 1.000000e+00 : f32
    %199 = vector.broadcast %cst_69 : f32 to vector<16x512xf32>
    %200 = arith.addf %199, %198 : vector<16x512xf32>
    %cst_70 = arith.constant 1.000000e+00 : f32
    %201 = vector.broadcast %cst_70 : f32 to vector<16x512xf32>
    %202 = arith.divf %201, %200 : vector<16x512xf32>
    %cst_71 = arith.constant 1.06140542 : f32
    %203 = vector.broadcast %cst_71 : f32 to vector<16x512xf32>
    %204 = arith.mulf %203, %202 : vector<16x512xf32>
    %cst_72 = arith.constant -1.45315206 : f32
    %205 = vector.broadcast %cst_72 : f32 to vector<16x512xf32>
    %206 = arith.addf %204, %205 : vector<16x512xf32>
    %207 = arith.mulf %206, %202 : vector<16x512xf32>
    %cst_73 = arith.constant 1.42141378 : f32
    %208 = vector.broadcast %cst_73 : f32 to vector<16x512xf32>
    %209 = arith.addf %207, %208 : vector<16x512xf32>
    %210 = arith.mulf %209, %202 : vector<16x512xf32>
    %cst_74 = arith.constant -0.284496725 : f32
    %211 = vector.broadcast %cst_74 : f32 to vector<16x512xf32>
    %212 = arith.addf %210, %211 : vector<16x512xf32>
    %213 = arith.mulf %212, %202 : vector<16x512xf32>
    %cst_75 = arith.constant 0.254829586 : f32
    %214 = vector.broadcast %cst_75 : f32 to vector<16x512xf32>
    %215 = arith.addf %213, %214 : vector<16x512xf32>
    %216 = arith.mulf %215, %202 : vector<16x512xf32>
    %cst_76 = arith.constant 0.000000e+00 : f32
    %217 = vector.broadcast %cst_76 : f32 to vector<16x512xf32>
    %218 = arith.subf %217, %196 : vector<16x512xf32>
    %219 = arith.mulf %218, %196 : vector<16x512xf32>
    %220 = math.exp %219 : vector<16x512xf32>
    %221 = arith.mulf %216, %220 : vector<16x512xf32>
    %cst_77 = arith.constant 1.000000e+00 : f32
    %222 = vector.broadcast %cst_77 : f32 to vector<16x512xf32>
    %223 = arith.subf %222, %221 : vector<16x512xf32>
    %cst_78 = arith.constant 0.000000e+00 : f32
    %224 = vector.broadcast %cst_78 : f32 to vector<16x512xf32>
    %225 = arith.cmpf oge, %195, %224 : vector<16x512xf32>
    %cst_79 = arith.constant 0.000000e+00 : f32
    %226 = vector.broadcast %cst_79 : f32 to vector<16x512xf32>
    %227 = arith.subf %226, %223 : vector<16x512xf32>
    %228 = arith.select %225, %223, %227 : vector<16x512xi1>, vector<16x512xf32>
    %cst_80 = arith.constant 1.000000e+00 : f32
    %229 = vector.broadcast %cst_80 : f32 to vector<16x512xf32>
    %230 = arith.addf %229, %228 : vector<16x512xf32>
    %231 = arith.mulf %193, %230 : vector<16x512xf32>
    %c0_81 = arith.constant 0 : index
    %c0_82 = arith.constant 0 : index
    %232 = vector.load %arg12[%c0_81, %c0_82] : memref<512x128xf32, #tpu.memory_space<vmem>>, vector<512x128xf32>
    %cst_83 = arith.constant dense<0.000000e+00> : vector<16x128xf32>
    %233 = tpu.matmul %231, %232, %cst_83 {dimension_numbers = #tpu.dot_dimension_numbers<[1], [0], [0], [1], [0, 0, 1, 1], [], []>} : vector<16x512xf32>, vector<512x128xf32>, vector<16x128xf32> -> vector<16x128xf32>
    %c0_84 = arith.constant 0 : index
    %c0_85 = arith.constant 0 : index
    %234 = vector.load %arg13[%c0_84, %c0_85] : memref<1x128xf32, #tpu.memory_space<vmem>>, vector<1x128xf32>
    %235 = vector.broadcast %234 : vector<1x128xf32> to vector<16x128xf32>
    %236 = arith.addf %233, %235 : vector<16x128xf32>
    %237 = arith.addf %236, %186 : vector<16x128xf32>
    %c0_86 = arith.constant 0 : index
    %c0_87 = arith.constant 0 : index
    %238 = vector.load %arg14[%c0_86, %c0_87] : memref<1x128xf32, #tpu.memory_space<vmem>>, vector<1x128xf32>
    %c0_88 = arith.constant 0 : index
    %c0_89 = arith.constant 0 : index
    %239 = vector.load %arg15[%c0_88, %c0_89] : memref<1x128xf32, #tpu.memory_space<vmem>>, vector<1x128xf32>
    %cst_90 = arith.constant dense<0.000000e+00> : vector<16xf32>
    %240 = vector.multi_reduction <add>, %237, %cst_90 [1] : vector<16x128xf32> to vector<16xf32>
    %241 = vector.shape_cast %240 : vector<16xf32> to vector<16x1xf32>
    %cst_91 = arith.constant 1.280000e+02 : f32
    %242 = vector.broadcast %cst_91 : f32 to vector<16x1xf32>
    %243 = arith.divf %241, %242 : vector<16x1xf32>
    %244 = vector.broadcast %243 : vector<16x1xf32> to vector<16x128xf32>
    %245 = arith.subf %237, %244 : vector<16x128xf32>
    %246 = arith.mulf %245, %245 : vector<16x128xf32>
    %cst_92 = arith.constant dense<0.000000e+00> : vector<16xf32>
    %247 = vector.multi_reduction <add>, %246, %cst_92 [1] : vector<16x128xf32> to vector<16xf32>
    %248 = vector.shape_cast %247 : vector<16xf32> to vector<16x1xf32>
    %cst_93 = arith.constant 1.280000e+02 : f32
    %249 = vector.broadcast %cst_93 : f32 to vector<16x1xf32>
    %250 = arith.divf %248, %249 : vector<16x1xf32>
    %251 = vector.broadcast %243 : vector<16x1xf32> to vector<16x128xf32>
    %252 = arith.subf %237, %251 : vector<16x128xf32>
    %cst_94 = arith.constant 9.99999974E-6 : f32
    %253 = vector.broadcast %cst_94 : f32 to vector<16x1xf32>
    %254 = arith.addf %250, %253 : vector<16x1xf32>
    %255 = math.rsqrt %254 : vector<16x1xf32>
    %256 = vector.broadcast %255 : vector<16x1xf32> to vector<16x128xf32>
    %257 = arith.mulf %252, %256 : vector<16x128xf32>
    %258 = vector.broadcast %238 : vector<1x128xf32> to vector<16x128xf32>
    %259 = arith.mulf %257, %258 : vector<16x128xf32>
    %260 = vector.broadcast %239 : vector<1x128xf32> to vector<16x128xf32>
    %261 = arith.addf %259, %260 : vector<16x128xf32>
    %262 = vector.shape_cast %261 : vector<16x128xf32> to vector<2x8x128xf32>
    %c0_95 = arith.constant 0 : index
    %c0_96 = arith.constant 0 : index
    %c0_97 = arith.constant 0 : index
    %263 = vector.load %arg16[%c0_95, %c0_96, %c0_97] : memref<2x8x128xf32, #tpu.memory_space<vmem>>, vector<2x8x128xf32>
    tpu.vector_store %arg16[%c0_95, %c0_96, %c0_97], %262 {strides = array<i32>} : memref<2x8x128xf32, #tpu.memory_space<vmem>>, vector<2x8x128xf32>,
    return
  }
  func.func @transform_0(%arg0: i32) -> (i32, i32, i32) {
    %c0_i32 = arith.constant 0 : i32
    %c0_i32_0 = arith.constant 0 : i32
    %c0_i32_1 = arith.constant 0 : i32
    return %arg0, %c0_i32, %c0_i32_0 : i32, i32, i32
  }
  func.func @transform_1(%arg0: i32) -> (i32, i32) {
    %c0_i32 = arith.constant 0 : i32
    %c0_i32_0 = arith.constant 0 : i32
    %c0_i32_1 = arith.constant 0 : i32
    return %c0_i32, %c0_i32_0 : i32, i32
  }
  func.func @transform_2(%arg0: i32) -> (i32, i32) {
    %c0_i32 = arith.constant 0 : i32
    %c0_i32_0 = arith.constant 0 : i32
    %c0_i32_1 = arith.constant 0 : i32
    return %c0_i32, %c0_i32_0 : i32, i32
  }
  func.func @transform_3(%arg0: i32) -> (i32, i32) {
    %c0_i32 = arith.constant 0 : i32
    %c0_i32_0 = arith.constant 0 : i32
    %c0_i32_1 = arith.constant 0 : i32
    return %c0_i32, %c0_i32_0 : i32, i32
  }
  func.func @transform_4(%arg0: i32) -> (i32, i32) {
    %c0_i32 = arith.constant 0 : i32
    %c0_i32_0 = arith.constant 0 : i32
    %c0_i32_1 = arith.constant 0 : i32
    return %c0_i32, %c0_i32_0 : i32, i32
  }
  func.func @transform_5(%arg0: i32) -> (i32, i32) {
    %c0_i32 = arith.constant 0 : i32
    %c0_i32_0 = arith.constant 0 : i32
    %c0_i32_1 = arith.constant 0 : i32
    return %c0_i32, %c0_i32_0 : i32, i32
  }
  func.func @transform_6(%arg0: i32) -> (i32, i32) {
    %c0_i32 = arith.constant 0 : i32
    %c0_i32_0 = arith.constant 0 : i32
    %c0_i32_1 = arith.constant 0 : i32
    return %c0_i32, %c0_i32_0 : i32, i32
  }
  func.func @transform_7(%arg0: i32) -> (i32, i32) {
    %c0_i32 = arith.constant 0 : i32
    %c0_i32_0 = arith.constant 0 : i32
    %c0_i32_1 = arith.constant 0 : i32
    return %c0_i32, %c0_i32_0 : i32, i32
  }
  func.func @transform_8(%arg0: i32) -> (i32, i32) {
    %c0_i32 = arith.constant 0 : i32
    %c0_i32_0 = arith.constant 0 : i32
    %c0_i32_1 = arith.constant 0 : i32
    return %c0_i32, %c0_i32_0 : i32, i32
  }
  func.func @transform_9(%arg0: i32) -> (i32, i32) {
    %c0_i32 = arith.constant 0 : i32
    %c0_i32_0 = arith.constant 0 : i32
    %c0_i32_1 = arith.constant 0 : i32
    return %c0_i32, %c0_i32_0 : i32, i32
  }
  func.func @transform_10(%arg0: i32) -> (i32, i32) {
    %c0_i32 = arith.constant 0 : i32
    %c0_i32_0 = arith.constant 0 : i32
    %c0_i32_1 = arith.constant 0 : i32
    return %c0_i32, %c0_i32_0 : i32, i32
  }
  func.func @transform_11(%arg0: i32) -> (i32, i32) {
    %c0_i32 = arith.constant 0 : i32
    %c0_i32_0 = arith.constant 0 : i32
    %c0_i32_1 = arith.constant 0 : i32
    return %c0_i32, %c0_i32_0 : i32, i32
  }
  func.func @transform_12(%arg0: i32) -> (i32, i32) {
    %c0_i32 = arith.constant 0 : i32
    %c0_i32_0 = arith.constant 0 : i32
    %c0_i32_1 = arith.constant 0 : i32
    return %c0_i32, %c0_i32_0 : i32, i32
  }
  func.func @transform_13(%arg0: i32) -> (i32, i32) {
    %c0_i32 = arith.constant 0 : i32
    %c0_i32_0 = arith.constant 0 : i32
    %c0_i32_1 = arith.constant 0 : i32
    return %c0_i32, %c0_i32_0 : i32, i32
  }
  func.func @transform_14(%arg0: i32) -> (i32, i32) {
    %c0_i32 = arith.constant 0 : i32
    %c0_i32_0 = arith.constant 0 : i32
    %c0_i32_1 = arith.constant 0 : i32
    return %c0_i32, %c0_i32_0 : i32, i32
  }
  func.func @transform_15(%arg0: i32) -> (i32, i32, i32) {
    %c0_i32 = arith.constant 0 : i32
    %c0_i32_0 = arith.constant 0 : i32
    %c0_i32_1 = arith.constant 0 : i32
    return %arg0, %c0_i32, %c0_i32_0 : i32, i32, i32
  }
}

</mosaic_0001>

<llo_original>
// kernel: multihead_attention_layer.1
$region0: #{multihead_attention_layer.1}
  #allocation0 [shape = 'u32[]', space=smem, size = 0x4, offset = 0x4, fixed_abs, tag = 'smem constant byte address 0x4 - core index']
  #allocation1 [shape = 'u32[144,128]{1,0:T(1,128)}', space=vmem, size = 0x12000, scoped, tag = 'internal scratch']
  %s0 = inlined_call_operand.vmem [shape: f32[2,8,128], index: 0, kind: input, shape index: {}]
  %s1 = inlined_call_operand.vmem [shape: f32[128,384], index: 1, kind: input, shape index: {}]
  %s2 = inlined_call_operand.vmem [shape: f32[1,384], index: 2, kind: input, shape index: {}]
  %s3 = inlined_call_operand.vmem [shape: f32[1,128], index: 3, kind: input, shape index: {}]
  %s4 = inlined_call_operand.vmem [shape: f32[1,128], index: 4, kind: input, shape index: {}]
  %s5 = inlined_call_operand.hbm [shape: f32[128,128], index: 5, kind: input, shape index: {}]
  %s6 = inlined_call_operand.vmem [shape: f32[1,128], index: 6, kind: input, shape index: {}]
  %s7 = inlined_call_operand.vmem [shape: f32[1,128], index: 7, kind: input, shape index: {}]
  %s8 = inlined_call_operand.vmem [shape: f32[1,128], index: 8, kind: input, shape index: {}]
  %s9 = inlined_call_operand.vmem [shape: f32[128,512], index: 9, kind: input, shape index: {}]
  %s10 = inlined_call_operand.vmem [shape: f32[1,512], index: 10, kind: input, shape index: {}]
  %s11 = inlined_call_operand.vmem [shape: f32[512,128], index: 11, kind: input, shape index: {}]
  %s12 = inlined_call_operand.vmem [shape: f32[1,128], index: 12, kind: input, shape index: {}]
  %s13 = inlined_call_operand.vmem [shape: f32[1,128], index: 13, kind: input, shape index: {}]
  %s14 = inlined_call_operand.vmem [shape: f32[1,128], index: 14, kind: input, shape index: {}]
  %s15 = inlined_call_operand.hbm [shape: f32[2,8,128], index: 15, kind: output, shape index: {}]
  %s16 = sld [smem:[#allocation0]]
  $region74: #{multihead_attention_layer.1} parent=0
    _
  %s18 = ssub.s32 1, %s16
  %s19 = scalar_select 0, %s18, %s16
  $region1: #{multihead_attention_layer.1} parent=0
    #allocation2 [shape = 'u8[65536]{0}', space=vmem, size = 0x10000, scoped, tag = 'input window, operand 5, single buffered']
    #allocation3 [shape = 's32[1]{0}', space=sflag, size = 0x4, scoped, tag = 'scoped memory for multihead_attention_layer.1']
    #allocation4 [shape = 's32[1]{0}', space=sflag, size = 0x4, scoped, tag = 'scoped memory for multihead_attention_layer.1']
    #allocation5 [shape = 'u8[8192]{0}', space=vmem, size = 0x2000, scoped, tag = 'output window, operand 0, single buffered']
    %20 = vsyncpa [#allocation3], 0
    %21 = vsyncpa [#allocation4], 0
    // Predicated region
    $region2: #{multihead_attention_layer.1} parent=1 // pred_check
      _
    $region3: #{multihead_attention_layer.1} parent=1 // pred_check_branch
      %23 = sbr.rel (0) target = $region5
    $region4: #{multihead_attention_layer.1} parent=1 // pred_region
      _
    $region5: #{multihead_attention_layer.1} parent=1 // pred_fallthru
      _
    // Predicated region
    $region6: #{multihead_attention_layer.1} parent=1 // pred_check
      _
    $region7: #{multihead_attention_layer.1} parent=1 // pred_check_branch
      %25 = sbr.rel (0) target = $region9
    $region8: #{multihead_attention_layer.1} parent=1 // pred_region
      _
    $region9: #{multihead_attention_layer.1} parent=1 // pred_fallthru
      _
    // Predicated region
    $region10: #{multihead_attention_layer.1} parent=1 // pred_check
      _
    $region11: #{multihead_attention_layer.1} parent=1 // pred_check_branch
      %27 = sbr.rel (0) target = $region13
    $region12: #{multihead_attention_layer.1} parent=1 // pred_region
      _
    $region13: #{multihead_attention_layer.1} parent=1 // pred_fallthru
      _
    // Predicated region
    $region14: #{multihead_attention_layer.1} parent=1 // pred_check
      _
    $region15: #{multihead_attention_layer.1} parent=1 // pred_check_branch
      %29 = sbr.rel (0) target = $region17
    $region16: #{multihead_attention_layer.1} parent=1 // pred_region
      _
    $region17: #{multihead_attention_layer.1} parent=1 // pred_fallthru
      _
    // Predicated region
    $region18: #{multihead_attention_layer.1} parent=1 // pred_check
      _
    $region19: #{multihead_attention_layer.1} parent=1 // pred_check_branch
      %31 = sbr.rel (0) target = $region21
    $region20: #{multihead_attention_layer.1} parent=1 // pred_region
      _
    $region21: #{multihead_attention_layer.1} parent=1 // pred_fallthru
      _
    // Predicated region
    $region22: #{multihead_attention_layer.1} parent=1 // pred_check
      _
    $region23: #{multihead_attention_layer.1} parent=1 // pred_check_branch
      %33 = sbr.rel (0) target = $region25
    $region24: #{multihead_attention_layer.1} parent=1 // pred_region
      %s35 = ssub.s32 2048, 2048
      %36 = vsyncadd [#allocation3], %s35
      %s37 = sshll.u32 [#allocation2], 4
      %s38 = int_to_ptr.vmem [resolvable:$true] %s37
      %43 = dma.hbm_to_vmem [thread:$0]  %s5, 2048, %s38, [#allocation3], 128, 128, 8
    $region25: #{multihead_attention_layer.1} parent=1 // pred_fallthru
      _
    // Predicated region
    $region26: #{multihead_attention_layer.1} parent=1 // pred_check
      _
    $region27: #{multihead_attention_layer.1} parent=1 // pred_check_branch
      %45 = sbr.rel (0) target = $region29
    $region28: #{multihead_attention_layer.1} parent=1 // pred_region
      _
    $region29: #{multihead_attention_layer.1} parent=1 // pred_fallthru
      _
    // Predicated region
    $region30: #{multihead_attention_layer.1} parent=1 // pred_check
      _
    $region31: #{multihead_attention_layer.1} parent=1 // pred_check_branch
      %47 = sbr.rel (0) target = $region33
    $region32: #{multihead_attention_layer.1} parent=1 // pred_region
      _
    $region33: #{multihead_attention_layer.1} parent=1 // pred_fallthru
      _
    // Predicated region
    $region34: #{multihead_attention_layer.1} parent=1 // pred_check
      _
    $region35: #{multihead_attention_layer.1} parent=1 // pred_check_branch
      %49 = sbr.rel (0) target = $region37
    $region36: #{multihead_attention_layer.1} parent=1 // pred_region
      _
    $region37: #{multihead_attention_layer.1} parent=1 // pred_fallthru
      _
    // Predicated region
    $region38: #{multihead_attention_layer.1} parent=1 // pred_check
      _
    $region39: #{multihead_attention_layer.1} parent=1 // pred_check_branch
      %51 = sbr.rel (0) target = $region41
    $region40: #{multihead_attention_layer.1} parent=1 // pred_region
      _
    $region41: #{multihead_attention_layer.1} parent=1 // pred_fallthru
      _
    // Predicated region
    $region42: #{multihead_attention_layer.1} parent=1 // pred_check
      _
    $region43: #{multihead_attention_layer.1} parent=1 // pred_check_branch
      %53 = sbr.rel (0) target = $region45
    $region44: #{multihead_attention_layer.1} parent=1 // pred_region
      _
    $region45: #{multihead_attention_layer.1} parent=1 // pred_fallthru
      _
    // Predicated region
    $region46: #{multihead_attention_layer.1} parent=1 // pred_check
      _
    $region47: #{multihead_attention_layer.1} parent=1 // pred_check_branch
      %55 = sbr.rel (0) target = $region49
    $region48: #{multihead_attention_layer.1} parent=1 // pred_region
      _
    $region49: #{multihead_attention_layer.1} parent=1 // pred_fallthru
      _
    // Predicated region
    $region50: #{multihead_attention_layer.1} parent=1 // pred_check
      _
    $region51: #{multihead_attention_layer.1} parent=1 // pred_check_branch
      %57 = sbr.rel (0) target = $region53
    $region52: #{multihead_attention_layer.1} parent=1 // pred_region
      _
    $region53: #{multihead_attention_layer.1} parent=1 // pred_fallthru
      _
    // Predicated region
    $region54: #{multihead_attention_layer.1} parent=1 // pred_check
      _
    $region55: #{multihead_attention_layer.1} parent=1 // pred_check_branch
      %59 = sbr.rel (0) target = $region57
    $region56: #{multihead_attention_layer.1} parent=1 // pred_region
      _
    $region57: #{multihead_attention_layer.1} parent=1 // pred_fallthru
      _
    // Predicated region
    $region58: #{multihead_attention_layer.1} parent=1 // pred_check
      _
    $region59: #{multihead_attention_layer.1} parent=1 // pred_check_branch
      %61 = sbr.rel (0) target = $region61
    $region60: #{multihead_attention_layer.1} parent=1 // pred_region
      _
    $region61: #{multihead_attention_layer.1} parent=1 // pred_fallthru
      _
    // Predicated region
    $region62: #{multihead_attention_layer.1} parent=1 // pred_check
      _
    $region63: #{multihead_attention_layer.1} parent=1 // pred_check_branch
      %63 = sbr.rel (0) target = $region65
    $region64: #{multihead_attention_layer.1} parent=1 // pred_region
      %64 = dma.done [#allocation3], 2048
    $region65: #{multihead_attention_layer.1} parent=1 // pred_fallthru
      _
    %v65 = vld [vmem:[%s0] sm:$0xff]
    %v66 = vld [vmem:[%s0 + $0x8] sm:$0xff]
    %v67 = vld [vmem:[%s1] sm:$0xff]
    %v68 = vld [vmem:[%s1 + $0x8] sm:$0xff]
    %v69 = vld [vmem:[%s1 + $0x10] sm:$0xff]
    %v70 = vld [vmem:[%s1 + $0x18] sm:$0xff]
    %v71 = vld [vmem:[%s1 + $0x20] sm:$0xff]
    %v72 = vld [vmem:[%s1 + $0x28] sm:$0xff]
    %v73 = vld [vmem:[%s1 + $0x30] sm:$0xff]
    %v74 = vld [vmem:[%s1 + $0x38] sm:$0xff]
    %v75 = vld [vmem:[%s1 + $0x40] sm:$0xff]
    %v76 = vld [vmem:[%s1 + $0x48] sm:$0xff]
    %v77 = vld [vmem:[%s1 + $0x50] sm:$0xff]
    %v78 = vld [vmem:[%s1 + $0x58] sm:$0xff]
    %v79 = vld [vmem:[%s1 + $0x60] sm:$0xff]
    %v80 = vld [vmem:[%s1 + $0x68] sm:$0xff]
    %v81 = vld [vmem:[%s1 + $0x70] sm:$0xff]
    %v82 = vld [vmem:[%s1 + $0x78] sm:$0xff]
    %v83 = vld [vmem:[%s1 + $0x80] sm:$0xff]
    %v84 = vld [vmem:[%s1 + $0x88] sm:$0xff]
    %v85 = vld [vmem:[%s1 + $0x90] sm:$0xff]
    %v86 = vld [vmem:[%s1 + $0x98] sm:$0xff]
    %v87 = vld [vmem:[%s1 + $0xa0] sm:$0xff]
    %v88 = vld [vmem:[%s1 + $0xa8] sm:$0xff]
    %v89 = vld [vmem:[%s1 + $0xb0] sm:$0xff]
    %v90 = vld [vmem:[%s1 + $0xb8] sm:$0xff]
    %v91 = vld [vmem:[%s1 + $0xc0] sm:$0xff]
    %v92 = vld [vmem:[%s1 + $0xc8] sm:$0xff]
    %v93 = vld [vmem:[%s1 + $0xd0] sm:$0xff]
    %v94 = vld [vmem:[%s1 + $0xd8] sm:$0xff]
    %v95 = vld [vmem:[%s1 + $0xe0] sm:$0xff]
    %v96 = vld [vmem:[%s1 + $0xe8] sm:$0xff]
    %v97 = vld [vmem:[%s1 + $0xf0] sm:$0xff]
    %v98 = vld [vmem:[%s1 + $0xf8] sm:$0xff]
    %v99 = vld [vmem:[%s1 + $0x100] sm:$0xff]
    %v100 = vld [vmem:[%s1 + $0x108] sm:$0xff]
    %v101 = vld [vmem:[%s1 + $0x110] sm:$0xff]
    %v102 = vld [vmem:[%s1 + $0x118] sm:$0xff]
    %v103 = vld [vmem:[%s1 + $0x120] sm:$0xff]
    %v104 = vld [vmem:[%s1 + $0x128] sm:$0xff]
    %v105 = vld [vmem:[%s1 + $0x130] sm:$0xff]
    %v106 = vld [vmem:[%s1 + $0x138] sm:$0xff]
    %v107 = vld [vmem:[%s1 + $0x140] sm:$0xff]
    %v108 = vld [vmem:[%s1 + $0x148] sm:$0xff]
    %v109 = vld [vmem:[%s1 + $0x150] sm:$0xff]
    %v110 = vld [vmem:[%s1 + $0x158] sm:$0xff]
    %v111 = vld [vmem:[%s1 + $0x160] sm:$0xff]
    %v112 = vld [vmem:[%s1 + $0x168] sm:$0xff]
    %v113 = vld [vmem:[%s1 + $0x170] sm:$0xff]
    %v114 = vld [vmem:[%s1 + $0x178] sm:$0xff]
    %v115 = vld [vmem:[%s2] sm:$0x7]
    %v117 = vlaneseq
    %v118 = vshrl.u32 %v117, 7
    %v119 = vsub.s32 0, %v118
    %v120 = vrot.slane %v115, %v119
    %v121 = vlaneseq
    %v122 = vshrl.u32 %v121, 7
    %v123 = vsub.s32 1, %v122
    %v124 = vrot.slane %v115, %v123
    %v125 = vlaneseq
    %v126 = vshrl.u32 %v125, 7
    %v127 = vsub.s32 2, %v126
    %v128 = vrot.slane %v115, %v127
    %132 = vmatprep.subr.mxu0 %v68
    %133 = vmatpush1.msra.mxu0 %v67
    %134 = vmatprep.subr.mxu0 %v71
    %135 = vmatpush1.msra.mxu0 %v70
    %136 = vmatprep.subr.mxu0 %v74
    %137 = vmatpush1.msra.mxu0 %v73
    %138 = vmatprep.subr.mxu0 %v77
    %139 = vmatpush1.msra.mxu0 %v76
    %140 = vmatprep.subr.mxu0 %v80
    %141 = vmatpush1.msra.mxu0 %v79
    %142 = vmatprep.subr.mxu0 %v83
    %143 = vmatpush1.msra.mxu0 %v82
    %144 = vmatprep.subr.mxu0 %v86
    %145 = vmatpush1.msra.mxu0 %v85
    %146 = vmatprep.subr.mxu0 %v89
    %147 = vmatpush1.msra.mxu0 %v88
    %148 = vmatprep.subr.mxu0 %v92
    %149 = vmatpush1.msra.mxu0 %v91
    %150 = vmatprep.subr.mxu0 %v95
    %151 = vmatpush1.msra.mxu0 %v94
    %152 = vmatprep.subr.mxu0 %v98
    %153 = vmatpush1.msra.mxu0 %v97
    %154 = vmatprep.subr.mxu0 %v101
    %155 = vmatpush1.msra.mxu0 %v100
    %156 = vmatprep.subr.mxu0 %v104
    %157 = vmatpush1.msra.mxu0 %v103
    %158 = vmatprep.subr.mxu0 %v107
    %159 = vmatpush1.msra.mxu0 %v106
    %160 = vmatprep.subr.mxu0 %v110
    %161 = vmatpush1.msra.mxu0 %v109
    %162 = vmatprep.subr.mxu0 %v113
    %163 = vmatpush1.msra.mxu0 %v112
    %164 = vmatprep.subr.mxu0 0.0
    %165 = vmatpush1.msra.mxu0 0.0
    %166 = vmatprep.subr.mxu0 0.0
    %167 = vmatpush1.msra.mxu0 0.0
    %168 = vmatprep.subr.mxu0 0.0
    %169 = vmatpush1.msra.mxu0 0.0
    %170 = vmatprep.subr.mxu0 0.0
    %171 = vmatpush1.msra.mxu0 0.0
    %172 = vmatprep.subr.mxu0 0.0
    %173 = vmatpush1.msra.mxu0 0.0
    %174 = vmatprep.subr.mxu0 0.0
    %175 = vmatpush1.msra.mxu0 0.0
    %176 = vmatprep.subr.mxu0 0.0
    %177 = vmatpush1.msra.mxu0 0.0
    %178 = vmatprep.subr.mxu0 0.0
    %179 = vmatpush1.msra.mxu0 0.0
    %180 = vmatprep.subr.mxu0 0.0
    %181 = vmatpush1.msra.mxu0 0.0
    %182 = vmatprep.subr.mxu0 0.0
    %183 = vmatpush1.msra.mxu0 0.0
    %184 = vmatprep.subr.mxu0 0.0
    %185 = vmatpush1.msra.mxu0 0.0
    %186 = vmatprep.subr.mxu0 0.0
    %187 = vmatpush1.msra.mxu0 0.0
    %188 = vmatprep.subr.mxu0 0.0
    %189 = vmatpush1.msra.mxu0 0.0
    %190 = vmatprep.subr.mxu0 0.0
    %191 = vmatpush1.msra.mxu0 0.0
    %192 = vmatprep.subr.mxu0 0.0
    %193 = vmatpush1.msra.mxu0 0.0
    %194 = vmatprep.subr.mxu0 0.0
    %195 = vmatpush1.msra.mxu0 0.0
    %196 = vmatprep.mubr.f32.mxu0 0.0
    %197 = vmatmul.mubr.f32.gmra.mrb[0].mxu0 %v65
    %v198 = vpop.f32.mrb[0].mxu0
    %v199 = vadd.f32 %v120, %v198
    %v200 = vpop.f32.mrb[0].mxu0
    %v201 = vadd.f32 %v124, %v200
    %202 = vmatprep.mubr.f32.mxu0 0.0
    %203 = vmatmul.mubr.f32.gmra.mrb[0].mxu0 %v66
    %v204 = vpop.f32.mrb[0].mxu0
    %v205 = vadd.f32 %v120, %v204
    %v206 = vpop.f32.mrb[0].mxu0
    %v207 = vadd.f32 %v124, %v206
    %208 = vdwg.mxu0
    %209 = vmatprep.subr.mxu0 0.0
    %210 = vmatpush1.msra.mxu0 %v69
    %211 = vmatprep.subr.mxu0 0.0
    %212 = vmatpush1.msra.mxu0 %v72
    %213 = vmatprep.subr.mxu0 0.0
    %214 = vmatpush1.msra.mxu0 %v75
    %215 = vmatprep.subr.mxu0 0.0
    %216 = vmatpush1.msra.mxu0 %v78
    %217 = vmatprep.subr.mxu0 0.0
    %218 = vmatpush1.msra.mxu0 %v81
    %219 = vmatprep.subr.mxu0 0.0
    %220 = vmatpush1.msra.mxu0 %v84
    %221 = vmatprep.subr.mxu0 0.0
    %222 = vmatpush1.msra.mxu0 %v87
    %223 = vmatprep.subr.mxu0 0.0
    %224 = vmatpush1.msra.mxu0 %v90
    %225 = vmatprep.subr.mxu0 0.0
    %226 = vmatpush1.msra.mxu0 %v93
    %227 = vmatprep.subr.mxu0 0.0
    %228 = vmatpush1.msra.mxu0 %v96
    %229 = vmatprep.subr.mxu0 0.0
    %230 = vmatpush1.msra.mxu0 %v99
    %231 = vmatprep.subr.mxu0 0.0
    %232 = vmatpush1.msra.mxu0 %v102
    %233 = vmatprep.subr.mxu0 0.0
    %234 = vmatpush1.msra.mxu0 %v105
    %235 = vmatprep.subr.mxu0 0.0
    %236 = vmatpush1.msra.mxu0 %v108
    %237 = vmatprep.subr.mxu0 0.0
    %238 = vmatpush1.msra.mxu0 %v111
    %239 = vmatprep.subr.mxu0 0.0
    %240 = vmatpush1.msra.mxu0 %v114
    %241 = vmatprep.subr.mxu0 0.0
    %242 = vmatpush1.msra.mxu0 0.0
    %243 = vmatprep.subr.mxu0 0.0
    %244 = vmatpush1.msra.mxu0 0.0
    %245 = vmatprep.subr.mxu0 0.0
    %246 = vmatpush1.msra.mxu0 0.0
    %247 = vmatprep.subr.mxu0 0.0
    %248 = vmatpush1.msra.mxu0 0.0
    %249 = vmatprep.subr.mxu0 0.0
    %250 = vmatpush1.msra.mxu0 0.0
    %251 = vmatprep.subr.mxu0 0.0
    %252 = vmatpush1.msra.mxu0 0.0
    %253 = vmatprep.subr.mxu0 0.0
    %254 = vmatpush1.msra.mxu0 0.0
    %255 = vmatprep.subr.mxu0 0.0
    %256 = vmatpush1.msra.mxu0 0.0
    %257 = vmatprep.subr.mxu0 0.0
    %258 = vmatpush1.msra.mxu0 0.0
    %259 = vmatprep.subr.mxu0 0.0
    %260 = vmatpush1.msra.mxu0 0.0
    %261 = vmatprep.subr.mxu0 0.0
    %262 = vmatpush1.msra.mxu0 0.0
    %263 = vmatprep.subr.mxu0 0.0
    %264 = vmatpush1.msra.mxu0 0.0
    %265 = vmatprep.subr.mxu0 0.0
    %266 = vmatpush1.msra.mxu0 0.0
    %267 = vmatprep.subr.mxu0 0.0
    %268 = vmatpush1.msra.mxu0 0.0
    %269 = vmatprep.subr.mxu0 0.0
    %270 = vmatpush1.msra.mxu0 0.0
    %271 = vmatprep.subr.mxu0 0.0
    %272 = vmatpush1.msra.mxu0 0.0
    %273 = vmatprep.mubr.f32.mxu0 0.0
    %274 = vmatmul.mubr.f32.gmra.mrb[0].mxu0 %v65
    %v275 = vpop.f32.mrb[0].mxu0
    %v276 = vadd.f32 %v128, %v275
    %v277 = vpop.f32.mrb[0].mxu0
    %278 = vmatprep.mubr.f32.mxu0 0.0
    %279 = vmatmul.mubr.f32.gmra.mrb[0].mxu0 %v66
    %v280 = vpop.f32.mrb[0].mxu0
    %v281 = vadd.f32 %v128, %v280
    %v282 = vpop.f32.mrb[0].mxu0
    %283 = vdwg.mxu0
    %vm284 = vcmask 261120
    %v286 = vsel %vm284, %v199, 0
    %v289 = vsel %vm284, %v201, 0
    %291 = vmatprep.subr.mxu0 0.0
    %292 = vmatpush1.xpose.msra.mxu0 %v289
    %293 = vmatprep.subr.mxu0 0.0
    %294 = vmatpush1.xpose.msra.mxu0 0.0
    %295 = vmatprep.subr.mxu0 0.0
    %296 = vmatpush1.xpose.msra.mxu0 0.0
    %297 = vmatprep.subr.mxu0 0.0
    %298 = vmatpush1.xpose.msra.mxu0 0.0
    %299 = vmatprep.subr.mxu0 0.0
    %300 = vmatpush1.xpose.msra.mxu0 0.0
    %301 = vmatprep.subr.mxu0 0.0
    %302 = vmatpush1.xpose.msra.mxu0 0.0
    %303 = vmatprep.subr.mxu0 0.0
    %304 = vmatpush1.xpose.msra.mxu0 0.0
    %305 = vmatprep.subr.mxu0 0.0
    %306 = vmatpush1.xpose.msra.mxu0 0.0
    %307 = vmatprep.subr.mxu0 0.0
    %308 = vmatpush1.xpose.msra.mxu0 0.0
    %309 = vmatprep.subr.mxu0 0.0
    %310 = vmatpush1.xpose.msra.mxu0 0.0
    %311 = vmatprep.subr.mxu0 0.0
    %312 = vmatpush1.xpose.msra.mxu0 0.0
    %313 = vmatprep.subr.mxu0 0.0
    %314 = vmatpush1.xpose.msra.mxu0 0.0
    %315 = vmatprep.subr.mxu0 0.0
    %316 = vmatpush1.xpose.msra.mxu0 0.0
    %317 = vmatprep.subr.mxu0 0.0
    %318 = vmatpush1.xpose.msra.mxu0 0.0
    %319 = vmatprep.subr.mxu0 0.0
    %320 = vmatpush1.xpose.msra.mxu0 0.0
    %321 = vmatprep.subr.mxu0 0.0
    %322 = vmatpush1.xpose.msra.mxu0 0.0
    %323 = vmatprep.subr.mxu0 0.0
    %324 = vmatpush1.xpose.msra.mxu0 0.0
    %325 = vmatprep.subr.mxu0 0.0
    %326 = vmatpush1.xpose.msra.mxu0 0.0
    %327 = vmatprep.subr.mxu0 0.0
    %328 = vmatpush1.xpose.msra.mxu0 0.0
    %329 = vmatprep.subr.mxu0 0.0
    %330 = vmatpush1.xpose.msra.mxu0 0.0
    %331 = vmatprep.subr.mxu0 0.0
    %332 = vmatpush1.xpose.msra.mxu0 0.0
    %333 = vmatprep.subr.mxu0 0.0
    %334 = vmatpush1.xpose.msra.mxu0 0.0
    %335 = vmatprep.subr.mxu0 0.0
    %336 = vmatpush1.xpose.msra.mxu0 0.0
    %337 = vmatprep.subr.mxu0 0.0
    %338 = vmatpush1.xpose.msra.mxu0 0.0
    %339 = vmatprep.subr.mxu0 0.0
    %340 = vmatpush1.xpose.msra.mxu0 0.0
    %341 = vmatprep.subr.mxu0 0.0
    %342 = vmatpush1.xpose.msra.mxu0 0.0
    %343 = vmatprep.subr.mxu0 0.0
    %344 = vmatpush1.xpose.msra.mxu0 0.0
    %345 = vmatprep.subr.mxu0 0.0
    %346 = vmatpush1.xpose.msra.mxu0 0.0
    %347 = vmatprep.subr.mxu0 0.0
    %348 = vmatpush1.xpose.msra.mxu0 0.0
    %349 = vmatprep.subr.mxu0 0.0
    %350 = vmatpush1.xpose.msra.mxu0 0.0
    %351 = vmatprep.subr.mxu0 0.0
    %352 = vmatpush1.xpose.msra.mxu0 0.0
    %353 = vmatprep.subr.mxu0 0.0
    %354 = vmatpush1.xpose.msra.mxu0 0.0
    %355 = vmatprep.mubr.f32.mxu0 0.0
    %356 = vmatmul.mubr.f32.gmra.mrb[0].mxu0 %v286
    %v357 = vpop.f32.mrb[0].mxu0
    %v358 = vadd.f32 0.0, %v357
    %v359 = vpop.f32.mrb[0].mxu0
    %360 = vdwg.mxu0
    %vm361 = vcmask 64512
    %v362 = vsel %vm361, %v358, -inf
    %363 = vmax.xlane.f32.xlu0 %v362
    %v364 = vpop.xlane.xlu0 %363
    %v365 = vsub.f32 %v358, %v364
    %v366 = vmul.f32 %v365, 1.442695
    %v367 = vpow.pop %v366
    %v368 = vsel %vm361, %v367, 0.0
    %369 = vadd.xlane.f32.xlu0 %v368
    %v370 = vpop.xlane.xlu0 %369
    %v371 = vrcp.pop %v370
    %v372 = vmul.f32 %v367, %v371
    %v374 = vsel %vm361, %v372, 0
    %376 = vmatprep.subr.mxu0 0.0
    %377 = vmatpush1.msra.mxu0 %v276
    %378 = vmatprep.subr.mxu0 0.0
    %379 = vmatpush1.msra.mxu0 0.0
    %380 = vmatprep.subr.mxu0 0.0
    %381 = vmatpush1.msra.mxu0 0.0
    %382 = vmatprep.subr.mxu0 0.0
    %383 = vmatpush1.msra.mxu0 0.0
    %384 = vmatprep.subr.mxu0 0.0
    %385 = vmatpush1.msra.mxu0 0.0
    %386 = vmatprep.subr.mxu0 0.0
    %387 = vmatpush1.msra.mxu0 0.0
    %388 = vmatprep.subr.mxu0 0.0
    %389 = vmatpush1.msra.mxu0 0.0
    %390 = vmatprep.subr.mxu0 0.0
    %391 = vmatpush1.msra.mxu0 0.0
    %392 = vmatprep.subr.mxu0 0.0
    %393 = vmatpush1.msra.mxu0 0.0
    %394 = vmatprep.subr.mxu0 0.0
    %395 = vmatpush1.msra.mxu0 0.0
    %396 = vmatprep.subr.mxu0 0.0
    %397 = vmatpush1.msra.mxu0 0.0
    %398 = vmatprep.subr.mxu0 0.0
    %399 = vmatpush1.msra.mxu0 0.0
    %400 = vmatprep.subr.mxu0 0.0
    %401 = vmatpush1.msra.mxu0 0.0
    %402 = vmatprep.subr.mxu0 0.0
    %403 = vmatpush1.msra.mxu0 0.0
    %404 = vmatprep.subr.mxu0 0.0
    %405 = vmatpush1.msra.mxu0 0.0
    %406 = vmatprep.subr.mxu0 0.0
    %407 = vmatpush1.msra.mxu0 0.0
    %408 = vmatprep.subr.mxu0 0.0
    %409 = vmatpush1.msra.mxu0 0.0
    %410 = vmatprep.subr.mxu0 0.0
    %411 = vmatpush1.msra.mxu0 0.0
    %412 = vmatprep.subr.mxu0 0.0
    %413 = vmatpush1.msra.mxu0 0.0
    %414 = vmatprep.subr.mxu0 0.0
    %415 = vmatpush1.msra.mxu0 0.0
    %416 = vmatprep.subr.mxu0 0.0
    %417 = vmatpush1.msra.mxu0 0.0
    %418 = vmatprep.subr.mxu0 0.0
    %419 = vmatpush1.msra.mxu0 0.0
    %420 = vmatprep.subr.mxu0 0.0
    %421 = vmatpush1.msra.mxu0 0.0
    %422 = vmatprep.subr.mxu0 0.0
    %423 = vmatpush1.msra.mxu0 0.0
    %424 = vmatprep.subr.mxu0 0.0
    %425 = vmatpush1.msra.mxu0 0.0
    %426 = vmatprep.subr.mxu0 0.0
    %427 = vmatpush1.msra.mxu0 0.0
    %428 = vmatprep.subr.mxu0 0.0
    %429 = vmatpush1.msra.mxu0 0.0
    %430 = vmatprep.subr.mxu0 0.0
    %431 = vmatpush1.msra.mxu0 0.0
    %432 = vmatprep.subr.mxu0 0.0
    %433 = vmatpush1.msra.mxu0 0.0
    %434 = vmatprep.subr.mxu0 0.0
    %435 = vmatpush1.msra.mxu0 0.0
    %436 = vmatprep.subr.mxu0 0.0
    %437 = vmatpush1.msra.mxu0 0.0
    %438 = vmatprep.subr.mxu0 0.0
    %439 = vmatpush1.msra.mxu0 0.0
    %440 = vmatprep.mubr.f32.mxu0 0.0
    %441 = vmatmul.mubr.f32.gmra.mrb[0].mxu0 %v374
    %v442 = vpop.f32.mrb[0].mxu0
    %v443 = vadd.f32 0.0, %v442
    %v444 = vpop.f32.mrb[0].mxu0
    %445 = vdwg.mxu0
    %446 = vrot.lane.b32.xlu0 %v199, 96
    %v447 = vpop.permute.xlu0 %446
    %448 = vrot.lane.b32.xlu0 %v201, 96
    %v449 = vpop.permute.xlu0 %448
    %v450 = vsel %vm284, %v447, 0
    %v452 = vsel %vm284, %v449, 0
    %454 = vmatprep.subr.mxu0 0.0
    %455 = vmatpush1.xpose.msra.mxu0 %v452
    %456 = vmatprep.subr.mxu0 0.0
    %457 = vmatpush1.xpose.msra.mxu0 0.0
    %458 = vmatprep.subr.mxu0 0.0
    %459 = vmatpush1.xpose.msra.mxu0 0.0
    %460 = vmatprep.subr.mxu0 0.0
    %461 = vmatpush1.xpose.msra.mxu0 0.0
    %462 = vmatprep.subr.mxu0 0.0
    %463 = vmatpush1.xpose.msra.mxu0 0.0
    %464 = vmatprep.subr.mxu0 0.0
    %465 = vmatpush1.xpose.msra.mxu0 0.0
    %466 = vmatprep.subr.mxu0 0.0
    %467 = vmatpush1.xpose.msra.mxu0 0.0
    %468 = vmatprep.subr.mxu0 0.0
    %469 = vmatpush1.xpose.msra.mxu0 0.0
    %470 = vmatprep.subr.mxu0 0.0
    %471 = vmatpush1.xpose.msra.mxu0 0.0
    %472 = vmatprep.subr.mxu0 0.0
    %473 = vmatpush1.xpose.msra.mxu0 0.0
    %474 = vmatprep.subr.mxu0 0.0
    %475 = vmatpush1.xpose.msra.mxu0 0.0
    %476 = vmatprep.subr.mxu0 0.0
    %477 = vmatpush1.xpose.msra.mxu0 0.0
    %478 = vmatprep.subr.mxu0 0.0
    %479 = vmatpush1.xpose.msra.mxu0 0.0
    %480 = vmatprep.subr.mxu0 0.0
    %481 = vmatpush1.xpose.msra.mxu0 0.0
    %482 = vmatprep.subr.mxu0 0.0
    %483 = vmatpush1.xpose.msra.mxu0 0.0
    %484 = vmatprep.subr.mxu0 0.0
    %485 = vmatpush1.xpose.msra.mxu0 0.0
    %486 = vmatprep.subr.mxu0 0.0
    %487 = vmatpush1.xpose.msra.mxu0 0.0
    %488 = vmatprep.subr.mxu0 0.0
    %489 = vmatpush1.xpose.msra.mxu0 0.0
    %490 = vmatprep.subr.mxu0 0.0
    %491 = vmatpush1.xpose.msra.mxu0 0.0
    %492 = vmatprep.subr.mxu0 0.0
    %493 = vmatpush1.xpose.msra.mxu0 0.0
    %494 = vmatprep.subr.mxu0 0.0
    %495 = vmatpush1.xpose.msra.mxu0 0.0
    %496 = vmatprep.subr.mxu0 0.0
    %497 = vmatpush1.xpose.msra.mxu0 0.0
    %498 = vmatprep.subr.mxu0 0.0
    %499 = vmatpush1.xpose.msra.mxu0 0.0
    %500 = vmatprep.subr.mxu0 0.0
    %501 = vmatpush1.xpose.msra.mxu0 0.0
    %502 = vmatprep.subr.mxu0 0.0
    %503 = vmatpush1.xpose.msra.mxu0 0.0
    %504 = vmatprep.subr.mxu0 0.0
    %505 = vmatpush1.xpose.msra.mxu0 0.0
    %506 = vmatprep.subr.mxu0 0.0
    %507 = vmatpush1.xpose.msra.mxu0 0.0
    %508 = vmatprep.subr.mxu0 0.0
    %509 = vmatpush1.xpose.msra.mxu0 0.0
    %510 = vmatprep.subr.mxu0 0.0
    %511 = vmatpush1.xpose.msra.mxu0 0.0
    %512 = vmatprep.subr.mxu0 0.0
    %513 = vmatpush1.xpose.msra.mxu0 0.0
    %514 = vmatprep.subr.mxu0 0.0
    %515 = vmatpush1.xpose.msra.mxu0 0.0
    %516 = vmatprep.subr.mxu0 0.0
    %517 = vmatpush1.xpose.msra.mxu0 0.0
    %518 = vmatprep.mubr.f32.mxu0 0.0
    %519 = vmatmul.mubr.f32.gmra.mrb[0].mxu0 %v450
    %v520 = vpop.f32.mrb[0].mxu0
    %v521 = vadd.f32 0.0, %v520
    %v522 = vpop.f32.mrb[0].mxu0
    %523 = vdwg.mxu0
    %v524 = vsel %vm361, %v521, -inf
    %525 = vmax.xlane.f32.xlu0 %v524
    %v526 = vpop.xlane.xlu0 %525
    %v527 = vsub.f32 %v521, %v526
    %v528 = vmul.f32 %v527, 1.442695
    %v529 = vpow.pop %v528
    %v530 = vsel %vm361, %v529, 0.0
    %531 = vadd.xlane.f32.xlu0 %v530
    %v532 = vpop.xlane.xlu0 %531
    %v533 = vrcp.pop %v532
    %v534 = vmul.f32 %v529, %v533
    %536 = vrot.lane.b32.xlu0 %v276, 96
    %v537 = vpop.permute.xlu0 %536
    %v540 = vsel %vm361, %v534, 0
    %542 = vmatprep.subr.mxu0 0.0
    %543 = vmatpush1.msra.mxu0 %v537
    %544 = vmatprep.subr.mxu0 0.0
    %545 = vmatpush1.msra.mxu0 0.0
    %546 = vmatprep.subr.mxu0 0.0
    %547 = vmatpush1.msra.mxu0 0.0
    %548 = vmatprep.subr.mxu0 0.0
    %549 = vmatpush1.msra.mxu0 0.0
    %550 = vmatprep.subr.mxu0 0.0
    %551 = vmatpush1.msra.mxu0 0.0
    %552 = vmatprep.subr.mxu0 0.0
    %553 = vmatpush1.msra.mxu0 0.0
    %554 = vmatprep.subr.mxu0 0.0
    %555 = vmatpush1.msra.mxu0 0.0
    %556 = vmatprep.subr.mxu0 0.0
    %557 = vmatpush1.msra.mxu0 0.0
    %558 = vmatprep.subr.mxu0 0.0
    %559 = vmatpush1.msra.mxu0 0.0
    %560 = vmatprep.subr.mxu0 0.0
    %561 = vmatpush1.msra.mxu0 0.0
    %562 = vmatprep.subr.mxu0 0.0
    %563 = vmatpush1.msra.mxu0 0.0
    %564 = vmatprep.subr.mxu0 0.0
    %565 = vmatpush1.msra.mxu0 0.0
    %566 = vmatprep.subr.mxu0 0.0
    %567 = vmatpush1.msra.mxu0 0.0
    %568 = vmatprep.subr.mxu0 0.0
    %569 = vmatpush1.msra.mxu0 0.0
    %570 = vmatprep.subr.mxu0 0.0
    %571 = vmatpush1.msra.mxu0 0.0
    %572 = vmatprep.subr.mxu0 0.0
    %573 = vmatpush1.msra.mxu0 0.0
    %574 = vmatprep.subr.mxu0 0.0
    %575 = vmatpush1.msra.mxu0 0.0
    %576 = vmatprep.subr.mxu0 0.0
    %577 = vmatpush1.msra.mxu0 0.0
    %578 = vmatprep.subr.mxu0 0.0
    %579 = vmatpush1.msra.mxu0 0.0
    %580 = vmatprep.subr.mxu0 0.0
    %581 = vmatpush1.msra.mxu0 0.0
    %582 = vmatprep.subr.mxu0 0.0
    %583 = vmatpush1.msra.mxu0 0.0
    %584 = vmatprep.subr.mxu0 0.0
    %585 = vmatpush1.msra.mxu0 0.0
    %586 = vmatprep.subr.mxu0 0.0
    %587 = vmatpush1.msra.mxu0 0.0
    %588 = vmatprep.subr.mxu0 0.0
    %589 = vmatpush1.msra.mxu0 0.0
    %590 = vmatprep.subr.mxu0 0.0
    %591 = vmatpush1.msra.mxu0 0.0
    %592 = vmatprep.subr.mxu0 0.0
    %593 = vmatpush1.msra.mxu0 0.0
    %594 = vmatprep.subr.mxu0 0.0
    %595 = vmatpush1.msra.mxu0 0.0
    %596 = vmatprep.subr.mxu0 0.0
    %597 = vmatpush1.msra.mxu0 0.0
    %598 = vmatprep.subr.mxu0 0.0
    %599 = vmatpush1.msra.mxu0 0.0
    %600 = vmatprep.subr.mxu0 0.0
    %601 = vmatpush1.msra.mxu0 0.0
    %602 = vmatprep.subr.mxu0 0.0
    %603 = vmatpush1.msra.mxu0 0.0
    %604 = vmatprep.subr.mxu0 0.0
    %605 = vmatpush1.msra.mxu0 0.0
    %606 = vmatprep.mubr.f32.mxu0 0.0
    %607 = vmatmul.mubr.f32.gmra.mrb[0].mxu0 %v540
    %v608 = vpop.f32.mrb[0].mxu0
    %v609 = vadd.f32 0.0, %v608
    %v610 = vpop.f32.mrb[0].mxu0
    %611 = vdwg.mxu0
    %612 = vrot.lane.b32.xlu0 %v199, 64
    %v613 = vpop.permute.xlu0 %612
    %614 = vrot.lane.b32.xlu0 %v201, 64
    %v615 = vpop.permute.xlu0 %614
    %v616 = vsel %vm284, %v613, 0
    %v618 = vsel %vm284, %v615, 0
    %620 = vmatprep.subr.mxu0 0.0
    %621 = vmatpush1.xpose.msra.mxu0 %v618
    %622 = vmatprep.subr.mxu0 0.0
    %623 = vmatpush1.xpose.msra.mxu0 0.0
    %624 = vmatprep.subr.mxu0 0.0
    %625 = vmatpush1.xpose.msra.mxu0 0.0
    %626 = vmatprep.subr.mxu0 0.0
    %627 = vmatpush1.xpose.msra.mxu0 0.0
    %628 = vmatprep.subr.mxu0 0.0
    %629 = vmatpush1.xpose.msra.mxu0 0.0
    %630 = vmatprep.subr.mxu0 0.0
    %631 = vmatpush1.xpose.msra.mxu0 0.0
    %632 = vmatprep.subr.mxu0 0.0
    %633 = vmatpush1.xpose.msra.mxu0 0.0
    %634 = vmatprep.subr.mxu0 0.0
    %635 = vmatpush1.xpose.msra.mxu0 0.0
    %636 = vmatprep.subr.mxu0 0.0
    %637 = vmatpush1.xpose.msra.mxu0 0.0
    %638 = vmatprep.subr.mxu0 0.0
    %639 = vmatpush1.xpose.msra.mxu0 0.0
    %640 = vmatprep.subr.mxu0 0.0
    %641 = vmatpush1.xpose.msra.mxu0 0.0
    %642 = vmatprep.subr.mxu0 0.0
    %643 = vmatpush1.xpose.msra.mxu0 0.0
    %644 = vmatprep.subr.mxu0 0.0
    %645 = vmatpush1.xpose.msra.mxu0 0.0
    %646 = vmatprep.subr.mxu0 0.0
    %647 = vmatpush1.xpose.msra.mxu0 0.0
    %648 = vmatprep.subr.mxu0 0.0
    %649 = vmatpush1.xpose.msra.mxu0 0.0
    %650 = vmatprep.subr.mxu0 0.0
    %651 = vmatpush1.xpose.msra.mxu0 0.0
    %652 = vmatprep.subr.mxu0 0.0
    %653 = vmatpush1.xpose.msra.mxu0 0.0
    %654 = vmatprep.subr.mxu0 0.0
    %655 = vmatpush1.xpose.msra.mxu0 0.0
    %656 = vmatprep.subr.mxu0 0.0
    %657 = vmatpush1.xpose.msra.mxu0 0.0
    %658 = vmatprep.subr.mxu0 0.0
    %659 = vmatpush1.xpose.msra.mxu0 0.0
    %660 = vmatprep.subr.mxu0 0.0
    %661 = vmatpush1.xpose.msra.mxu0 0.0
    %662 = vmatprep.subr.mxu0 0.0
    %663 = vmatpush1.xpose.msra.mxu0 0.0
    %664 = vmatprep.subr.mxu0 0.0
    %665 = vmatpush1.xpose.msra.mxu0 0.0
    %666 = vmatprep.subr.mxu0 0.0
    %667 = vmatpush1.xpose.msra.mxu0 0.0
    %668 = vmatprep.subr.mxu0 0.0
    %669 = vmatpush1.xpose.msra.mxu0 0.0
    %670 = vmatprep.subr.mxu0 0.0
    %671 = vmatpush1.xpose.msra.mxu0 0.0
    %672 = vmatprep.subr.mxu0 0.0
    %673 = vmatpush1.xpose.msra.mxu0 0.0
    %674 = vmatprep.subr.mxu0 0.0
    %675 = vmatpush1.xpose.msra.mxu0 0.0
    %676 = vmatprep.subr.mxu0 0.0
    %677 = vmatpush1.xpose.msra.mxu0 0.0
    %678 = vmatprep.subr.mxu0 0.0
    %679 = vmatpush1.xpose.msra.mxu0 0.0
    %680 = vmatprep.subr.mxu0 0.0
    %681 = vmatpush1.xpose.msra.mxu0 0.0
    %682 = vmatprep.subr.mxu0 0.0
    %683 = vmatpush1.xpose.msra.mxu0 0.0
    %684 = vmatprep.mubr.f32.mxu0 0.0
    %685 = vmatmul.mubr.f32.gmra.mrb[0].mxu0 %v616
    %v686 = vpop.f32.mrb[0].mxu0
    %v687 = vadd.f32 0.0, %v686
    %v688 = vpop.f32.mrb[0].mxu0
    %689 = vdwg.mxu0
    %v690 = vsel %vm361, %v687, -inf
    %691 = vmax.xlane.f32.xlu0 %v690
    %v692 = vpop.xlane.xlu0 %691
    %v693 = vsub.f32 %v687, %v692
    %v694 = vmul.f32 %v693, 1.442695
    %v695 = vpow.pop %v694
    %v696 = vsel %vm361, %v695, 0.0
    %697 = vadd.xlane.f32.xlu0 %v696
    %v698 = vpop.xlane.xlu0 %697
    %v699 = vrcp.pop %v698
    %v700 = vmul.f32 %v695, %v699
    %701 = vrot.lane.b32.xlu0 %v276, 64
    %v702 = vpop.permute.xlu0 %701
    %v705 = vsel %vm361, %v700, 0
    %707 = vmatprep.subr.mxu0 0.0
    %708 = vmatpush1.msra.mxu0 %v702
    %709 = vmatprep.subr.mxu0 0.0
    %710 = vmatpush1.msra.mxu0 0.0
    %711 = vmatprep.subr.mxu0 0.0
    %712 = vmatpush1.msra.mxu0 0.0
    %713 = vmatprep.subr.mxu0 0.0
    %714 = vmatpush1.msra.mxu0 0.0
    %715 = vmatprep.subr.mxu0 0.0
    %716 = vmatpush1.msra.mxu0 0.0
    %717 = vmatprep.subr.mxu0 0.0
    %718 = vmatpush1.msra.mxu0 0.0
    %719 = vmatprep.subr.mxu0 0.0
    %720 = vmatpush1.msra.mxu0 0.0
    %721 = vmatprep.subr.mxu0 0.0
    %722 = vmatpush1.msra.mxu0 0.0
    %723 = vmatprep.subr.mxu0 0.0
    %724 = vmatpush1.msra.mxu0 0.0
    %725 = vmatprep.subr.mxu0 0.0
    %726 = vmatpush1.msra.mxu0 0.0
    %727 = vmatprep.subr.mxu0 0.0
    %728 = vmatpush1.msra.mxu0 0.0
    %729 = vmatprep.subr.mxu0 0.0
    %730 = vmatpush1.msra.mxu0 0.0
    %731 = vmatprep.subr.mxu0 0.0
    %732 = vmatpush1.msra.mxu0 0.0
    %733 = vmatprep.subr.mxu0 0.0
    %734 = vmatpush1.msra.mxu0 0.0
    %735 = vmatprep.subr.mxu0 0.0
    %736 = vmatpush1.msra.mxu0 0.0
    %737 = vmatprep.subr.mxu0 0.0
    %738 = vmatpush1.msra.mxu0 0.0
    %739 = vmatprep.subr.mxu0 0.0
    %740 = vmatpush1.msra.mxu0 0.0
    %741 = vmatprep.subr.mxu0 0.0
    %742 = vmatpush1.msra.mxu0 0.0
    %743 = vmatprep.subr.mxu0 0.0
    %744 = vmatpush1.msra.mxu0 0.0
    %745 = vmatprep.subr.mxu0 0.0
    %746 = vmatpush1.msra.mxu0 0.0
    %747 = vmatprep.subr.mxu0 0.0
    %748 = vmatpush1.msra.mxu0 0.0
    %749 = vmatprep.subr.mxu0 0.0
    %750 = vmatpush1.msra.mxu0 0.0
    %751 = vmatprep.subr.mxu0 0.0
    %752 = vmatpush1.msra.mxu0 0.0
    %753 = vmatprep.subr.mxu0 0.0
    %754 = vmatpush1.msra.mxu0 0.0
    %755 = vmatprep.subr.mxu0 0.0
    %756 = vmatpush1.msra.mxu0 0.0
    %757 = vmatprep.subr.mxu0 0.0
    %758 = vmatpush1.msra.mxu0 0.0
    %759 = vmatprep.subr.mxu0 0.0
    %760 = vmatpush1.msra.mxu0 0.0
    %761 = vmatprep.subr.mxu0 0.0
    %762 = vmatpush1.msra.mxu0 0.0
    %763 = vmatprep.subr.mxu0 0.0
    %764 = vmatpush1.msra.mxu0 0.0
    %765 = vmatprep.subr.mxu0 0.0
    %766 = vmatpush1.msra.mxu0 0.0
    %767 = vmatprep.subr.mxu0 0.0
    %768 = vmatpush1.msra.mxu0 0.0
    %769 = vmatprep.subr.mxu0 0.0
    %770 = vmatpush1.msra.mxu0 0.0
    %771 = vmatprep.mubr.f32.mxu0 0.0
    %772 = vmatmul.mubr.f32.gmra.mrb[0].mxu0 %v705
    %v773 = vpop.f32.mrb[0].mxu0
    %v774 = vadd.f32 0.0, %v773
    %v775 = vpop.f32.mrb[0].mxu0
    %776 = vdwg.mxu0
    %777 = vrot.lane.b32.xlu0 %v199, 32
    %v778 = vpop.permute.xlu0 %777
    %779 = vrot.lane.b32.xlu0 %v201, 32
    %v780 = vpop.permute.xlu0 %779
    %v781 = vsel %vm284, %v778, 0
    %v783 = vsel %vm284, %v780, 0
    %785 = vmatprep.subr.mxu0 0.0
    %786 = vmatpush1.xpose.msra.mxu0 %v783
    %787 = vmatprep.subr.mxu0 0.0
    %788 = vmatpush1.xpose.msra.mxu0 0.0
    %789 = vmatprep.subr.mxu0 0.0
    %790 = vmatpush1.xpose.msra.mxu0 0.0
    %791 = vmatprep.subr.mxu0 0.0
    %792 = vmatpush1.xpose.msra.mxu0 0.0
    %793 = vmatprep.subr.mxu0 0.0
    %794 = vmatpush1.xpose.msra.mxu0 0.0
    %795 = vmatprep.subr.mxu0 0.0
    %796 = vmatpush1.xpose.msra.mxu0 0.0
    %797 = vmatprep.subr.mxu0 0.0
    %798 = vmatpush1.xpose.msra.mxu0 0.0
    %799 = vmatprep.subr.mxu0 0.0
    %800 = vmatpush1.xpose.msra.mxu0 0.0
    %801 = vmatprep.subr.mxu0 0.0
    %802 = vmatpush1.xpose.msra.mxu0 0.0
    %803 = vmatprep.subr.mxu0 0.0
    %804 = vmatpush1.xpose.msra.mxu0 0.0
    %805 = vmatprep.subr.mxu0 0.0
    %806 = vmatpush1.xpose.msra.mxu0 0.0
    %807 = vmatprep.subr.mxu0 0.0
    %808 = vmatpush1.xpose.msra.mxu0 0.0
    %809 = vmatprep.subr.mxu0 0.0
    %810 = vmatpush1.xpose.msra.mxu0 0.0
    %811 = vmatprep.subr.mxu0 0.0
    %812 = vmatpush1.xpose.msra.mxu0 0.0
    %813 = vmatprep.subr.mxu0 0.0
    %814 = vmatpush1.xpose.msra.mxu0 0.0
    %815 = vmatprep.subr.mxu0 0.0
    %816 = vmatpush1.xpose.msra.mxu0 0.0
    %817 = vmatprep.subr.mxu0 0.0
    %818 = vmatpush1.xpose.msra.mxu0 0.0
    %819 = vmatprep.subr.mxu0 0.0
    %820 = vmatpush1.xpose.msra.mxu0 0.0
    %821 = vmatprep.subr.mxu0 0.0
    %822 = vmatpush1.xpose.msra.mxu0 0.0
    %823 = vmatprep.subr.mxu0 0.0
    %824 = vmatpush1.xpose.msra.mxu0 0.0
    %825 = vmatprep.subr.mxu0 0.0
    %826 = vmatpush1.xpose.msra.mxu0 0.0
    %827 = vmatprep.subr.mxu0 0.0
    %828 = vmatpush1.xpose.msra.mxu0 0.0
    %829 = vmatprep.subr.mxu0 0.0
    %830 = vmatpush1.xpose.msra.mxu0 0.0
    %831 = vmatprep.subr.mxu0 0.0
    %832 = vmatpush1.xpose.msra.mxu0 0.0
    %833 = vmatprep.subr.mxu0 0.0
    %834 = vmatpush1.xpose.msra.mxu0 0.0
    %835 = vmatprep.subr.mxu0 0.0
    %836 = vmatpush1.xpose.msra.mxu0 0.0
    %837 = vmatprep.subr.mxu0 0.0
    %838 = vmatpush1.xpose.msra.mxu0 0.0
    %839 = vmatprep.subr.mxu0 0.0
    %840 = vmatpush1.xpose.msra.mxu0 0.0
    %841 = vmatprep.subr.mxu0 0.0
    %842 = vmatpush1.xpose.msra.mxu0 0.0
    %843 = vmatprep.subr.mxu0 0.0
    %844 = vmatpush1.xpose.msra.mxu0 0.0
    %845 = vmatprep.subr.mxu0 0.0
    %846 = vmatpush1.xpose.msra.mxu0 0.0
    %847 = vmatprep.subr.mxu0 0.0
    %848 = vmatpush1.xpose.msra.mxu0 0.0
    %849 = vmatprep.mubr.f32.mxu0 0.0
    %850 = vmatmul.mubr.f32.gmra.mrb[0].mxu0 %v781
    %v851 = vpop.f32.mrb[0].mxu0
    %v852 = vadd.f32 0.0, %v851
    %v853 = vpop.f32.mrb[0].mxu0
    %854 = vdwg.mxu0
    %v855 = vsel %vm361, %v852, -inf
    %856 = vmax.xlane.f32.xlu0 %v855
    %v857 = vpop.xlane.xlu0 %856
    %v858 = vsub.f32 %v852, %v857
    %v859 = vmul.f32 %v858, 1.442695
    %v860 = vpow.pop %v859
    %v861 = vsel %vm361, %v860, 0.0
    %862 = vadd.xlane.f32.xlu0 %v861
    %v863 = vpop.xlane.xlu0 %862
    %v864 = vrcp.pop %v863
    %v865 = vmul.f32 %v860, %v864
    %866 = vrot.lane.b32.xlu0 %v276, 32
    %v867 = vpop.permute.xlu0 %866
    %v870 = vsel %vm361, %v865, 0
    %872 = vmatprep.subr.mxu0 0.0
    %873 = vmatpush1.msra.mxu0 %v867
    %874 = vmatprep.subr.mxu0 0.0
    %875 = vmatpush1.msra.mxu0 0.0
    %876 = vmatprep.subr.mxu0 0.0
    %877 = vmatpush1.msra.mxu0 0.0
    %878 = vmatprep.subr.mxu0 0.0
    %879 = vmatpush1.msra.mxu0 0.0
    %880 = vmatprep.subr.mxu0 0.0
    %881 = vmatpush1.msra.mxu0 0.0
    %882 = vmatprep.subr.mxu0 0.0
    %883 = vmatpush1.msra.mxu0 0.0
    %884 = vmatprep.subr.mxu0 0.0
    %885 = vmatpush1.msra.mxu0 0.0
    %886 = vmatprep.subr.mxu0 0.0
    %887 = vmatpush1.msra.mxu0 0.0
    %888 = vmatprep.subr.mxu0 0.0
    %889 = vmatpush1.msra.mxu0 0.0
    %890 = vmatprep.subr.mxu0 0.0
    %891 = vmatpush1.msra.mxu0 0.0
    %892 = vmatprep.subr.mxu0 0.0
    %893 = vmatpush1.msra.mxu0 0.0
    %894 = vmatprep.subr.mxu0 0.0
    %895 = vmatpush1.msra.mxu0 0.0
    %896 = vmatprep.subr.mxu0 0.0
    %897 = vmatpush1.msra.mxu0 0.0
    %898 = vmatprep.subr.mxu0 0.0
    %899 = vmatpush1.msra.mxu0 0.0
    %900 = vmatprep.subr.mxu0 0.0
    %901 = vmatpush1.msra.mxu0 0.0
    %902 = vmatprep.subr.mxu0 0.0
    %903 = vmatpush1.msra.mxu0 0.0
    %904 = vmatprep.subr.mxu0 0.0
    %905 = vmatpush1.msra.mxu0 0.0
    %906 = vmatprep.subr.mxu0 0.0
    %907 = vmatpush1.msra.mxu0 0.0
    %908 = vmatprep.subr.mxu0 0.0
    %909 = vmatpush1.msra.mxu0 0.0
    %910 = vmatprep.subr.mxu0 0.0
    %911 = vmatpush1.msra.mxu0 0.0
    %912 = vmatprep.subr.mxu0 0.0
    %913 = vmatpush1.msra.mxu0 0.0
    %914 = vmatprep.subr.mxu0 0.0
    %915 = vmatpush1.msra.mxu0 0.0
    %916 = vmatprep.subr.mxu0 0.0
    %917 = vmatpush1.msra.mxu0 0.0
    %918 = vmatprep.subr.mxu0 0.0
    %919 = vmatpush1.msra.mxu0 0.0
    %920 = vmatprep.subr.mxu0 0.0
    %921 = vmatpush1.msra.mxu0 0.0
    %922 = vmatprep.subr.mxu0 0.0
    %923 = vmatpush1.msra.mxu0 0.0
    %924 = vmatprep.subr.mxu0 0.0
    %925 = vmatpush1.msra.mxu0 0.0
    %926 = vmatprep.subr.mxu0 0.0
    %927 = vmatpush1.msra.mxu0 0.0
    %928 = vmatprep.subr.mxu0 0.0
    %929 = vmatpush1.msra.mxu0 0.0
    %930 = vmatprep.subr.mxu0 0.0
    %931 = vmatpush1.msra.mxu0 0.0
    %932 = vmatprep.subr.mxu0 0.0
    %933 = vmatpush1.msra.mxu0 0.0
    %934 = vmatprep.subr.mxu0 0.0
    %935 = vmatpush1.msra.mxu0 0.0
    %936 = vmatprep.mubr.f32.mxu0 0.0
    %937 = vmatmul.mubr.f32.gmra.mrb[0].mxu0 %v870
    %v938 = vpop.f32.mrb[0].mxu0
    %v939 = vadd.f32 0.0, %v938
    %v940 = vpop.f32.mrb[0].mxu0
    %941 = vdwg.mxu0
    %943 = vrot.lane.b32.xlu0 %v609, 32
    %v944 = vpop.permute.xlu0 %943
    %947 = vrot.lane.b32.xlu0 %v774, 64
    %v948 = vpop.permute.xlu0 %947
    %951 = vrot.lane.b32.xlu0 %v939, 96
    %v952 = vpop.permute.xlu0 %951
    %v954 = vsel %vm284, %v443, %v944
    %vm955 = vcmask 523264
    %v956 = vsel %vm955, %v954, %v948
    %vm957 = vcmask 785408
    %v958 = vsel %vm957, %v956, %v952
    %v960 = vsel %vm284, %v205, 0
    %v963 = vsel %vm284, %v207, 0
    %965 = vmatprep.subr.mxu0 0.0
    %966 = vmatpush1.xpose.msra.mxu0 %v963
    %967 = vmatprep.subr.mxu0 0.0
    %968 = vmatpush1.xpose.msra.mxu0 0.0
    %969 = vmatprep.subr.mxu0 0.0
    %970 = vmatpush1.xpose.msra.mxu0 0.0
    %971 = vmatprep.subr.mxu0 0.0
    %972 = vmatpush1.xpose.msra.mxu0 0.0
    %973 = vmatprep.subr.mxu0 0.0
    %974 = vmatpush1.xpose.msra.mxu0 0.0
    %975 = vmatprep.subr.mxu0 0.0
    %976 = vmatpush1.xpose.msra.mxu0 0.0
    %977 = vmatprep.subr.mxu0 0.0
    %978 = vmatpush1.xpose.msra.mxu0 0.0
    %979 = vmatprep.subr.mxu0 0.0
    %980 = vmatpush1.xpose.msra.mxu0 0.0
    %981 = vmatprep.subr.mxu0 0.0
    %982 = vmatpush1.xpose.msra.mxu0 0.0
    %983 = vmatprep.subr.mxu0 0.0
    %984 = vmatpush1.xpose.msra.mxu0 0.0
    %985 = vmatprep.subr.mxu0 0.0
    %986 = vmatpush1.xpose.msra.mxu0 0.0
    %987 = vmatprep.subr.mxu0 0.0
    %988 = vmatpush1.xpose.msra.mxu0 0.0
    %989 = vmatprep.subr.mxu0 0.0
    %990 = vmatpush1.xpose.msra.mxu0 0.0
    %991 = vmatprep.subr.mxu0 0.0
    %992 = vmatpush1.xpose.msra.mxu0 0.0
    %993 = vmatprep.subr.mxu0 0.0
    %994 = vmatpush1.xpose.msra.mxu0 0.0
    %995 = vmatprep.subr.mxu0 0.0
    %996 = vmatpush1.xpose.msra.mxu0 0.0
    %997 = vmatprep.subr.mxu0 0.0
    %998 = vmatpush1.xpose.msra.mxu0 0.0
    %999 = vmatprep.subr.mxu0 0.0
    %1000 = vmatpush1.xpose.msra.mxu0 0.0
    %1001 = vmatprep.subr.mxu0 0.0
    %1002 = vmatpush1.xpose.msra.mxu0 0.0
    %1003 = vmatprep.subr.mxu0 0.0
    %1004 = vmatpush1.xpose.msra.mxu0 0.0
    %1005 = vmatprep.subr.mxu0 0.0
    %1006 = vmatpush1.xpose.msra.mxu0 0.0
    %1007 = vmatprep.subr.mxu0 0.0
    %1008 = vmatpush1.xpose.msra.mxu0 0.0
    %1009 = vmatprep.subr.mxu0 0.0
    %1010 = vmatpush1.xpose.msra.mxu0 0.0
    %1011 = vmatprep.subr.mxu0 0.0
    %1012 = vmatpush1.xpose.msra.mxu0 0.0
    %1013 = vmatprep.subr.mxu0 0.0
    %1014 = vmatpush1.xpose.msra.mxu0 0.0
    %1015 = vmatprep.subr.mxu0 0.0
    %1016 = vmatpush1.xpose.msra.mxu0 0.0
    %1017 = vmatprep.subr.mxu0 0.0
    %1018 = vmatpush1.xpose.msra.mxu0 0.0
    %1019 = vmatprep.subr.mxu0 0.0
    %1020 = vmatpush1.xpose.msra.mxu0 0.0
    %1021 = vmatprep.subr.mxu0 0.0
    %1022 = vmatpush1.xpose.msra.mxu0 0.0
    %1023 = vmatprep.subr.mxu0 0.0
    %1024 = vmatpush1.xpose.msra.mxu0 0.0
    %1025 = vmatprep.subr.mxu0 0.0
    %1026 = vmatpush1.xpose.msra.mxu0 0.0
    %1027 = vmatprep.subr.mxu0 0.0
    %1028 = vmatpush1.xpose.msra.mxu0 0.0
    %1029 = vmatprep.mubr.f32.mxu0 0.0
    %1030 = vmatmul.mubr.f32.gmra.mrb[0].mxu0 %v960
    %v1031 = vpop.f32.mrb[0].mxu0
    %v1032 = vadd.f32 0.0, %v1031
    %v1033 = vpop.f32.mrb[0].mxu0
    %1034 = vdwg.mxu0
    %v1035 = vsel %vm361, %v1032, -inf
    %1036 = vmax.xlane.f32.xlu0 %v1035
    %v1037 = vpop.xlane.xlu0 %1036
    %v1038 = vsub.f32 %v1032, %v1037
    %v1039 = vmul.f32 %v1038, 1.442695
    %v1040 = vpow.pop %v1039
    %v1041 = vsel %vm361, %v1040, 0.0
    %1042 = vadd.xlane.f32.xlu0 %v1041
    %v1043 = vpop.xlane.xlu0 %1042
    %v1044 = vrcp.pop %v1043
    %v1045 = vmul.f32 %v1040, %v1044
    %v1047 = vsel %vm361, %v1045, 0
    %1049 = vmatprep.subr.mxu0 0.0
    %1050 = vmatpush1.msra.mxu0 %v281
    %1051 = vmatprep.subr.mxu0 0.0
    %1052 = vmatpush1.msra.mxu0 0.0
    %1053 = vmatprep.subr.mxu0 0.0
    %1054 = vmatpush1.msra.mxu0 0.0
    %1055 = vmatprep.subr.mxu0 0.0
    %1056 = vmatpush1.msra.mxu0 0.0
    %1057 = vmatprep.subr.mxu0 0.0
    %1058 = vmatpush1.msra.mxu0 0.0
    %1059 = vmatprep.subr.mxu0 0.0
    %1060 = vmatpush1.msra.mxu0 0.0
    %1061 = vmatprep.subr.mxu0 0.0
    %1062 = vmatpush1.msra.mxu0 0.0
    %1063 = vmatprep.subr.mxu0 0.0
    %1064 = vmatpush1.msra.mxu0 0.0
    %1065 = vmatprep.subr.mxu0 0.0
    %1066 = vmatpush1.msra.mxu0 0.0
    %1067 = vmatprep.subr.mxu0 0.0
    %1068 = vmatpush1.msra.mxu0 0.0
    %1069 = vmatprep.subr.mxu0 0.0
    %1070 = vmatpush1.msra.mxu0 0.0
    %1071 = vmatprep.subr.mxu0 0.0
    %1072 = vmatpush1.msra.mxu0 0.0
    %1073 = vmatprep.subr.mxu0 0.0
    %1074 = vmatpush1.msra.mxu0 0.0
    %1075 = vmatprep.subr.mxu0 0.0
    %1076 = vmatpush1.msra.mxu0 0.0
    %1077 = vmatprep.subr.mxu0 0.0
    %1078 = vmatpush1.msra.mxu0 0.0
    %1079 = vmatprep.subr.mxu0 0.0
    %1080 = vmatpush1.msra.mxu0 0.0
    %1081 = vmatprep.subr.mxu0 0.0
    %1082 = vmatpush1.msra.mxu0 0.0
    %1083 = vmatprep.subr.mxu0 0.0
    %1084 = vmatpush1.msra.mxu0 0.0
    %1085 = vmatprep.subr.mxu0 0.0
    %1086 = vmatpush1.msra.mxu0 0.0
    %1087 = vmatprep.subr.mxu0 0.0
    %1088 = vmatpush1.msra.mxu0 0.0
    %1089 = vmatprep.subr.mxu0 0.0
    %1090 = vmatpush1.msra.mxu0 0.0
    %1091 = vmatprep.subr.mxu0 0.0
    %1092 = vmatpush1.msra.mxu0 0.0
    %1093 = vmatprep.subr.mxu0 0.0
    %1094 = vmatpush1.msra.mxu0 0.0
    %1095 = vmatprep.subr.mxu0 0.0
    %1096 = vmatpush1.msra.mxu0 0.0
    %1097 = vmatprep.subr.mxu0 0.0
    %1098 = vmatpush1.msra.mxu0 0.0
    %1099 = vmatprep.subr.mxu0 0.0
    %1100 = vmatpush1.msra.mxu0 0.0
    %1101 = vmatprep.subr.mxu0 0.0
    %1102 = vmatpush1.msra.mxu0 0.0
    %1103 = vmatprep.subr.mxu0 0.0
    %1104 = vmatpush1.msra.mxu0 0.0
    %1105 = vmatprep.subr.mxu0 0.0
    %1106 = vmatpush1.msra.mxu0 0.0
    %1107 = vmatprep.subr.mxu0 0.0
    %1108 = vmatpush1.msra.mxu0 0.0
    %1109 = vmatprep.subr.mxu0 0.0
    %1110 = vmatpush1.msra.mxu0 0.0
    %1111 = vmatprep.subr.mxu0 0.0
    %1112 = vmatpush1.msra.mxu0 0.0
    %1113 = vmatprep.mubr.f32.mxu0 0.0
    %1114 = vmatmul.mubr.f32.gmra.mrb[0].mxu0 %v1047
    %v1115 = vpop.f32.mrb[0].mxu0
    %v1116 = vadd.f32 0.0, %v1115
    %v1117 = vpop.f32.mrb[0].mxu0
    %1118 = vdwg.mxu0
    %1119 = vrot.lane.b32.xlu0 %v205, 96
    %v1120 = vpop.permute.xlu0 %1119
    %1121 = vrot.lane.b32.xlu0 %v207, 96
    %v1122 = vpop.permute.xlu0 %1121
    %v1123 = vsel %vm284, %v1120, 0
    %v1125 = vsel %vm284, %v1122, 0
    %1127 = vmatprep.subr.mxu0 0.0
    %1128 = vmatpush1.xpose.msra.mxu0 %v1125
    %1129 = vmatprep.subr.mxu0 0.0
    %1130 = vmatpush1.xpose.msra.mxu0 0.0
    %1131 = vmatprep.subr.mxu0 0.0
    %1132 = vmatpush1.xpose.msra.mxu0 0.0
    %1133 = vmatprep.subr.mxu0 0.0
    %1134 = vmatpush1.xpose.msra.mxu0 0.0
    %1135 = vmatprep.subr.mxu0 0.0
    %1136 = vmatpush1.xpose.msra.mxu0 0.0
    %1137 = vmatprep.subr.mxu0 0.0
    %1138 = vmatpush1.xpose.msra.mxu0 0.0
    %1139 = vmatprep.subr.mxu0 0.0
    %1140 = vmatpush1.xpose.msra.mxu0 0.0
    %1141 = vmatprep.subr.mxu0 0.0
    %1142 = vmatpush1.xpose.msra.mxu0 0.0
    %1143 = vmatprep.subr.mxu0 0.0
    %1144 = vmatpush1.xpose.msra.mxu0 0.0
    %1145 = vmatprep.subr.mxu0 0.0
    %1146 = vmatpush1.xpose.msra.mxu0 0.0
    %1147 = vmatprep.subr.mxu0 0.0
    %1148 = vmatpush1.xpose.msra.mxu0 0.0
    %1149 = vmatprep.subr.mxu0 0.0
    %1150 = vmatpush1.xpose.msra.mxu0 0.0
    %1151 = vmatprep.subr.mxu0 0.0
    %1152 = vmatpush1.xpose.msra.mxu0 0.0
    %1153 = vmatprep.subr.mxu0 0.0
    %1154 = vmatpush1.xpose.msra.mxu0 0.0
    %1155 = vmatprep.subr.mxu0 0.0
    %1156 = vmatpush1.xpose.msra.mxu0 0.0
    %1157 = vmatprep.subr.mxu0 0.0
    %1158 = vmatpush1.xpose.msra.mxu0 0.0
    %1159 = vmatprep.subr.mxu0 0.0
    %1160 = vmatpush1.xpose.msra.mxu0 0.0
    %1161 = vmatprep.subr.mxu0 0.0
    %1162 = vmatpush1.xpose.msra.mxu0 0.0
    %1163 = vmatprep.subr.mxu0 0.0
    %1164 = vmatpush1.xpose.msra.mxu0 0.0
    %1165 = vmatprep.subr.mxu0 0.0
    %1166 = vmatpush1.xpose.msra.mxu0 0.0
    %1167 = vmatprep.subr.mxu0 0.0
    %1168 = vmatpush1.xpose.msra.mxu0 0.0
    %1169 = vmatprep.subr.mxu0 0.0
    %1170 = vmatpush1.xpose.msra.mxu0 0.0
    %1171 = vmatprep.subr.mxu0 0.0
    %1172 = vmatpush1.xpose.msra.mxu0 0.0
    %1173 = vmatprep.subr.mxu0 0.0
    %1174 = vmatpush1.xpose.msra.mxu0 0.0
    %1175 = vmatprep.subr.mxu0 0.0
    %1176 = vmatpush1.xpose.msra.mxu0 0.0
    %1177 = vmatprep.subr.mxu0 0.0
    %1178 = vmatpush1.xpose.msra.mxu0 0.0
    %1179 = vmatprep.subr.mxu0 0.0
    %1180 = vmatpush1.xpose.msra.mxu0 0.0
    %1181 = vmatprep.subr.mxu0 0.0
    %1182 = vmatpush1.xpose.msra.mxu0 0.0
    %1183 = vmatprep.subr.mxu0 0.0
    %1184 = vmatpush1.xpose.msra.mxu0 0.0
    %1185 = vmatprep.subr.mxu0 0.0
    %1186 = vmatpush1.xpose.msra.mxu0 0.0
    %1187 = vmatprep.subr.mxu0 0.0
    %1188 = vmatpush1.xpose.msra.mxu0 0.0
    %1189 = vmatprep.subr.mxu0 0.0
    %1190 = vmatpush1.xpose.msra.mxu0 0.0
    %1191 = vmatprep.mubr.f32.mxu0 0.0
    %1192 = vmatmul.mubr.f32.gmra.mrb[0].mxu0 %v1123
    %v1193 = vpop.f32.mrb[0].mxu0
    %v1194 = vadd.f32 0.0, %v1193
    %v1195 = vpop.f32.mrb[0].mxu0
    %1196 = vdwg.mxu0
    %v1197 = vsel %vm361, %v1194, -inf
    %1198 = vmax.xlane.f32.xlu0 %v1197
    %v1199 = vpop.xlane.xlu0 %1198
    %v1200 = vsub.f32 %v1194, %v1199
    %v1201 = vmul.f32 %v1200, 1.442695
    %v1202 = vpow.pop %v1201
    %v1203 = vsel %vm361, %v1202, 0.0
    %1204 = vadd.xlane.f32.xlu0 %v1203
    %v1205 = vpop.xlane.xlu0 %1204
    %v1206 = vrcp.pop %v1205
    %v1207 = vmul.f32 %v1202, %v1206
    %1209 = vrot.lane.b32.xlu0 %v281, 96
    %v1210 = vpop.permute.xlu0 %1209
    %v1213 = vsel %vm361, %v1207, 0
    %1215 = vmatprep.subr.mxu0 0.0
    %1216 = vmatpush1.msra.mxu0 %v1210
    %1217 = vmatprep.subr.mxu0 0.0
    %1218 = vmatpush1.msra.mxu0 0.0
    %1219 = vmatprep.subr.mxu0 0.0
    %1220 = vmatpush1.msra.mxu0 0.0
    %1221 = vmatprep.subr.mxu0 0.0
    %1222 = vmatpush1.msra.mxu0 0.0
    %1223 = vmatprep.subr.mxu0 0.0
    %1224 = vmatpush1.msra.mxu0 0.0
    %1225 = vmatprep.subr.mxu0 0.0
    %1226 = vmatpush1.msra.mxu0 0.0
    %1227 = vmatprep.subr.mxu0 0.0
    %1228 = vmatpush1.msra.mxu0 0.0
    %1229 = vmatprep.subr.mxu0 0.0
    %1230 = vmatpush1.msra.mxu0 0.0
    %1231 = vmatprep.subr.mxu0 0.0
    %1232 = vmatpush1.msra.mxu0 0.0
    %1233 = vmatprep.subr.mxu0 0.0
    %1234 = vmatpush1.msra.mxu0 0.0
    %1235 = vmatprep.subr.mxu0 0.0
    %1236 = vmatpush1.msra.mxu0 0.0
    %1237 = vmatprep.subr.mxu0 0.0
    %1238 = vmatpush1.msra.mxu0 0.0
    %1239 = vmatprep.subr.mxu0 0.0
    %1240 = vmatpush1.msra.mxu0 0.0
    %1241 = vmatprep.subr.mxu0 0.0
    %1242 = vmatpush1.msra.mxu0 0.0
    %1243 = vmatprep.subr.mxu0 0.0
    %1244 = vmatpush1.msra.mxu0 0.0
    %1245 = vmatprep.subr.mxu0 0.0
    %1246 = vmatpush1.msra.mxu0 0.0
    %1247 = vmatprep.subr.mxu0 0.0
    %1248 = vmatpush1.msra.mxu0 0.0
    %1249 = vmatprep.subr.mxu0 0.0
    %1250 = vmatpush1.msra.mxu0 0.0
    %1251 = vmatprep.subr.mxu0 0.0
    %1252 = vmatpush1.msra.mxu0 0.0
    %1253 = vmatprep.subr.mxu0 0.0
    %1254 = vmatpush1.msra.mxu0 0.0
    %1255 = vmatprep.subr.mxu0 0.0
    %1256 = vmatpush1.msra.mxu0 0.0
    %1257 = vmatprep.subr.mxu0 0.0
    %1258 = vmatpush1.msra.mxu0 0.0
    %1259 = vmatprep.subr.mxu0 0.0
    %1260 = vmatpush1.msra.mxu0 0.0
    %1261 = vmatprep.subr.mxu0 0.0
    %1262 = vmatpush1.msra.mxu0 0.0
    %1263 = vmatprep.subr.mxu0 0.0
    %1264 = vmatpush1.msra.mxu0 0.0
    %1265 = vmatprep.subr.mxu0 0.0
    %1266 = vmatpush1.msra.mxu0 0.0
    %1267 = vmatprep.subr.mxu0 0.0
    %1268 = vmatpush1.msra.mxu0 0.0
    %1269 = vmatprep.subr.mxu0 0.0
    %1270 = vmatpush1.msra.mxu0 0.0
    %1271 = vmatprep.subr.mxu0 0.0
    %1272 = vmatpush1.msra.mxu0 0.0
    %1273 = vmatprep.subr.mxu0 0.0
    %1274 = vmatpush1.msra.mxu0 0.0
    %1275 = vmatprep.subr.mxu0 0.0
    %1276 = vmatpush1.msra.mxu0 0.0
    %1277 = vmatprep.subr.mxu0 0.0
    %1278 = vmatpush1.msra.mxu0 0.0
    %1279 = vmatprep.mubr.f32.mxu0 0.0
    %1280 = vmatmul.mubr.f32.gmra.mrb[0].mxu0 %v1213
    %v1281 = vpop.f32.mrb[0].mxu0
    %v1282 = vadd.f32 0.0, %v1281
    %v1283 = vpop.f32.mrb[0].mxu0
    %1284 = vdwg.mxu0
    %1285 = vrot.lane.b32.xlu0 %v205, 64
    %v1286 = vpop.permute.xlu0 %1285
    %1287 = vrot.lane.b32.xlu0 %v207, 64
    %v1288 = vpop.permute.xlu0 %1287
    %v1289 = vsel %vm284, %v1286, 0
    %v1291 = vsel %vm284, %v1288, 0
    %1293 = vmatprep.subr.mxu0 0.0
    %1294 = vmatpush1.xpose.msra.mxu0 %v1291
    %1295 = vmatprep.subr.mxu0 0.0
    %1296 = vmatpush1.xpose.msra.mxu0 0.0
    %1297 = vmatprep.subr.mxu0 0.0
    %1298 = vmatpush1.xpose.msra.mxu0 0.0
    %1299 = vmatprep.subr.mxu0 0.0
    %1300 = vmatpush1.xpose.msra.mxu0 0.0
    %1301 = vmatprep.subr.mxu0 0.0
    %1302 = vmatpush1.xpose.msra.mxu0 0.0
    %1303 = vmatprep.subr.mxu0 0.0
    %1304 = vmatpush1.xpose.msra.mxu0 0.0
    %1305 = vmatprep.subr.mxu0 0.0
    %1306 = vmatpush1.xpose.msra.mxu0 0.0
    %1307 = vmatprep.subr.mxu0 0.0
    %1308 = vmatpush1.xpose.msra.mxu0 0.0
    %1309 = vmatprep.subr.mxu0 0.0
    %1310 = vmatpush1.xpose.msra.mxu0 0.0
    %1311 = vmatprep.subr.mxu0 0.0
    %1312 = vmatpush1.xpose.msra.mxu0 0.0
    %1313 = vmatprep.subr.mxu0 0.0
    %1314 = vmatpush1.xpose.msra.mxu0 0.0
    %1315 = vmatprep.subr.mxu0 0.0
    %1316 = vmatpush1.xpose.msra.mxu0 0.0
    %1317 = vmatprep.subr.mxu0 0.0
    %1318 = vmatpush1.xpose.msra.mxu0 0.0
    %1319 = vmatprep.subr.mxu0 0.0
    %1320 = vmatpush1.xpose.msra.mxu0 0.0
    %1321 = vmatprep.subr.mxu0 0.0
    %1322 = vmatpush1.xpose.msra.mxu0 0.0
    %1323 = vmatprep.subr.mxu0 0.0
    %1324 = vmatpush1.xpose.msra.mxu0 0.0
    %1325 = vmatprep.subr.mxu0 0.0
    %1326 = vmatpush1.xpose.msra.mxu0 0.0
    %1327 = vmatprep.subr.mxu0 0.0
    %1328 = vmatpush1.xpose.msra.mxu0 0.0
    %1329 = vmatprep.subr.mxu0 0.0
    %1330 = vmatpush1.xpose.msra.mxu0 0.0
    %1331 = vmatprep.subr.mxu0 0.0
    %1332 = vmatpush1.xpose.msra.mxu0 0.0
    %1333 = vmatprep.subr.mxu0 0.0
    %1334 = vmatpush1.xpose.msra.mxu0 0.0
    %1335 = vmatprep.subr.mxu0 0.0
    %1336 = vmatpush1.xpose.msra.mxu0 0.0
    %1337 = vmatprep.subr.mxu0 0.0
    %1338 = vmatpush1.xpose.msra.mxu0 0.0
    %1339 = vmatprep.subr.mxu0 0.0
    %1340 = vmatpush1.xpose.msra.mxu0 0.0
    %1341 = vmatprep.subr.mxu0 0.0
    %1342 = vmatpush1.xpose.msra.mxu0 0.0
    %1343 = vmatprep.subr.mxu0 0.0
    %1344 = vmatpush1.xpose.msra.mxu0 0.0
    %1345 = vmatprep.subr.mxu0 0.0
    %1346 = vmatpush1.xpose.msra.mxu0 0.0
    %1347 = vmatprep.subr.mxu0 0.0
    %1348 = vmatpush1.xpose.msra.mxu0 0.0
    %1349 = vmatprep.subr.mxu0 0.0
    %1350 = vmatpush1.xpose.msra.mxu0 0.0
    %1351 = vmatprep.subr.mxu0 0.0
    %1352 = vmatpush1.xpose.msra.mxu0 0.0
    %1353 = vmatprep.subr.mxu0 0.0
    %1354 = vmatpush1.xpose.msra.mxu0 0.0
    %1355 = vmatprep.subr.mxu0 0.0
    %1356 = vmatpush1.xpose.msra.mxu0 0.0
    %1357 = vmatprep.mubr.f32.mxu0 0.0
    %1358 = vmatmul.mubr.f32.gmra.mrb[0].mxu0 %v1289
    %v1359 = vpop.f32.mrb[0].mxu0
    %v1360 = vadd.f32 0.0, %v1359
    %v1361 = vpop.f32.mrb[0].mxu0
    %1362 = vdwg.mxu0
    %v1363 = vsel %vm361, %v1360, -inf
    %1364 = vmax.xlane.f32.xlu0 %v1363
    %v1365 = vpop.xlane.xlu0 %1364
    %v1366 = vsub.f32 %v1360, %v1365
    %v1367 = vmul.f32 %v1366, 1.442695
    %v1368 = vpow.pop %v1367
    %v1369 = vsel %vm361, %v1368, 0.0
    %1370 = vadd.xlane.f32.xlu0 %v1369
    %v1371 = vpop.xlane.xlu0 %1370
    %v1372 = vrcp.pop %v1371
    %v1373 = vmul.f32 %v1368, %v1372
    %1374 = vrot.lane.b32.xlu0 %v281, 64
    %v1375 = vpop.permute.xlu0 %1374
    %v1378 = vsel %vm361, %v1373, 0
    %1380 = vmatprep.subr.mxu0 0.0
    %1381 = vmatpush1.msra.mxu0 %v1375
    %1382 = vmatprep.subr.mxu0 0.0
    %1383 = vmatpush1.msra.mxu0 0.0
    %1384 = vmatprep.subr.mxu0 0.0
    %1385 = vmatpush1.msra.mxu0 0.0
    %1386 = vmatprep.subr.mxu0 0.0
    %1387 = vmatpush1.msra.mxu0 0.0
    %1388 = vmatprep.subr.mxu0 0.0
    %1389 = vmatpush1.msra.mxu0 0.0
    %1390 = vmatprep.subr.mxu0 0.0
    %1391 = vmatpush1.msra.mxu0 0.0
    %1392 = vmatprep.subr.mxu0 0.0
    %1393 = vmatpush1.msra.mxu0 0.0
    %1394 = vmatprep.subr.mxu0 0.0
    %1395 = vmatpush1.msra.mxu0 0.0
    %1396 = vmatprep.subr.mxu0 0.0
    %1397 = vmatpush1.msra.mxu0 0.0
    %1398 = vmatprep.subr.mxu0 0.0
    %1399 = vmatpush1.msra.mxu0 0.0
    %1400 = vmatprep.subr.mxu0 0.0
    %1401 = vmatpush1.msra.mxu0 0.0
    %1402 = vmatprep.subr.mxu0 0.0
    %1403 = vmatpush1.msra.mxu0 0.0
    %1404 = vmatprep.subr.mxu0 0.0
    %1405 = vmatpush1.msra.mxu0 0.0
    %1406 = vmatprep.subr.mxu0 0.0
    %1407 = vmatpush1.msra.mxu0 0.0
    %1408 = vmatprep.subr.mxu0 0.0
    %1409 = vmatpush1.msra.mxu0 0.0
    %1410 = vmatprep.subr.mxu0 0.0
    %1411 = vmatpush1.msra.mxu0 0.0
    %1412 = vmatprep.subr.mxu0 0.0
    %1413 = vmatpush1.msra.mxu0 0.0
    %1414 = vmatprep.subr.mxu0 0.0
    %1415 = vmatpush1.msra.mxu0 0.0
    %1416 = vmatprep.subr.mxu0 0.0
    %1417 = vmatpush1.msra.mxu0 0.0
    %1418 = vmatprep.subr.mxu0 0.0
    %1419 = vmatpush1.msra.mxu0 0.0
    %1420 = vmatprep.subr.mxu0 0.0
    %1421 = vmatpush1.msra.mxu0 0.0
    %1422 = vmatprep.subr.mxu0 0.0
    %1423 = vmatpush1.msra.mxu0 0.0
    %1424 = vmatprep.subr.mxu0 0.0
    %1425 = vmatpush1.msra.mxu0 0.0
    %1426 = vmatprep.subr.mxu0 0.0
    %1427 = vmatpush1.msra.mxu0 0.0
    %1428 = vmatprep.subr.mxu0 0.0
    %1429 = vmatpush1.msra.mxu0 0.0
    %1430 = vmatprep.subr.mxu0 0.0
    %1431 = vmatpush1.msra.mxu0 0.0
    %1432 = vmatprep.subr.mxu0 0.0
    %1433 = vmatpush1.msra.mxu0 0.0
    %1434 = vmatprep.subr.mxu0 0.0
    %1435 = vmatpush1.msra.mxu0 0.0
    %1436 = vmatprep.subr.mxu0 0.0
    %1437 = vmatpush1.msra.mxu0 0.0
    %1438 = vmatprep.subr.mxu0 0.0
    %1439 = vmatpush1.msra.mxu0 0.0
    %1440 = vmatprep.subr.mxu0 0.0
    %1441 = vmatpush1.msra.mxu0 0.0
    %1442 = vmatprep.subr.mxu0 0.0
    %1443 = vmatpush1.msra.mxu0 0.0
    %1444 = vmatprep.mubr.f32.mxu0 0.0
    %1445 = vmatmul.mubr.f32.gmra.mrb[0].mxu0 %v1378
    %v1446 = vpop.f32.mrb[0].mxu0
    %v1447 = vadd.f32 0.0, %v1446
    %v1448 = vpop.f32.mrb[0].mxu0
    %1449 = vdwg.mxu0
    %1450 = vrot.lane.b32.xlu0 %v205, 32
    %v1451 = vpop.permute.xlu0 %1450
    %1452 = vrot.lane.b32.xlu0 %v207, 32
    %v1453 = vpop.permute.xlu0 %1452
    %v1454 = vsel %vm284, %v1451, 0
    %v1456 = vsel %vm284, %v1453, 0
    %1458 = vmatprep.subr.mxu0 0.0
    %1459 = vmatpush1.xpose.msra.mxu0 %v1456
    %1460 = vmatprep.subr.mxu0 0.0
    %1461 = vmatpush1.xpose.msra.mxu0 0.0
    %1462 = vmatprep.subr.mxu0 0.0
    %1463 = vmatpush1.xpose.msra.mxu0 0.0
    %1464 = vmatprep.subr.mxu0 0.0
    %1465 = vmatpush1.xpose.msra.mxu0 0.0
    %1466 = vmatprep.subr.mxu0 0.0
    %1467 = vmatpush1.xpose.msra.mxu0 0.0
    %1468 = vmatprep.subr.mxu0 0.0
    %1469 = vmatpush1.xpose.msra.mxu0 0.0
    %1470 = vmatprep.subr.mxu0 0.0
    %1471 = vmatpush1.xpose.msra.mxu0 0.0
    %1472 = vmatprep.subr.mxu0 0.0
    %1473 = vmatpush1.xpose.msra.mxu0 0.0
    %1474 = vmatprep.subr.mxu0 0.0
    %1475 = vmatpush1.xpose.msra.mxu0 0.0
    %1476 = vmatprep.subr.mxu0 0.0
    %1477 = vmatpush1.xpose.msra.mxu0 0.0
    %1478 = vmatprep.subr.mxu0 0.0
    %1479 = vmatpush1.xpose.msra.mxu0 0.0
    %1480 = vmatprep.subr.mxu0 0.0
    %1481 = vmatpush1.xpose.msra.mxu0 0.0
    %1482 = vmatprep.subr.mxu0 0.0
    %1483 = vmatpush1.xpose.msra.mxu0 0.0
    %1484 = vmatprep.subr.mxu0 0.0
    %1485 = vmatpush1.xpose.msra.mxu0 0.0
    %1486 = vmatprep.subr.mxu0 0.0
    %1487 = vmatpush1.xpose.msra.mxu0 0.0
    %1488 = vmatprep.subr.mxu0 0.0
    %1489 = vmatpush1.xpose.msra.mxu0 0.0
    %1490 = vmatprep.subr.mxu0 0.0
    %1491 = vmatpush1.xpose.msra.mxu0 0.0
    %1492 = vmatprep.subr.mxu0 0.0
    %1493 = vmatpush1.xpose.msra.mxu0 0.0
    %1494 = vmatprep.subr.mxu0 0.0
    %1495 = vmatpush1.xpose.msra.mxu0 0.0
    %1496 = vmatprep.subr.mxu0 0.0
    %1497 = vmatpush1.xpose.msra.mxu0 0.0
    %1498 = vmatprep.subr.mxu0 0.0
    %1499 = vmatpush1.xpose.msra.mxu0 0.0
    %1500 = vmatprep.subr.mxu0 0.0
    %1501 = vmatpush1.xpose.msra.mxu0 0.0
    %1502 = vmatprep.subr.mxu0 0.0
    %1503 = vmatpush1.xpose.msra.mxu0 0.0
    %1504 = vmatprep.subr.mxu0 0.0
    %1505 = vmatpush1.xpose.msra.mxu0 0.0
    %1506 = vmatprep.subr.mxu0 0.0
    %1507 = vmatpush1.xpose.msra.mxu0 0.0
    %1508 = vmatprep.subr.mxu0 0.0
    %1509 = vmatpush1.xpose.msra.mxu0 0.0
    %1510 = vmatprep.subr.mxu0 0.0
    %1511 = vmatpush1.xpose.msra.mxu0 0.0
    %1512 = vmatprep.subr.mxu0 0.0
    %1513 = vmatpush1.xpose.msra.mxu0 0.0
    %1514 = vmatprep.subr.mxu0 0.0
    %1515 = vmatpush1.xpose.msra.mxu0 0.0
    %1516 = vmatprep.subr.mxu0 0.0
    %1517 = vmatpush1.xpose.msra.mxu0 0.0
    %1518 = vmatprep.subr.mxu0 0.0
    %1519 = vmatpush1.xpose.msra.mxu0 0.0
    %1520 = vmatprep.subr.mxu0 0.0
    %1521 = vmatpush1.xpose.msra.mxu0 0.0
    %1522 = vmatprep.mubr.f32.mxu0 0.0
    %1523 = vmatmul.mubr.f32.gmra.mrb[0].mxu0 %v1454
    %v1524 = vpop.f32.mrb[0].mxu0
    %v1525 = vadd.f32 0.0, %v1524
    %v1526 = vpop.f32.mrb[0].mxu0
    %1527 = vdwg.mxu0
    %v1528 = vsel %vm361, %v1525, -inf
    %1529 = vmax.xlane.f32.xlu0 %v1528
    %v1530 = vpop.xlane.xlu0 %1529
    %v1531 = vsub.f32 %v1525, %v1530
    %v1532 = vmul.f32 %v1531, 1.442695
    %v1533 = vpow.pop %v1532
    %v1534 = vsel %vm361, %v1533, 0.0
    %1535 = vadd.xlane.f32.xlu0 %v1534
    %v1536 = vpop.xlane.xlu0 %1535
    %v1537 = vrcp.pop %v1536
    %v1538 = vmul.f32 %v1533, %v1537
    %1539 = vrot.lane.b32.xlu0 %v281, 32
    %v1540 = vpop.permute.xlu0 %1539
    %v1543 = vsel %vm361, %v1538, 0
    %1545 = vmatprep.subr.mxu0 0.0
    %1546 = vmatpush1.msra.mxu0 %v1540
    %1547 = vmatprep.subr.mxu0 0.0
    %1548 = vmatpush1.msra.mxu0 0.0
    %1549 = vmatprep.subr.mxu0 0.0
    %1550 = vmatpush1.msra.mxu0 0.0
    %1551 = vmatprep.subr.mxu0 0.0
    %1552 = vmatpush1.msra.mxu0 0.0
    %1553 = vmatprep.subr.mxu0 0.0
    %1554 = vmatpush1.msra.mxu0 0.0
    %1555 = vmatprep.subr.mxu0 0.0
    %1556 = vmatpush1.msra.mxu0 0.0
    %1557 = vmatprep.subr.mxu0 0.0
    %1558 = vmatpush1.msra.mxu0 0.0
    %1559 = vmatprep.subr.mxu0 0.0
    %1560 = vmatpush1.msra.mxu0 0.0
    %1561 = vmatprep.subr.mxu0 0.0
    %1562 = vmatpush1.msra.mxu0 0.0
    %1563 = vmatprep.subr.mxu0 0.0
    %1564 = vmatpush1.msra.mxu0 0.0
    %1565 = vmatprep.subr.mxu0 0.0
    %1566 = vmatpush1.msra.mxu0 0.0
    %1567 = vmatprep.subr.mxu0 0.0
    %1568 = vmatpush1.msra.mxu0 0.0
    %1569 = vmatprep.subr.mxu0 0.0
    %1570 = vmatpush1.msra.mxu0 0.0
    %1571 = vmatprep.subr.mxu0 0.0
    %1572 = vmatpush1.msra.mxu0 0.0
    %1573 = vmatprep.subr.mxu0 0.0
    %1574 = vmatpush1.msra.mxu0 0.0
    %1575 = vmatprep.subr.mxu0 0.0
    %1576 = vmatpush1.msra.mxu0 0.0
    %1577 = vmatprep.subr.mxu0 0.0
    %1578 = vmatpush1.msra.mxu0 0.0
    %1579 = vmatprep.subr.mxu0 0.0
    %1580 = vmatpush1.msra.mxu0 0.0
    %1581 = vmatprep.subr.mxu0 0.0
    %1582 = vmatpush1.msra.mxu0 0.0
    %1583 = vmatprep.subr.mxu0 0.0
    %1584 = vmatpush1.msra.mxu0 0.0
    %1585 = vmatprep.subr.mxu0 0.0
    %1586 = vmatpush1.msra.mxu0 0.0
    %1587 = vmatprep.subr.mxu0 0.0
    %1588 = vmatpush1.msra.mxu0 0.0
    %1589 = vmatprep.subr.mxu0 0.0
    %1590 = vmatpush1.msra.mxu0 0.0
    %1591 = vmatprep.subr.mxu0 0.0
    %1592 = vmatpush1.msra.mxu0 0.0
    %1593 = vmatprep.subr.mxu0 0.0
    %1594 = vmatpush1.msra.mxu0 0.0
    %1595 = vmatprep.subr.mxu0 0.0
    %1596 = vmatpush1.msra.mxu0 0.0
    %1597 = vmatprep.subr.mxu0 0.0
    %1598 = vmatpush1.msra.mxu0 0.0
    %1599 = vmatprep.subr.mxu0 0.0
    %1600 = vmatpush1.msra.mxu0 0.0
    %1601 = vmatprep.subr.mxu0 0.0
    %1602 = vmatpush1.msra.mxu0 0.0
    %1603 = vmatprep.subr.mxu0 0.0
    %1604 = vmatpush1.msra.mxu0 0.0
    %1605 = vmatprep.subr.mxu0 0.0
    %1606 = vmatpush1.msra.mxu0 0.0
    %1607 = vmatprep.subr.mxu0 0.0
    %1608 = vmatpush1.msra.mxu0 0.0
    %1609 = vmatprep.mubr.f32.mxu0 0.0
    %1610 = vmatmul.mubr.f32.gmra.mrb[0].mxu0 %v1543
    %v1611 = vpop.f32.mrb[0].mxu0
    %v1612 = vadd.f32 0.0, %v1611
    %v1613 = vpop.f32.mrb[0].mxu0
    %1614 = vdwg.mxu0
    %1616 = vrot.lane.b32.xlu0 %v1282, 32
    %v1617 = vpop.permute.xlu0 %1616
    %1620 = vrot.lane.b32.xlu0 %v1447, 64
    %v1621 = vpop.permute.xlu0 %1620
    %1624 = vrot.lane.b32.xlu0 %v1612, 96
    %v1625 = vpop.permute.xlu0 %1624
    %v1627 = vsel %vm284, %v1116, %v1617
    %v1628 = vsel %vm955, %v1627, %v1621
    %v1629 = vsel %vm957, %v1628, %v1625
    %v1630 = vld [vmem:[%s3] sm:$0x1]
    %v1631 = vld [vmem:[%s4] sm:$0x1]
    %1632 = vadd.xlane.f32.xlu0 %v958
    %v1633 = vpop.xlane.xlu0 %1632
    %1634 = vadd.xlane.f32.xlu0 %v1629
    %v1635 = vpop.xlane.xlu0 %1634
    %v1636 = vrcp.pop 128.0
    %v1637 = vmul.f32 %v1633, %v1636
    %v1638 = vmul.f32 %v1635, %v1636
    %v1639 = vsub.f32 %v958, %v1637
    %v1640 = vsub.f32 %v1629, %v1638
    %v1641 = vmul.f32 %v1639, %v1639
    %v1642 = vmul.f32 %v1640, %v1640
    %1643 = vadd.xlane.f32.xlu0 %v1641
    %v1644 = vpop.xlane.xlu0 %1643
    %1645 = vadd.xlane.f32.xlu0 %v1642
    %v1646 = vpop.xlane.xlu0 %1645
    %v1647 = vmul.f32 %v1644, %v1636
    %v1648 = vmul.f32 %v1646, %v1636
    %v1649 = vadd.f32 %v1647, 1e-05
    %v1650 = vadd.f32 %v1648, 1e-05
    %v1651 = vrsqrt.pop %v1649
    %v1652 = vrsqrt.pop %v1650
    %v1653 = vmul.f32 %v1639, %v1651
    %v1654 = vmul.f32 %v1640, %v1652
    %v1656 = vlaneseq
    %v1657 = vshrl.u32 %v1656, 7
    %v1658 = vsub.s32 0, %v1657
    %v1659 = vrot.slane %v1630, %v1658
    %v1661 = vmul.f32 %v1653, %v1659
    %v1662 = vmul.f32 %v1654, %v1659
    %v1664 = vlaneseq
    %v1665 = vshrl.u32 %v1664, 7
    %v1666 = vsub.s32 0, %v1665
    %v1667 = vrot.slane %v1631, %v1666
    %v1669 = vadd.f32 %v1661, %v1667
    %v1670 = vadd.f32 %v1662, %v1667
    %v1671 = vld [vmem:[#allocation2] sm:$0xff]
    %v1672 = vld [vmem:[#allocation2 + $0x8] sm:$0xff]
    %v1673 = vld [vmem:[#allocation2 + $0x10] sm:$0xff]
    %v1674 = vld [vmem:[#allocation2 + $0x18] sm:$0xff]
    %v1675 = vld [vmem:[#allocation2 + $0x20] sm:$0xff]
    %v1676 = vld [vmem:[#allocation2 + $0x28] sm:$0xff]
    %v1677 = vld [vmem:[#allocation2 + $0x30] sm:$0xff]
    %v1678 = vld [vmem:[#allocation2 + $0x38] sm:$0xff]
    %v1679 = vld [vmem:[#allocation2 + $0x40] sm:$0xff]
    %v1680 = vld [vmem:[#allocation2 + $0x48] sm:$0xff]
    %v1681 = vld [vmem:[#allocation2 + $0x50] sm:$0xff]
    %v1682 = vld [vmem:[#allocation2 + $0x58] sm:$0xff]
    %v1683 = vld [vmem:[#allocation2 + $0x60] sm:$0xff]
    %v1684 = vld [vmem:[#allocation2 + $0x68] sm:$0xff]
    %v1685 = vld [vmem:[#allocation2 + $0x70] sm:$0xff]
    %v1686 = vld [vmem:[#allocation2 + $0x78] sm:$0xff]
    %v1687 = vld [vmem:[%s6] sm:$0x1]
    %v1689 = vlaneseq
    %v1690 = vshrl.u32 %v1689, 7
    %v1691 = vsub.s32 0, %v1690
    %v1692 = vrot.slane %v1687, %v1691
    %1694 = vmatprep.subr.mxu0 0.0
    %1695 = vmatpush1.msra.mxu0 %v1671
    %1696 = vmatprep.subr.mxu0 0.0
    %1697 = vmatpush1.msra.mxu0 %v1672
    %1698 = vmatprep.subr.mxu0 0.0
    %1699 = vmatpush1.msra.mxu0 %v1673
    %1700 = vmatprep.subr.mxu0 0.0
    %1701 = vmatpush1.msra.mxu0 %v1674
    %1702 = vmatprep.subr.mxu0 0.0
    %1703 = vmatpush1.msra.mxu0 %v1675
    %1704 = vmatprep.subr.mxu0 0.0
    %1705 = vmatpush1.msra.mxu0 %v1676
    %1706 = vmatprep.subr.mxu0 0.0
    %1707 = vmatpush1.msra.mxu0 %v1677
    %1708 = vmatprep.subr.mxu0 0.0
    %1709 = vmatpush1.msra.mxu0 %v1678
    %1710 = vmatprep.subr.mxu0 0.0
    %1711 = vmatpush1.msra.mxu0 %v1679
    %1712 = vmatprep.subr.mxu0 0.0
    %1713 = vmatpush1.msra.mxu0 %v1680
    %1714 = vmatprep.subr.mxu0 0.0
    %1715 = vmatpush1.msra.mxu0 %v1681
    %1716 = vmatprep.subr.mxu0 0.0
    %1717 = vmatpush1.msra.mxu0 %v1682
    %1718 = vmatprep.subr.mxu0 0.0
    %1719 = vmatpush1.msra.mxu0 %v1683
    %1720 = vmatprep.subr.mxu0 0.0
    %1721 = vmatpush1.msra.mxu0 %v1684
    %1722 = vmatprep.subr.mxu0 0.0
    %1723 = vmatpush1.msra.mxu0 %v1685
    %1724 = vmatprep.subr.mxu0 0.0
    %1725 = vmatpush1.msra.mxu0 %v1686
    %1726 = vmatprep.subr.mxu0 0.0
    %1727 = vmatpush1.msra.mxu0 0.0
    %1728 = vmatprep.subr.mxu0 0.0
    %1729 = vmatpush1.msra.mxu0 0.0
    %1730 = vmatprep.subr.mxu0 0.0
    %1731 = vmatpush1.msra.mxu0 0.0
    %1732 = vmatprep.subr.mxu0 0.0
    %1733 = vmatpush1.msra.mxu0 0.0
    %1734 = vmatprep.subr.mxu0 0.0
    %1735 = vmatpush1.msra.mxu0 0.0
    %1736 = vmatprep.subr.mxu0 0.0
    %1737 = vmatpush1.msra.mxu0 0.0
    %1738 = vmatprep.subr.mxu0 0.0
    %1739 = vmatpush1.msra.mxu0 0.0
    %1740 = vmatprep.subr.mxu0 0.0
    %1741 = vmatpush1.msra.mxu0 0.0
    %1742 = vmatprep.subr.mxu0 0.0
    %1743 = vmatpush1.msra.mxu0 0.0
    %1744 = vmatprep.subr.mxu0 0.0
    %1745 = vmatpush1.msra.mxu0 0.0
    %1746 = vmatprep.subr.mxu0 0.0
    %1747 = vmatpush1.msra.mxu0 0.0
    %1748 = vmatprep.subr.mxu0 0.0
    %1749 = vmatpush1.msra.mxu0 0.0
    %1750 = vmatprep.subr.mxu0 0.0
    %1751 = vmatpush1.msra.mxu0 0.0
    %1752 = vmatprep.subr.mxu0 0.0
    %1753 = vmatpush1.msra.mxu0 0.0
    %1754 = vmatprep.subr.mxu0 0.0
    %1755 = vmatpush1.msra.mxu0 0.0
    %1756 = vmatprep.subr.mxu0 0.0
    %1757 = vmatpush1.msra.mxu0 0.0
    %1758 = vmatprep.mubr.f32.mxu0 0.0
    %1759 = vmatmul.mubr.f32.gmra.mrb[0].mxu0 %v1669
    %v1760 = vpop.f32.mrb[0].mxu0
    %v1761 = vadd.f32 %v1692, %v1760
    %v1762 = vpop.f32.mrb[0].mxu0
    %1763 = vmatprep.mubr.f32.mxu0 0.0
    %1764 = vmatmul.mubr.f32.gmra.mrb[0].mxu0 %v1670
    %v1765 = vpop.f32.mrb[0].mxu0
    %v1766 = vadd.f32 %v1692, %v1765
    %v1767 = vpop.f32.mrb[0].mxu0
    %1768 = vdwg.mxu0
    %v1769 = vadd.f32 %v1761, %v65
    %v1770 = vadd.f32 %v1766, %v66
    %v1771 = vld [vmem:[%s7] sm:$0x1]
    %v1772 = vld [vmem:[%s8] sm:$0x1]
    %1773 = vadd.xlane.f32.xlu0 %v1769
    %v1774 = vpop.xlane.xlu0 %1773
    %1775 = vadd.xlane.f32.xlu0 %v1770
    %v1776 = vpop.xlane.xlu0 %1775
    %v1777 = vmul.f32 %v1774, %v1636
    %v1778 = vmul.f32 %v1776, %v1636
    %v1779 = vsub.f32 %v1769, %v1777
    %v1780 = vsub.f32 %v1770, %v1778
    %v1781 = vmul.f32 %v1779, %v1779
    %v1782 = vmul.f32 %v1780, %v1780
    %1783 = vadd.xlane.f32.xlu0 %v1781
    %v1784 = vpop.xlane.xlu0 %1783
    %1785 = vadd.xlane.f32.xlu0 %v1782
    %v1786 = vpop.xlane.xlu0 %1785
    %v1787 = vmul.f32 %v1784, %v1636
    %v1788 = vmul.f32 %v1786, %v1636
    %v1789 = vadd.f32 %v1787, 1e-05
    %v1790 = vadd.f32 %v1788, 1e-05
    %v1791 = vrsqrt.pop %v1789
    %v1792 = vrsqrt.pop %v1790
    %v1793 = vmul.f32 %v1779, %v1791
    %v1794 = vmul.f32 %v1780, %v1792
    %v1796 = vlaneseq
    %v1797 = vshrl.u32 %v1796, 7
    %v1798 = vsub.s32 0, %v1797
    %v1799 = vrot.slane %v1771, %v1798
    %v1801 = vmul.f32 %v1793, %v1799
    %v1802 = vmul.f32 %v1794, %v1799
    %v1804 = vlaneseq
    %v1805 = vshrl.u32 %v1804, 7
    %v1806 = vsub.s32 0, %v1805
    %v1807 = vrot.slane %v1772, %v1806
    %v1809 = vadd.f32 %v1801, %v1807
    %v1810 = vadd.f32 %v1802, %v1807
    %v1811 = vld [vmem:[%s9] sm:$0xff]
    %v1812 = vld [vmem:[%s9 + $0x8] sm:$0xff]
    %v1813 = vld [vmem:[%s9 + $0x10] sm:$0xff]
    %v1814 = vld [vmem:[%s9 + $0x18] sm:$0xff]
    %v1815 = vld [vmem:[%s9 + $0x20] sm:$0xff]
    %v1816 = vld [vmem:[%s9 + $0x28] sm:$0xff]
    %v1817 = vld [vmem:[%s9 + $0x30] sm:$0xff]
    %v1818 = vld [vmem:[%s9 + $0x38] sm:$0xff]
    %v1819 = vld [vmem:[%s9 + $0x40] sm:$0xff]
    %v1820 = vld [vmem:[%s9 + $0x48] sm:$0xff]
    %v1821 = vld [vmem:[%s9 + $0x50] sm:$0xff]
    %v1822 = vld [vmem:[%s9 + $0x58] sm:$0xff]
    %v1823 = vld [vmem:[%s9 + $0x60] sm:$0xff]
    %v1824 = vld [vmem:[%s9 + $0x68] sm:$0xff]
    %v1825 = vld [vmem:[%s9 + $0x70] sm:$0xff]
    %v1826 = vld [vmem:[%s9 + $0x78] sm:$0xff]
    %v1827 = vld [vmem:[%s9 + $0x80] sm:$0xff]
    %v1828 = vld [vmem:[%s9 + $0x88] sm:$0xff]
    %v1829 = vld [vmem:[%s9 + $0x90] sm:$0xff]
    %v1830 = vld [vmem:[%s9 + $0x98] sm:$0xff]
    %v1831 = vld [vmem:[%s9 + $0xa0] sm:$0xff]
    %v1832 = vld [vmem:[%s9 + $0xa8] sm:$0xff]
    %v1833 = vld [vmem:[%s9 + $0xb0] sm:$0xff]
    %v1834 = vld [vmem:[%s9 + $0xb8] sm:$0xff]
    %v1835 = vld [vmem:[%s9 + $0xc0] sm:$0xff]
    %v1836 = vld [vmem:[%s9 + $0xc8] sm:$0xff]
    %v1837 = vld [vmem:[%s9 + $0xd0] sm:$0xff]
    %v1838 = vld [vmem:[%s9 + $0xd8] sm:$0xff]
    %v1839 = vld [vmem:[%s9 + $0xe0] sm:$0xff]
    %v1840 = vld [vmem:[%s9 + $0xe8] sm:$0xff]
    %v1841 = vld [vmem:[%s9 + $0xf0] sm:$0xff]
    %v1842 = vld [vmem:[%s9 + $0xf8] sm:$0xff]
    %v1843 = vld [vmem:[%s9 + $0x100] sm:$0xff]
    %v1844 = vld [vmem:[%s9 + $0x108] sm:$0xff]
    %v1845 = vld [vmem:[%s9 + $0x110] sm:$0xff]
    %v1846 = vld [vmem:[%s9 + $0x118] sm:$0xff]
    %v1847 = vld [vmem:[%s9 + $0x120] sm:$0xff]
    %v1848 = vld [vmem:[%s9 + $0x128] sm:$0xff]
    %v1849 = vld [vmem:[%s9 + $0x130] sm:$0xff]
    %v1850 = vld [vmem:[%s9 + $0x138] sm:$0xff]
    %v1851 = vld [vmem:[%s9 + $0x140] sm:$0xff]
    %v1852 = vld [vmem:[%s9 + $0x148] sm:$0xff]
    %v1853 = vld [vmem:[%s9 + $0x150] sm:$0xff]
    %v1854 = vld [vmem:[%s9 + $0x158] sm:$0xff]
    %v1855 = vld [vmem:[%s9 + $0x160] sm:$0xff]
    %v1856 = vld [vmem:[%s9 + $0x168] sm:$0xff]
    %v1857 = vld [vmem:[%s9 + $0x170] sm:$0xff]
    %v1858 = vld [vmem:[%s9 + $0x178] sm:$0xff]
    %v1859 = vld [vmem:[%s9 + $0x180] sm:$0xff]
    %v1860 = vld [vmem:[%s9 + $0x188] sm:$0xff]
    %v1861 = vld [vmem:[%s9 + $0x190] sm:$0xff]
    %v1862 = vld [vmem:[%s9 + $0x198] sm:$0xff]
    %v1863 = vld [vmem:[%s9 + $0x1a0] sm:$0xff]
    %v1864 = vld [vmem:[%s9 + $0x1a8] sm:$0xff]
    %v1865 = vld [vmem:[%s9 + $0x1b0] sm:$0xff]
    %v1866 = vld [vmem:[%s9 + $0x1b8] sm:$0xff]
    %v1867 = vld [vmem:[%s9 + $0x1c0] sm:$0xff]
    %v1868 = vld [vmem:[%s9 + $0x1c8] sm:$0xff]
    %v1869 = vld [vmem:[%s9 + $0x1d0] sm:$0xff]
    %v1870 = vld [vmem:[%s9 + $0x1d8] sm:$0xff]
    %v1871 = vld [vmem:[%s9 + $0x1e0] sm:$0xff]
    %v1872 = vld [vmem:[%s9 + $0x1e8] sm:$0xff]
    %v1873 = vld [vmem:[%s9 + $0x1f0] sm:$0xff]
    %v1874 = vld [vmem:[%s9 + $0x1f8] sm:$0xff]
    %v1875 = vld [vmem:[%s10] sm:$0xf]
    %v1877 = vlaneseq
    %v1878 = vshrl.u32 %v1877, 7
    %v1879 = vsub.s32 0, %v1878
    %v1880 = vrot.slane %v1875, %v1879
    %v1881 = vlaneseq
    %v1882 = vshrl.u32 %v1881, 7
    %v1883 = vsub.s32 1, %v1882
    %v1884 = vrot.slane %v1875, %v1883
    %v1885 = vlaneseq
    %v1886 = vshrl.u32 %v1885, 7
    %v1887 = vsub.s32 2, %v1886
    %v1888 = vrot.slane %v1875, %v1887
    %v1889 = vlaneseq
    %v1890 = vshrl.u32 %v1889, 7
    %v1891 = vsub.s32 3, %v1890
    %v1892 = vrot.slane %v1875, %v1891
    %1897 = vmatprep.subr.mxu0 %v1812
    %1898 = vmatpush1.msra.mxu0 %v1811
    %1899 = vmatprep.subr.mxu0 %v1816
    %1900 = vmatpush1.msra.mxu0 %v1815
    %1901 = vmatprep.subr.mxu0 %v1820
    %1902 = vmatpush1.msra.mxu0 %v1819
    %1903 = vmatprep.subr.mxu0 %v1824
    %1904 = vmatpush1.msra.mxu0 %v1823
    %1905 = vmatprep.subr.mxu0 %v1828
    %1906 = vmatpush1.msra.mxu0 %v1827
    %1907 = vmatprep.subr.mxu0 %v1832
    %1908 = vmatpush1.msra.mxu0 %v1831
    %1909 = vmatprep.subr.mxu0 %v1836
    %1910 = vmatpush1.msra.mxu0 %v1835
    %1911 = vmatprep.subr.mxu0 %v1840
    %1912 = vmatpush1.msra.mxu0 %v1839
    %1913 = vmatprep.subr.mxu0 %v1844
    %1914 = vmatpush1.msra.mxu0 %v1843
    %1915 = vmatprep.subr.mxu0 %v1848
    %1916 = vmatpush1.msra.mxu0 %v1847
    %1917 = vmatprep.subr.mxu0 %v1852
    %1918 = vmatpush1.msra.mxu0 %v1851
    %1919 = vmatprep.subr.mxu0 %v1856
    %1920 = vmatpush1.msra.mxu0 %v1855
    %1921 = vmatprep.subr.mxu0 %v1860
    %1922 = vmatpush1.msra.mxu0 %v1859
    %1923 = vmatprep.subr.mxu0 %v1864
    %1924 = vmatpush1.msra.mxu0 %v1863
    %1925 = vmatprep.subr.mxu0 %v1868
    %1926 = vmatpush1.msra.mxu0 %v1867
    %1927 = vmatprep.subr.mxu0 %v1872
    %1928 = vmatpush1.msra.mxu0 %v1871
    %1929 = vmatprep.subr.mxu0 0.0
    %1930 = vmatpush1.msra.mxu0 0.0
    %1931 = vmatprep.subr.mxu0 0.0
    %1932 = vmatpush1.msra.mxu0 0.0
    %1933 = vmatprep.subr.mxu0 0.0
    %1934 = vmatpush1.msra.mxu0 0.0
    %1935 = vmatprep.subr.mxu0 0.0
    %1936 = vmatpush1.msra.mxu0 0.0
    %1937 = vmatprep.subr.mxu0 0.0
    %1938 = vmatpush1.msra.mxu0 0.0
    %1939 = vmatprep.subr.mxu0 0.0
    %1940 = vmatpush1.msra.mxu0 0.0
    %1941 = vmatprep.subr.mxu0 0.0
    %1942 = vmatpush1.msra.mxu0 0.0
    %1943 = vmatprep.subr.mxu0 0.0
    %1944 = vmatpush1.msra.mxu0 0.0
    %1945 = vmatprep.subr.mxu0 0.0
    %1946 = vmatpush1.msra.mxu0 0.0
    %1947 = vmatprep.subr.mxu0 0.0
    %1948 = vmatpush1.msra.mxu0 0.0
    %1949 = vmatprep.subr.mxu0 0.0
    %1950 = vmatpush1.msra.mxu0 0.0
    %1951 = vmatprep.subr.mxu0 0.0
    %1952 = vmatpush1.msra.mxu0 0.0
    %1953 = vmatprep.subr.mxu0 0.0
    %1954 = vmatpush1.msra.mxu0 0.0
    %1955 = vmatprep.subr.mxu0 0.0
    %1956 = vmatpush1.msra.mxu0 0.0
    %1957 = vmatprep.subr.mxu0 0.0
    %1958 = vmatpush1.msra.mxu0 0.0
    %1959 = vmatprep.subr.mxu0 0.0
    %1960 = vmatpush1.msra.mxu0 0.0
    %1961 = vmatprep.mubr.f32.mxu0 0.0
    %1962 = vmatmul.mubr.f32.gmra.mrb[0].mxu0 %v1809
    %v1963 = vpop.f32.mrb[0].mxu0
    %v1964 = vadd.f32 %v1880, %v1963
    %v1965 = vpop.f32.mrb[0].mxu0
    %v1966 = vadd.f32 %v1884, %v1965
    %1967 = vmatprep.mubr.f32.mxu0 0.0
    %1968 = vmatmul.mubr.f32.gmra.mrb[0].mxu0 %v1810
    %v1969 = vpop.f32.mrb[0].mxu0
    %v1970 = vadd.f32 %v1880, %v1969
    %v1971 = vpop.f32.mrb[0].mxu0
    %v1972 = vadd.f32 %v1884, %v1971
    %1973 = vdwg.mxu0
    %1974 = vmatprep.subr.mxu0 %v1814
    %1975 = vmatpush1.msra.mxu0 %v1813
    %1976 = vmatprep.subr.mxu0 %v1818
    %1977 = vmatpush1.msra.mxu0 %v1817
    %1978 = vmatprep.subr.mxu0 %v1822
    %1979 = vmatpush1.msra.mxu0 %v1821
    %1980 = vmatprep.subr.mxu0 %v1826
    %1981 = vmatpush1.msra.mxu0 %v1825
    %1982 = vmatprep.subr.mxu0 %v1830
    %1983 = vmatpush1.msra.mxu0 %v1829
    %1984 = vmatprep.subr.mxu0 %v1834
    %1985 = vmatpush1.msra.mxu0 %v1833
    %1986 = vmatprep.subr.mxu0 %v1838
    %1987 = vmatpush1.msra.mxu0 %v1837
    %1988 = vmatprep.subr.mxu0 %v1842
    %1989 = vmatpush1.msra.mxu0 %v1841
    %1990 = vmatprep.subr.mxu0 %v1846
    %1991 = vmatpush1.msra.mxu0 %v1845
    %1992 = vmatprep.subr.mxu0 %v1850
    %1993 = vmatpush1.msra.mxu0 %v1849
    %1994 = vmatprep.subr.mxu0 %v1854
    %1995 = vmatpush1.msra.mxu0 %v1853
    %1996 = vmatprep.subr.mxu0 %v1858
    %1997 = vmatpush1.msra.mxu0 %v1857
    %1998 = vmatprep.subr.mxu0 %v1862
    %1999 = vmatpush1.msra.mxu0 %v1861
    %2000 = vmatprep.subr.mxu0 %v1866
    %2001 = vmatpush1.msra.mxu0 %v1865
    %2002 = vmatprep.subr.mxu0 %v1870
    %2003 = vmatpush1.msra.mxu0 %v1869
    %2004 = vmatprep.subr.mxu0 %v1874
    %2005 = vmatpush1.msra.mxu0 %v1873
    %2006 = vmatprep.subr.mxu0 0.0
    %2007 = vmatpush1.msra.mxu0 0.0
    %2008 = vmatprep.subr.mxu0 0.0
    %2009 = vmatpush1.msra.mxu0 0.0
    %2010 = vmatprep.subr.mxu0 0.0
    %2011 = vmatpush1.msra.mxu0 0.0
    %2012 = vmatprep.subr.mxu0 0.0
    %2013 = vmatpush1.msra.mxu0 0.0
    %2014 = vmatprep.subr.mxu0 0.0
    %2015 = vmatpush1.msra.mxu0 0.0
    %2016 = vmatprep.subr.mxu0 0.0
    %2017 = vmatpush1.msra.mxu0 0.0
    %2018 = vmatprep.subr.mxu0 0.0
    %2019 = vmatpush1.msra.mxu0 0.0
    %2020 = vmatprep.subr.mxu0 0.0
    %2021 = vmatpush1.msra.mxu0 0.0
    %2022 = vmatprep.subr.mxu0 0.0
    %2023 = vmatpush1.msra.mxu0 0.0
    %2024 = vmatprep.subr.mxu0 0.0
    %2025 = vmatpush1.msra.mxu0 0.0
    %2026 = vmatprep.subr.mxu0 0.0
    %2027 = vmatpush1.msra.mxu0 0.0
    %2028 = vmatprep.subr.mxu0 0.0
    %2029 = vmatpush1.msra.mxu0 0.0
    %2030 = vmatprep.subr.mxu0 0.0
    %2031 = vmatpush1.msra.mxu0 0.0
    %2032 = vmatprep.subr.mxu0 0.0
    %2033 = vmatpush1.msra.mxu0 0.0
    %2034 = vmatprep.subr.mxu0 0.0
    %2035 = vmatpush1.msra.mxu0 0.0
    %2036 = vmatprep.subr.mxu0 0.0
    %2037 = vmatpush1.msra.mxu0 0.0
    %2038 = vmatprep.mubr.f32.mxu0 0.0
    %2039 = vmatmul.mubr.f32.gmra.mrb[0].mxu0 %v1809
    %v2040 = vpop.f32.mrb[0].mxu0
    %v2041 = vadd.f32 %v1888, %v2040
    %v2042 = vpop.f32.mrb[0].mxu0
    %v2043 = vadd.f32 %v1892, %v2042
    %2044 = vmatprep.mubr.f32.mxu0 0.0
    %2045 = vmatmul.mubr.f32.gmra.mrb[0].mxu0 %v1810
    %v2046 = vpop.f32.mrb[0].mxu0
    %v2047 = vadd.f32 %v1888, %v2046
    %v2048 = vpop.f32.mrb[0].mxu0
    %v2049 = vadd.f32 %v1892, %v2048
    %2050 = vdwg.mxu0
    %v2051 = vmul.f32 %v1964, 0.5
    %v2052 = vmul.f32 %v1966, 0.5
    %v2053 = vmul.f32 %v2041, 0.5
    %v2054 = vmul.f32 %v2043, 0.5
    %v2055 = vmul.f32 %v1970, 0.5
    %v2056 = vmul.f32 %v1972, 0.5
    %v2057 = vmul.f32 %v2047, 0.5
    %v2058 = vmul.f32 %v2049, 0.5
    %v2059 = vmul.f32 %v1964, 0.70710677
    %v2060 = vmul.f32 %v1966, 0.70710677
    %v2061 = vmul.f32 %v2041, 0.70710677
    %v2062 = vmul.f32 %v2043, 0.70710677
    %v2063 = vmul.f32 %v1970, 0.70710677
    %v2064 = vmul.f32 %v1972, 0.70710677
    %v2065 = vmul.f32 %v2047, 0.70710677
    %v2066 = vmul.f32 %v2049, 0.70710677
    %v2067 = vand.u32 2147483647, %v2059
    %v2068 = vand.u32 2147483647, %v2060
    %v2069 = vand.u32 2147483647, %v2061
    %v2070 = vand.u32 2147483647, %v2062
    %v2071 = vand.u32 2147483647, %v2063
    %v2072 = vand.u32 2147483647, %v2064
    %v2073 = vand.u32 2147483647, %v2065
    %v2074 = vand.u32 2147483647, %v2066
    %v2075 = vmul.f32 %v2067, 0.3275911
    %v2076 = vmul.f32 %v2068, 0.3275911
    %v2077 = vmul.f32 %v2069, 0.3275911
    %v2078 = vmul.f32 %v2070, 0.3275911
    %v2079 = vmul.f32 %v2071, 0.3275911
    %v2080 = vmul.f32 %v2072, 0.3275911
    %v2081 = vmul.f32 %v2073, 0.3275911
    %v2082 = vmul.f32 %v2074, 0.3275911
    %v2083 = vadd.f32 %v2075, 1.0
    %v2084 = vadd.f32 %v2076, 1.0
    %v2085 = vadd.f32 %v2077, 1.0
    %v2086 = vadd.f32 %v2078, 1.0
    %v2087 = vadd.f32 %v2079, 1.0
    %v2088 = vadd.f32 %v2080, 1.0
    %v2089 = vadd.f32 %v2081, 1.0
    %v2090 = vadd.f32 %v2082, 1.0
    %v2091 = vrcp.pop %v2083
    %v2092 = vmul.f32 1.0, %v2091
    %v2093 = vrcp.pop %v2084
    %v2094 = vmul.f32 1.0, %v2093
    %v2095 = vrcp.pop %v2085
    %v2096 = vmul.f32 1.0, %v2095
    %v2097 = vrcp.pop %v2086
    %v2098 = vmul.f32 1.0, %v2097
    %v2099 = vrcp.pop %v2087
    %v2100 = vmul.f32 1.0, %v2099
    %v2101 = vrcp.pop %v2088
    %v2102 = vmul.f32 1.0, %v2101
    %v2103 = vrcp.pop %v2089
    %v2104 = vmul.f32 1.0, %v2103
    %v2105 = vrcp.pop %v2090
    %v2106 = vmul.f32 1.0, %v2105
    %v2107 = vmul.f32 %v2092, 1.0614054
    %v2108 = vmul.f32 %v2094, 1.0614054
    %v2109 = vmul.f32 %v2096, 1.0614054
    %v2110 = vmul.f32 %v2098, 1.0614054
    %v2111 = vmul.f32 %v2100, 1.0614054
    %v2112 = vmul.f32 %v2102, 1.0614054
    %v2113 = vmul.f32 %v2104, 1.0614054
    %v2114 = vmul.f32 %v2106, 1.0614054
    %v2115 = vadd.f32 %v2107, -1.4531521
    %v2116 = vadd.f32 %v2108, -1.4531521
    %v2117 = vadd.f32 %v2109, -1.4531521
    %v2118 = vadd.f32 %v2110, -1.4531521
    %v2119 = vadd.f32 %v2111, -1.4531521
    %v2120 = vadd.f32 %v2112, -1.4531521
    %v2121 = vadd.f32 %v2113, -1.4531521
    %v2122 = vadd.f32 %v2114, -1.4531521
    %v2123 = vmul.f32 %v2115, %v2092
    %v2124 = vmul.f32 %v2116, %v2094
    %v2125 = vmul.f32 %v2117, %v2096
    %v2126 = vmul.f32 %v2118, %v2098
    %v2127 = vmul.f32 %v2119, %v2100
    %v2128 = vmul.f32 %v2120, %v2102
    %v2129 = vmul.f32 %v2121, %v2104
    %v2130 = vmul.f32 %v2122, %v2106
    %v2131 = vadd.f32 %v2123, 1.4214138
    %v2132 = vadd.f32 %v2124, 1.4214138
    %v2133 = vadd.f32 %v2125, 1.4214138
    %v2134 = vadd.f32 %v2126, 1.4214138
    %v2135 = vadd.f32 %v2127, 1.4214138
    %v2136 = vadd.f32 %v2128, 1.4214138
    %v2137 = vadd.f32 %v2129, 1.4214138
    %v2138 = vadd.f32 %v2130, 1.4214138
    %v2139 = vmul.f32 %v2131, %v2092
    %v2140 = vmul.f32 %v2132, %v2094
    %v2141 = vmul.f32 %v2133, %v2096
    %v2142 = vmul.f32 %v2134, %v2098
    %v2143 = vmul.f32 %v2135, %v2100
    %v2144 = vmul.f32 %v2136, %v2102
    %v2145 = vmul.f32 %v2137, %v2104
    %v2146 = vmul.f32 %v2138, %v2106
    %v2147 = vadd.f32 %v2139, -0.28449672
    %v2148 = vadd.f32 %v2140, -0.28449672
    %v2149 = vadd.f32 %v2141, -0.28449672
    %v2150 = vadd.f32 %v2142, -0.28449672
    %v2151 = vadd.f32 %v2143, -0.28449672
    %v2152 = vadd.f32 %v2144, -0.28449672
    %v2153 = vadd.f32 %v2145, -0.28449672
    %v2154 = vadd.f32 %v2146, -0.28449672
    %v2155 = vmul.f32 %v2147, %v2092
    %v2156 = vmul.f32 %v2148, %v2094
    %v2157 = vmul.f32 %v2149, %v2096
    %v2158 = vmul.f32 %v2150, %v2098
    %v2159 = vmul.f32 %v2151, %v2100
    %v2160 = vmul.f32 %v2152, %v2102
    %v2161 = vmul.f32 %v2153, %v2104
    %v2162 = vmul.f32 %v2154, %v2106
    %v2163 = vadd.f32 %v2155, 0.2548296
    %v2164 = vadd.f32 %v2156, 0.2548296
    %v2165 = vadd.f32 %v2157, 0.2548296
    %v2166 = vadd.f32 %v2158, 0.2548296
    %v2167 = vadd.f32 %v2159, 0.2548296
    %v2168 = vadd.f32 %v2160, 0.2548296
    %v2169 = vadd.f32 %v2161, 0.2548296
    %v2170 = vadd.f32 %v2162, 0.2548296
    %v2171 = vmul.f32 %v2163, %v2092
    %v2172 = vmul.f32 %v2164, %v2094
    %v2173 = vmul.f32 %v2165, %v2096
    %v2174 = vmul.f32 %v2166, %v2098
    %v2175 = vmul.f32 %v2167, %v2100
    %v2176 = vmul.f32 %v2168, %v2102
    %v2177 = vmul.f32 %v2169, %v2104
    %v2178 = vmul.f32 %v2170, %v2106
    %v2179 = vsub.f32 0.0, %v2067
    %v2180 = vsub.f32 0.0, %v2068
    %v2181 = vsub.f32 0.0, %v2069
    %v2182 = vsub.f32 0.0, %v2070
    %v2183 = vsub.f32 0.0, %v2071
    %v2184 = vsub.f32 0.0, %v2072
    %v2185 = vsub.f32 0.0, %v2073
    %v2186 = vsub.f32 0.0, %v2074
    %v2187 = vmul.f32 %v2179, %v2067
    %v2188 = vmul.f32 %v2180, %v2068
    %v2189 = vmul.f32 %v2181, %v2069
    %v2190 = vmul.f32 %v2182, %v2070
    %v2191 = vmul.f32 %v2183, %v2071
    %v2192 = vmul.f32 %v2184, %v2072
    %v2193 = vmul.f32 %v2185, %v2073
    %v2194 = vmul.f32 %v2186, %v2074
    %v2195 = vmul.f32 %v2187, 1.442695
    %v2196 = vpow.pop %v2195
    %v2197 = vmul.f32 %v2188, 1.442695
    %v2198 = vpow.pop %v2197
    %v2199 = vmul.f32 %v2189, 1.442695
    %v2200 = vpow.pop %v2199
    %v2201 = vmul.f32 %v2190, 1.442695
    %v2202 = vpow.pop %v2201
    %v2203 = vmul.f32 %v2191, 1.442695
    %v2204 = vpow.pop %v2203
    %v2205 = vmul.f32 %v2192, 1.442695
    %v2206 = vpow.pop %v2205
    %v2207 = vmul.f32 %v2193, 1.442695
    %v2208 = vpow.pop %v2207
    %v2209 = vmul.f32 %v2194, 1.442695
    %v2210 = vpow.pop %v2209
    %v2211 = vmul.f32 %v2171, %v2196
    %v2212 = vmul.f32 %v2172, %v2198
    %v2213 = vmul.f32 %v2173, %v2200
    %v2214 = vmul.f32 %v2174, %v2202
    %v2215 = vmul.f32 %v2175, %v2204
    %v2216 = vmul.f32 %v2176, %v2206
    %v2217 = vmul.f32 %v2177, %v2208
    %v2218 = vmul.f32 %v2178, %v2210
    %v2219 = vsub.f32 1.0, %v2211
    %v2220 = vsub.f32 1.0, %v2212
    %v2221 = vsub.f32 1.0, %v2213
    %v2222 = vsub.f32 1.0, %v2214
    %v2223 = vsub.f32 1.0, %v2215
    %v2224 = vsub.f32 1.0, %v2216
    %v2225 = vsub.f32 1.0, %v2217
    %v2226 = vsub.f32 1.0, %v2218
    %vm2227 = vcmp.ge.f32.partialorder %v2059, 0.0
    %vm2228 = vcmp.ge.f32.partialorder %v2060, 0.0
    %vm2229 = vcmp.ge.f32.partialorder %v2061, 0.0
    %vm2230 = vcmp.ge.f32.partialorder %v2062, 0.0
    %vm2231 = vcmp.ge.f32.partialorder %v2063, 0.0
    %vm2232 = vcmp.ge.f32.partialorder %v2064, 0.0
    %vm2233 = vcmp.ge.f32.partialorder %v2065, 0.0
    %vm2234 = vcmp.ge.f32.partialorder %v2066, 0.0
    %v2235 = vsub.f32 0.0, %v2219
    %v2236 = vsub.f32 0.0, %v2220
    %v2237 = vsub.f32 0.0, %v2221
    %v2238 = vsub.f32 0.0, %v2222
    %v2239 = vsub.f32 0.0, %v2223
    %v2240 = vsub.f32 0.0, %v2224
    %v2241 = vsub.f32 0.0, %v2225
    %v2242 = vsub.f32 0.0, %v2226
    %v2243 = vsel %vm2227, %v2219, %v2235
    %v2244 = vsel %vm2228, %v2220, %v2236
    %v2245 = vsel %vm2229, %v2221, %v2237
    %v2246 = vsel %vm2230, %v2222, %v2238
    %v2247 = vsel %vm2231, %v2223, %v2239
    %v2248 = vsel %vm2232, %v2224, %v2240
    %v2249 = vsel %vm2233, %v2225, %v2241
    %v2250 = vsel %vm2234, %v2226, %v2242
    %v2251 = vadd.f32 %v2243, 1.0
    %v2252 = vadd.f32 %v2244, 1.0
    %v2253 = vadd.f32 %v2245, 1.0
    %v2254 = vadd.f32 %v2246, 1.0
    %v2255 = vadd.f32 %v2247, 1.0
    %v2256 = vadd.f32 %v2248, 1.0
    %v2257 = vadd.f32 %v2249, 1.0
    %v2258 = vadd.f32 %v2250, 1.0
    %v2259 = vmul.f32 %v2051, %v2251
    %v2260 = vmul.f32 %v2052, %v2252
    %v2261 = vmul.f32 %v2053, %v2253
    %v2262 = vmul.f32 %v2054, %v2254
    %v2263 = vmul.f32 %v2055, %v2255
    %v2264 = vmul.f32 %v2056, %v2256
    %v2265 = vmul.f32 %v2057, %v2257
    %v2266 = vmul.f32 %v2058, %v2258
    %v2267 = vld [vmem:[%s11] sm:$0xff]
    %v2268 = vld [vmem:[%s11 + $0x8] sm:$0xff]
    %v2269 = vld [vmem:[%s11 + $0x10] sm:$0xff]
    %v2270 = vld [vmem:[%s11 + $0x18] sm:$0xff]
    %v2271 = vld [vmem:[%s11 + $0x20] sm:$0xff]
    %v2272 = vld [vmem:[%s11 + $0x28] sm:$0xff]
    %v2273 = vld [vmem:[%s11 + $0x30] sm:$0xff]
    %v2274 = vld [vmem:[%s11 + $0x38] sm:$0xff]
    %v2275 = vld [vmem:[%s11 + $0x40] sm:$0xff]
    %v2276 = vld [vmem:[%s11 + $0x48] sm:$0xff]
    %v2277 = vld [vmem:[%s11 + $0x50] sm:$0xff]
    %v2278 = vld [vmem:[%s11 + $0x58] sm:$0xff]
    %v2279 = vld [vmem:[%s11 + $0x60] sm:$0xff]
    %v2280 = vld [vmem:[%s11 + $0x68] sm:$0xff]
    %v2281 = vld [vmem:[%s11 + $0x70] sm:$0xff]
    %v2282 = vld [vmem:[%s11 + $0x78] sm:$0xff]
    %v2283 = vld [vmem:[%s11 + $0x80] sm:$0xff]
    %v2284 = vld [vmem:[%s11 + $0x88] sm:$0xff]
    %v2285 = vld [vmem:[%s11 + $0x90] sm:$0xff]
    %v2286 = vld [vmem:[%s11 + $0x98] sm:$0xff]
    %v2287 = vld [vmem:[%s11 + $0xa0] sm:$0xff]
    %v2288 = vld [vmem:[%s11 + $0xa8] sm:$0xff]
    %v2289 = vld [vmem:[%s11 + $0xb0] sm:$0xff]
    %v2290 = vld [vmem:[%s11 + $0xb8] sm:$0xff]
    %v2291 = vld [vmem:[%s11 + $0xc0] sm:$0xff]
    %v2292 = vld [vmem:[%s11 + $0xc8] sm:$0xff]
    %v2293 = vld [vmem:[%s11 + $0xd0] sm:$0xff]
    %v2294 = vld [vmem:[%s11 + $0xd8] sm:$0xff]
    %v2295 = vld [vmem:[%s11 + $0xe0] sm:$0xff]
    %v2296 = vld [vmem:[%s11 + $0xe8] sm:$0xff]
    %v2297 = vld [vmem:[%s11 + $0xf0] sm:$0xff]
    %v2298 = vld [vmem:[%s11 + $0xf8] sm:$0xff]
    %v2299 = vld [vmem:[%s11 + $0x100] sm:$0xff]
    %v2300 = vld [vmem:[%s11 + $0x108] sm:$0xff]
    %v2301 = vld [vmem:[%s11 + $0x110] sm:$0xff]
    %v2302 = vld [vmem:[%s11 + $0x118] sm:$0xff]
    %v2303 = vld [vmem:[%s11 + $0x120] sm:$0xff]
    %v2304 = vld [vmem:[%s11 + $0x128] sm:$0xff]
    %v2305 = vld [vmem:[%s11 + $0x130] sm:$0xff]
    %v2306 = vld [vmem:[%s11 + $0x138] sm:$0xff]
    %v2307 = vld [vmem:[%s11 + $0x140] sm:$0xff]
    %v2308 = vld [vmem:[%s11 + $0x148] sm:$0xff]
    %v2309 = vld [vmem:[%s11 + $0x150] sm:$0xff]
    %v2310 = vld [vmem:[%s11 + $0x158] sm:$0xff]
    %v2311 = vld [vmem:[%s11 + $0x160] sm:$0xff]
    %v2312 = vld [vmem:[%s11 + $0x168] sm:$0xff]
    %v2313 = vld [vmem:[%s11 + $0x170] sm:$0xff]
    %v2314 = vld [vmem:[%s11 + $0x178] sm:$0xff]
    %v2315 = vld [vmem:[%s11 + $0x180] sm:$0xff]
    %v2316 = vld [vmem:[%s11 + $0x188] sm:$0xff]
    %v2317 = vld [vmem:[%s11 + $0x190] sm:$0xff]
    %v2318 = vld [vmem:[%s11 + $0x198] sm:$0xff]
    %v2319 = vld [vmem:[%s11 + $0x1a0] sm:$0xff]
    %v2320 = vld [vmem:[%s11 + $0x1a8] sm:$0xff]
    %v2321 = vld [vmem:[%s11 + $0x1b0] sm:$0xff]
    %v2322 = vld [vmem:[%s11 + $0x1b8] sm:$0xff]
    %v2323 = vld [vmem:[%s11 + $0x1c0] sm:$0xff]
    %v2324 = vld [vmem:[%s11 + $0x1c8] sm:$0xff]
    %v2325 = vld [vmem:[%s11 + $0x1d0] sm:$0xff]
    %v2326 = vld [vmem:[%s11 + $0x1d8] sm:$0xff]
    %v2327 = vld [vmem:[%s11 + $0x1e0] sm:$0xff]
    %v2328 = vld [vmem:[%s11 + $0x1e8] sm:$0xff]
    %v2329 = vld [vmem:[%s11 + $0x1f0] sm:$0xff]
    %v2330 = vld [vmem:[%s11 + $0x1f8] sm:$0xff]
    %v2331 = vld [vmem:[%s12] sm:$0x1]
    %v2333 = vlaneseq
    %v2334 = vshrl.u32 %v2333, 7
    %v2335 = vsub.s32 0, %v2334
    %v2336 = vrot.slane %v2331, %v2335
    %2338 = vmatprep.subr.mxu0 0.0
    %2339 = vmatpush1.msra.mxu0 %v2267
    %2340 = vmatprep.subr.mxu0 0.0
    %2341 = vmatpush1.msra.mxu0 %v2268
    %2342 = vmatprep.subr.mxu0 0.0
    %2343 = vmatpush1.msra.mxu0 %v2269
    %2344 = vmatprep.subr.mxu0 0.0
    %2345 = vmatpush1.msra.mxu0 %v2270
    %2346 = vmatprep.subr.mxu0 0.0
    %2347 = vmatpush1.msra.mxu0 %v2271
    %2348 = vmatprep.subr.mxu0 0.0
    %2349 = vmatpush1.msra.mxu0 %v2272
    %2350 = vmatprep.subr.mxu0 0.0
    %2351 = vmatpush1.msra.mxu0 %v2273
    %2352 = vmatprep.subr.mxu0 0.0
    %2353 = vmatpush1.msra.mxu0 %v2274
    %2354 = vmatprep.subr.mxu0 0.0
    %2355 = vmatpush1.msra.mxu0 %v2275
    %2356 = vmatprep.subr.mxu0 0.0
    %2357 = vmatpush1.msra.mxu0 %v2276
    %2358 = vmatprep.subr.mxu0 0.0
    %2359 = vmatpush1.msra.mxu0 %v2277
    %2360 = vmatprep.subr.mxu0 0.0
    %2361 = vmatpush1.msra.mxu0 %v2278
    %2362 = vmatprep.subr.mxu0 0.0
    %2363 = vmatpush1.msra.mxu0 %v2279
    %2364 = vmatprep.subr.mxu0 0.0
    %2365 = vmatpush1.msra.mxu0 %v2280
    %2366 = vmatprep.subr.mxu0 0.0
    %2367 = vmatpush1.msra.mxu0 %v2281
    %2368 = vmatprep.subr.mxu0 0.0
    %2369 = vmatpush1.msra.mxu0 %v2282
    %2370 = vmatprep.subr.mxu0 0.0
    %2371 = vmatpush1.msra.mxu0 %v2283
    %2372 = vmatprep.subr.mxu0 0.0
    %2373 = vmatpush1.msra.mxu0 %v2284
    %2374 = vmatprep.subr.mxu0 0.0
    %2375 = vmatpush1.msra.mxu0 %v2285
    %2376 = vmatprep.subr.mxu0 0.0
    %2377 = vmatpush1.msra.mxu0 %v2286
    %2378 = vmatprep.subr.mxu0 0.0
    %2379 = vmatpush1.msra.mxu0 %v2287
    %2380 = vmatprep.subr.mxu0 0.0
    %2381 = vmatpush1.msra.mxu0 %v2288
    %2382 = vmatprep.subr.mxu0 0.0
    %2383 = vmatpush1.msra.mxu0 %v2289
    %2384 = vmatprep.subr.mxu0 0.0
    %2385 = vmatpush1.msra.mxu0 %v2290
    %2386 = vmatprep.subr.mxu0 0.0
    %2387 = vmatpush1.msra.mxu0 %v2291
    %2388 = vmatprep.subr.mxu0 0.0
    %2389 = vmatpush1.msra.mxu0 %v2292
    %2390 = vmatprep.subr.mxu0 0.0
    %2391 = vmatpush1.msra.mxu0 %v2293
    %2392 = vmatprep.subr.mxu0 0.0
    %2393 = vmatpush1.msra.mxu0 %v2294
    %2394 = vmatprep.subr.mxu0 0.0
    %2395 = vmatpush1.msra.mxu0 %v2295
    %2396 = vmatprep.subr.mxu0 0.0
    %2397 = vmatpush1.msra.mxu0 %v2296
    %2398 = vmatprep.subr.mxu0 0.0
    %2399 = vmatpush1.msra.mxu0 %v2297
    %2400 = vmatprep.subr.mxu0 0.0
    %2401 = vmatpush1.msra.mxu0 %v2298
    %2402 = vmatprep.mubr.f32.mxu0 %v2260
    %2403 = vmatmul.mubr.f32.gmra.mrb[0].mxu0 %v2259
    %v2404 = vpop.f32.mrb[0].mxu0
    %v2405 = vadd.f32 %v2336, %v2404
    %v2406 = vpop.f32.mrb[0].mxu0
    %2407 = vmatprep.mubr.f32.mxu0 %v2264
    %2408 = vmatmul.mubr.f32.gmra.mrb[0].mxu0 %v2263
    %v2409 = vpop.f32.mrb[0].mxu0
    %v2410 = vadd.f32 %v2336, %v2409
    %v2411 = vpop.f32.mrb[0].mxu0
    %2412 = vdwg.mxu0
    %2413 = vmatprep.subr.mxu0 0.0
    %2414 = vmatpush1.msra.mxu0 %v2299
    %2415 = vmatprep.subr.mxu0 0.0
    %2416 = vmatpush1.msra.mxu0 %v2300
    %2417 = vmatprep.subr.mxu0 0.0
    %2418 = vmatpush1.msra.mxu0 %v2301
    %2419 = vmatprep.subr.mxu0 0.0
    %2420 = vmatpush1.msra.mxu0 %v2302
    %2421 = vmatprep.subr.mxu0 0.0
    %2422 = vmatpush1.msra.mxu0 %v2303
    %2423 = vmatprep.subr.mxu0 0.0
    %2424 = vmatpush1.msra.mxu0 %v2304
    %2425 = vmatprep.subr.mxu0 0.0
    %2426 = vmatpush1.msra.mxu0 %v2305
    %2427 = vmatprep.subr.mxu0 0.0
    %2428 = vmatpush1.msra.mxu0 %v2306
    %2429 = vmatprep.subr.mxu0 0.0
    %2430 = vmatpush1.msra.mxu0 %v2307
    %2431 = vmatprep.subr.mxu0 0.0
    %2432 = vmatpush1.msra.mxu0 %v2308
    %2433 = vmatprep.subr.mxu0 0.0
    %2434 = vmatpush1.msra.mxu0 %v2309
    %2435 = vmatprep.subr.mxu0 0.0
    %2436 = vmatpush1.msra.mxu0 %v2310
    %2437 = vmatprep.subr.mxu0 0.0
    %2438 = vmatpush1.msra.mxu0 %v2311
    %2439 = vmatprep.subr.mxu0 0.0
    %2440 = vmatpush1.msra.mxu0 %v2312
    %2441 = vmatprep.subr.mxu0 0.0
    %2442 = vmatpush1.msra.mxu0 %v2313
    %2443 = vmatprep.subr.mxu0 0.0
    %2444 = vmatpush1.msra.mxu0 %v2314
    %2445 = vmatprep.subr.mxu0 0.0
    %2446 = vmatpush1.msra.mxu0 %v2315
    %2447 = vmatprep.subr.mxu0 0.0
    %2448 = vmatpush1.msra.mxu0 %v2316
    %2449 = vmatprep.subr.mxu0 0.0
    %2450 = vmatpush1.msra.mxu0 %v2317
    %2451 = vmatprep.subr.mxu0 0.0
    %2452 = vmatpush1.msra.mxu0 %v2318
    %2453 = vmatprep.subr.mxu0 0.0
    %2454 = vmatpush1.msra.mxu0 %v2319
    %2455 = vmatprep.subr.mxu0 0.0
    %2456 = vmatpush1.msra.mxu0 %v2320
    %2457 = vmatprep.subr.mxu0 0.0
    %2458 = vmatpush1.msra.mxu0 %v2321
    %2459 = vmatprep.subr.mxu0 0.0
    %2460 = vmatpush1.msra.mxu0 %v2322
    %2461 = vmatprep.subr.mxu0 0.0
    %2462 = vmatpush1.msra.mxu0 %v2323
    %2463 = vmatprep.subr.mxu0 0.0
    %2464 = vmatpush1.msra.mxu0 %v2324
    %2465 = vmatprep.subr.mxu0 0.0
    %2466 = vmatpush1.msra.mxu0 %v2325
    %2467 = vmatprep.subr.mxu0 0.0
    %2468 = vmatpush1.msra.mxu0 %v2326
    %2469 = vmatprep.subr.mxu0 0.0
    %2470 = vmatpush1.msra.mxu0 %v2327
    %2471 = vmatprep.subr.mxu0 0.0
    %2472 = vmatpush1.msra.mxu0 %v2328
    %2473 = vmatprep.subr.mxu0 0.0
    %2474 = vmatpush1.msra.mxu0 %v2329
    %2475 = vmatprep.subr.mxu0 0.0
    %2476 = vmatpush1.msra.mxu0 %v2330
    %2477 = vmatprep.mubr.f32.mxu0 %v2262
    %2478 = vmatmul.mubr.f32.gmra.mrb[0].mxu0 %v2261
    %v2479 = vpop.f32.mrb[0].mxu0
    %v2480 = vadd.f32 %v2405, %v2479
    %v2481 = vpop.f32.mrb[0].mxu0
    %2482 = vmatprep.mubr.f32.mxu0 %v2266
    %2483 = vmatmul.mubr.f32.gmra.mrb[0].mxu0 %v2265
    %v2484 = vpop.f32.mrb[0].mxu0
    %v2485 = vadd.f32 %v2410, %v2484
    %v2486 = vpop.f32.mrb[0].mxu0
    %2487 = vdwg.mxu0
    %v2488 = vadd.f32 %v2480, %v1809
    %v2489 = vadd.f32 %v2485, %v1810
    %v2490 = vld [vmem:[%s13] sm:$0x1]
    %v2491 = vld [vmem:[%s14] sm:$0x1]
    %2492 = vadd.xlane.f32.xlu0 %v2488
    %v2493 = vpop.xlane.xlu0 %2492
    %2494 = vadd.xlane.f32.xlu0 %v2489
    %v2495 = vpop.xlane.xlu0 %2494
    %v2496 = vmul.f32 %v2493, %v1636
    %v2497 = vmul.f32 %v2495, %v1636
    %v2498 = vsub.f32 %v2488, %v2496
    %v2499 = vsub.f32 %v2489, %v2497
    %v2500 = vmul.f32 %v2498, %v2498
    %v2501 = vmul.f32 %v2499, %v2499
    %2502 = vadd.xlane.f32.xlu0 %v2500
    %v2503 = vpop.xlane.xlu0 %2502
    %2504 = vadd.xlane.f32.xlu0 %v2501
    %v2505 = vpop.xlane.xlu0 %2504
    %v2506 = vmul.f32 %v2503, %v1636
    %v2507 = vmul.f32 %v2505, %v1636
    %v2508 = vadd.f32 %v2506, 1e-05
    %v2509 = vadd.f32 %v2507, 1e-05
    %v2510 = vrsqrt.pop %v2508
    %v2511 = vrsqrt.pop %v2509
    %v2512 = vmul.f32 %v2498, %v2510
    %v2513 = vmul.f32 %v2499, %v2511
    %v2515 = vlaneseq
    %v2516 = vshrl.u32 %v2515, 7
    %v2517 = vsub.s32 0, %v2516
    %v2518 = vrot.slane %v2490, %v2517
    %v2520 = vmul.f32 %v2512, %v2518
    %v2521 = vmul.f32 %v2513, %v2518
    %v2523 = vlaneseq
    %v2524 = vshrl.u32 %v2523, 7
    %v2525 = vsub.s32 0, %v2524
    %v2526 = vrot.slane %v2491, %v2525
    %v2528 = vadd.f32 %v2520, %v2526
    %v2529 = vadd.f32 %v2521, %v2526
    %2530 = vst [vmem:[#allocation5] sm:$0xff] %v2528
    %2531 = vst [vmem:[#allocation5 + $0x8] sm:$0xff] %v2529
    // Predicated region
    $region66: #{multihead_attention_layer.1} parent=1 // pred_check
      _
    $region67: #{multihead_attention_layer.1} parent=1 // pred_check_branch
      %2533 = sbr.rel (0) target = $region69
    $region68: #{multihead_attention_layer.1} parent=1 // pred_region
      %s2535 = ssub.s32 256, 256
      %2536 = vsyncadd [#allocation4], %s2535
      %s2537 = sshll.u32 [#allocation5], 4
      %s2538 = int_to_ptr.vmem [resolvable:$true] %s2537
      %2543 = dma.vmem_to_hbm [thread:$0]  %s2538, 256, %s15, [#allocation4], 128, 128, 8
    $region69: #{multihead_attention_layer.1} parent=1 // pred_fallthru
      _
    // Predicated region
    $region70: #{multihead_attention_layer.1} parent=1 // pred_check
      _
    $region71: #{multihead_attention_layer.1} parent=1 // pred_check_branch
      %2545 = sbr.rel (0) target = $region73
    $region72: #{multihead_attention_layer.1} parent=1 // pred_region
      %2546 = dma.done [#allocation4], 256
    $region73: #{multihead_attention_layer.1} parent=1 // pred_fallthru
      _
    %2547 = vsyncpa [#allocation3], 1
    %2548 = vsyncpa [#allocation4], 1

</llo_original>
